<compile_context>
chip_gen: v5e
topology: v5e:2x2
jax: 0.10.0
libtpu: 0.0.40
codegen_flags: <defaults>
</compile_context>

<pallas_src>
import jax
import jax.numpy as jnp
from jax.experimental import pallas as pl
from jax.experimental.pallas import tpu as pltpu

K = 5        # deconv kernel size
STRIDE = 2
PAD = 2
EPS = 1e-5   # PyTorch BatchNorm default eps

_VMEM = pl.BlockSpec(memory_space=pltpu.MemorySpace.VMEM)
_CPARAMS = pltpu.CompilerParams(vmem_limit_bytes=32 * 1024 * 1024)


# ------------------------------ Pallas kernels ------------------------------ #
def _fc_bn_relu_kernel(x_ref, w_ref, g_ref, b_ref, o_ref):
    """(B,Fin)@(Fin,Fout) -> BN1d (batch stats over rows) -> ReLU.

    Output lane width = Fout = 400 (lane-dense); linear bias dropped (BN
    mean-subtraction cancels it). BN affine folded into one scale/shift.
    """
    y = jnp.dot(x_ref[...], w_ref[...], preferred_element_type=jnp.float32)
    mu = jnp.mean(y, axis=0, keepdims=True)
    var = jnp.mean((y - mu) ** 2, axis=0, keepdims=True)
    scale = g_ref[...] * jax.lax.rsqrt(var + EPS)       # (1, Fout)
    shift = b_ref[...] - mu * scale                     # (1, Fout)
    o_ref[...] = jnp.maximum(y * scale + shift, 0.0)


def _deconv_bn_relu_kernel(w_ref, x_ref, g_ref, b_ref, o_ref):
    """(Cout,K*K*Cin)@(K*K*Cin, N*Ho*Wo) -> BN2d (stats over lane axis) -> ReLU.

    Transposed orientation: the long N*Ho*Wo axis is lane-dense; conv bias is
    dropped (BN cancels it). BN affine folded into one scale/shift per channel.
    """
    y = jnp.dot(w_ref[...], x_ref[...], preferred_element_type=jnp.float32)
    mu = jnp.mean(y, axis=-1, keepdims=True)
    var = jnp.mean((y - mu) ** 2, axis=-1, keepdims=True)
    scale = g_ref[...] * jax.lax.rsqrt(var + EPS)       # (Cout, 1)
    shift = b_ref[...] - mu * scale                     # (Cout, 1)
    o_ref[...] = jnp.maximum(y * scale + shift, 0.0)


def _deconv_bias_tanh_kernel(w_ref, x_ref, b_ref, o_ref):
    """(Cout,K*K*Cin)@(K*K*Cin, N*Ho*Wo) + bias -> tanh (final layer, no BN)."""
    y = jnp.dot(w_ref[...], x_ref[...], preferred_element_type=jnp.float32)
    o_ref[...] = jnp.tanh(y + b_ref[...])


# ------------------------------ kernel wrappers ----------------------------- #
def fc_bn_relu(z, w_t, gamma, beta):
    b, fout = z.shape[0], w_t.shape[1]
    return pl.pallas_call(
        _fc_bn_relu_kernel,
        out_shape=jax.ShapeDtypeStruct((b, fout), jnp.float32),
        in_specs=[_VMEM] * 4,
        out_specs=_VMEM,
        compiler_params=_CPARAMS,
    )(z.astype(jnp.bfloat16), w_t.astype(jnp.bfloat16),
      gamma.reshape(1, fout), beta.reshape(1, fout))


def deconv_gemm(w_mat, cols_t, gamma_or_bias, beta=None):
    """Fused (transposed) GEMM + [BN2d+ReLU | bias+tanh]; output (Cout, rows)."""
    cout, rows = w_mat.shape[0], cols_t.shape[1]
    if beta is not None:
        kern = _deconv_bn_relu_kernel
        extras = (gamma_or_bias.reshape(cout, 1), beta.reshape(cout, 1))
    else:
        kern = _deconv_bias_tanh_kernel
        extras = (gamma_or_bias.reshape(cout, 1),)
    return pl.pallas_call(
        kern,
        out_shape=jax.ShapeDtypeStruct((cout, rows), jnp.float32),
        in_specs=[_VMEM] * (2 + len(extras)),
        out_specs=_VMEM,
        compiler_params=_CPARAMS,
    )(w_mat.astype(jnp.bfloat16), cols_t.astype(jnp.bfloat16), *extras)


# --------------------------- plain-JAX layout glue --------------------------- #
def dilate_pad_cf(x):
    """Channels-first (C,B,H,W): zero-insert (stride) + pad in one scatter."""
    c, b, h, w = x.shape
    p = K - 1 - PAD                         # = 2
    hp = (h - 1) * STRIDE + 1 + 2 * p
    wp = (w - 1) * STRIDE + 1 + 2 * p
    xp = jnp.zeros((c, b, hp, wp), x.dtype)
    return xp.at[:, :, p:p + (h - 1) * STRIDE + 1:STRIDE,
                       p:p + (w - 1) * STRIDE + 1:STRIDE].set(x)


def im2col_cf(xp, ho, wo):
    """(C,B,Hp,Wp) -> (K*K*C, B*Ho*Wo); rows ordered (ky,kx,c), cols (b,y,x)."""
    c, b = xp.shape[0], xp.shape[1]
    windows = [xp[:, :, ky:ky + ho, kx:kx + wo]
               for ky in range(K) for kx in range(K)]
    patches = jnp.stack(windows, axis=0)            # (K*K, C, B, Ho, Wo)
    return patches.reshape(K * K * c, b * ho * wo)


def deconv_weight_mat(w_deconv):
    """PyTorch ConvTranspose2d weight (Cin,Cout,K,K) -> GEMM matrix
    (Cout, K*K*Cin): spatially flipped kernel, columns ordered (ky,kx,cin)
    to match im2col_cf's row ordering."""
    cout = w_deconv.shape[1]
    w_flip = w_deconv[:, :, ::-1, ::-1]             # (Cin,Cout,K,K)
    return jnp.transpose(w_flip, (1, 2, 3, 0)).reshape(cout, -1)


def deconv_layer(x_cf, w_deconv, gamma_or_bias, beta=None):
    """x_cf: (Cin, B, H, W) -> (Cout, B, Ho, Wo)."""
    _, b, h, w = x_cf.shape
    ho = (h - 1) * STRIDE - 2 * PAD + K
    wo = (w - 1) * STRIDE - 2 * PAD + K
    cols_t = im2col_cf(dilate_pad_cf(x_cf), ho, wo)
    y = deconv_gemm(deconv_weight_mat(w_deconv), cols_t, gamma_or_bias, beta)
    return y.reshape(w_deconv.shape[1], b, ho, wo)


# ------------------------------ Generator ----------------------------------- #
def generator_forward(z, p):
    b = z.shape[0]
    # Linear(100,400) + BN1d + ReLU (linear bias dropped: BN cancels it).
    h = fc_bn_relu(z, p["fc_w"].T, p["bn0_g"], p["bn0_b"])        # (B, 400)
    # view(-1,16,5,5) (NCHW) -> channels-first (Cin, B, H, W)
    x = h.reshape(b, 16, 5, 5).transpose(1, 0, 2, 3)              # (16,B,5,5)
    x = deconv_layer(x, p["w1"], p["bn1_g"], p["bn1_b"])          # (8, B, 9, 9)
    x = deconv_layer(x, p["w2"], p["bn2_g"], p["bn2_b"])          # (4, B,17,17)
    x = deconv_layer(x, p["w3"], p["b3"])                         # (3, B,33,33)
    return x.transpose(1, 0, 2, 3)                                # (B,3,33,33)


def init_params(key):
    ks = jax.random.split(key, 8)
    f32 = jnp.float32
    return {
        # Linear(100 -> 400): weight (out,in), bias (out,)
        "fc_w": 0.05 * jax.random.normal(ks[0], (400, 100), f32),
        "fc_b": 0.05 * jax.random.normal(ks[1], (400,), f32),   # canceled by BN1d
        "bn0_g": jnp.ones((400,), f32), "bn0_b": jnp.zeros((400,), f32),
        # ConvTranspose2d weights: (Cin, Cout, K, K)
        "w1": 0.05 * jax.random.normal(ks[2], (16, 8, K, K), f32),
        "b1": 0.05 * jax.random.normal(ks[3], (8,), f32),       # canceled by BN2d
        "bn1_g": jnp.ones((8,), f32), "bn1_b": jnp.zeros((8,), f32),
        "w2": 0.05 * jax.random.normal(ks[4], (8, 4, K, K), f32),
        "b2": 0.05 * jax.random.normal(ks[5], (4,), f32),       # canceled by BN2d
        "bn2_g": jnp.ones((4,), f32), "bn2_b": jnp.zeros((4,), f32),
        "w3": 0.05 * jax.random.normal(ks[6], (4, 3, K, K), f32),
        "b3": 0.05 * jax.random.normal(ks[7], (3,), f32),
    }


if __name__ == "__main__":
    key = jax.random.PRNGKey(0)
    pkey, zkey = jax.random.split(key)
    params = init_params(pkey)

    B, LATENT = 4, 100            # BatchNorm training stats need B > 1
    z = jax.random.normal(zkey, (B, LATENT), jnp.float32)

    out = jax.jit(generator_forward)(z, params)
    out = jax.block_until_ready(out)

    assert out.shape == (B, 3, 33, 33), out.shape
    assert bool(jnp.all(jnp.isfinite(out)))
    assert bool(jnp.all(jnp.abs(out) <= 1.0))   # tanh range
    print("KERNEL_OK")
</pallas_src>

<mosaic_0001>
module attributes {stable_mosaic.version = 11 : i64} {
  func.func @_fc_bn_relu_kernel(%arg0: memref<4x100xbf16, #tpu.memory_space<vmem>>, %arg1: memref<100x400xbf16, #tpu.memory_space<vmem>>, %arg2: memref<1x400xf32, #tpu.memory_space<vmem>>, %arg3: memref<1x400xf32, #tpu.memory_space<vmem>>, %arg4: memref<4x400xf32, #tpu.memory_space<vmem>>) attributes {dimension_semantics = [], scalar_prefetch = 0 : i64, scratch_operands = 0 : i64, tpu.core_type = #tpu.core_type<tc>} {
    %c0 = arith.constant 0 : index
    %c0_0 = arith.constant 0 : index
    %0 = vector.load %arg0[%c0, %c0_0] : memref<4x100xbf16, #tpu.memory_space<vmem>>, vector<4x100xbf16>
    %c0_1 = arith.constant 0 : index
    %c0_2 = arith.constant 0 : index
    %1 = vector.load %arg1[%c0_1, %c0_2] : memref<100x400xbf16, #tpu.memory_space<vmem>>, vector<100x400xbf16>
    %cst = arith.constant dense<0.000000e+00> : vector<4x400xf32>
    %2 = tpu.matmul %0, %1, %cst {dimension_numbers = #tpu.dot_dimension_numbers<[1], [0], [0], [1], [0, 0, 1, 1], [], []>} : vector<4x100xbf16>, vector<100x400xbf16>, vector<4x400xf32> -> vector<4x400xf32>
    %cst_3 = arith.constant dense<0.000000e+00> : vector<400xf32>
    %3 = vector.multi_reduction <add>, %2, %cst_3 [0] : vector<4x400xf32> to vector<400xf32>
    %4 = vector.shape_cast %3 : vector<400xf32> to vector<1x400xf32>
    %cst_4 = arith.constant 4.000000e+00 : f32
    %5 = vector.broadcast %cst_4 : f32 to vector<1x400xf32>
    %6 = arith.divf %4, %5 : vector<1x400xf32>
    %7 = vector.broadcast %6 : vector<1x400xf32> to vector<4x400xf32>
    %8 = arith.subf %2, %7 : vector<4x400xf32>
    %9 = arith.mulf %8, %8 : vector<4x400xf32>
    %cst_5 = arith.constant dense<0.000000e+00> : vector<400xf32>
    %10 = vector.multi_reduction <add>, %9, %cst_5 [0] : vector<4x400xf32> to vector<400xf32>
    %11 = vector.shape_cast %10 : vector<400xf32> to vector<1x400xf32>
    %cst_6 = arith.constant 4.000000e+00 : f32
    %12 = vector.broadcast %cst_6 : f32 to vector<1x400xf32>
    %13 = arith.divf %11, %12 : vector<1x400xf32>
    %c0_7 = arith.constant 0 : index
    %c0_8 = arith.constant 0 : index
    %14 = vector.load %arg2[%c0_7, %c0_8] : memref<1x400xf32, #tpu.memory_space<vmem>>, vector<1x400xf32>
    %cst_9 = arith.constant 9.99999974E-6 : f32
    %15 = vector.broadcast %cst_9 : f32 to vector<1x400xf32>
    %16 = arith.addf %13, %15 : vector<1x400xf32>
    %17 = math.rsqrt %16 : vector<1x400xf32>
    %18 = arith.mulf %14, %17 : vector<1x400xf32>
    %c0_10 = arith.constant 0 : index
    %c0_11 = arith.constant 0 : index
    %19 = vector.load %arg3[%c0_10, %c0_11] : memref<1x400xf32, #tpu.memory_space<vmem>>, vector<1x400xf32>
    %20 = arith.mulf %6, %18 : vector<1x400xf32>
    %21 = arith.subf %19, %20 : vector<1x400xf32>
    %22 = vector.broadcast %18 : vector<1x400xf32> to vector<4x400xf32>
    %23 = arith.mulf %2, %22 : vector<4x400xf32>
    %24 = vector.broadcast %21 : vector<1x400xf32> to vector<4x400xf32>
    %25 = arith.addf %23, %24 : vector<4x400xf32>
    %cst_12 = arith.constant 0.000000e+00 : f32
    %26 = vector.broadcast %cst_12 : f32 to vector<4x400xf32>
    %27 = arith.maximumf %25, %26 : vector<4x400xf32>
    %c0_13 = arith.constant 0 : index
    %c0_14 = arith.constant 0 : index
    %28 = vector.load %arg4[%c0_13, %c0_14] : memref<4x400xf32, #tpu.memory_space<vmem>>, vector<4x400xf32>
    tpu.vector_store %arg4[%c0_13, %c0_14], %27 {strides = array<i32>} : memref<4x400xf32, #tpu.memory_space<vmem>>, vector<4x400xf32>,
    return
  }
}

module attributes {stable_mosaic.version = 11 : i64} {
  func.func @_deconv_bn_relu_kernel(%arg0: memref<8x400xbf16, #tpu.memory_space<vmem>>, %arg1: memref<400x324xbf16, #tpu.memory_space<vmem>>, %arg2: memref<8x1xf32, #tpu.memory_space<vmem>>, %arg3: memref<8x1xf32, #tpu.memory_space<vmem>>, %arg4: memref<8x324xf32, #tpu.memory_space<vmem>>) attributes {dimension_semantics = [], scalar_prefetch = 0 : i64, scratch_operands = 0 : i64, tpu.core_type = #tpu.core_type<tc>} {
    %c0 = arith.constant 0 : index
    %c0_0 = arith.constant 0 : index
    %0 = vector.load %arg0[%c0, %c0_0] : memref<8x400xbf16, #tpu.memory_space<vmem>>, vector<8x400xbf16>
    %c0_1 = arith.constant 0 : index
    %c0_2 = arith.constant 0 : index
    %1 = vector.load %arg1[%c0_1, %c0_2] : memref<400x324xbf16, #tpu.memory_space<vmem>>, vector<400x324xbf16>
    %cst = arith.constant dense<0.000000e+00> : vector<8x324xf32>
    %2 = tpu.matmul %0, %1, %cst {dimension_numbers = #tpu.dot_dimension_numbers<[1], [0], [0], [1], [0, 0, 1, 1], [], []>} : vector<8x400xbf16>, vector<400x324xbf16>, vector<8x324xf32> -> vector<8x324xf32>
    %cst_3 = arith.constant dense<0.000000e+00> : vector<8xf32>
    %3 = vector.multi_reduction <add>, %2, %cst_3 [1] : vector<8x324xf32> to vector<8xf32>
    %4 = vector.shape_cast %3 : vector<8xf32> to vector<8x1xf32>
    %cst_4 = arith.constant 3.240000e+02 : f32
    %5 = vector.broadcast %cst_4 : f32 to vector<8x1xf32>
    %6 = arith.divf %4, %5 : vector<8x1xf32>
    %7 = vector.broadcast %6 : vector<8x1xf32> to vector<8x324xf32>
    %8 = arith.subf %2, %7 : vector<8x324xf32>
    %9 = arith.mulf %8, %8 : vector<8x324xf32>
    %cst_5 = arith.constant dense<0.000000e+00> : vector<8xf32>
    %10 = vector.multi_reduction <add>, %9, %cst_5 [1] : vector<8x324xf32> to vector<8xf32>
    %11 = vector.shape_cast %10 : vector<8xf32> to vector<8x1xf32>
    %cst_6 = arith.constant 3.240000e+02 : f32
    %12 = vector.broadcast %cst_6 : f32 to vector<8x1xf32>
    %13 = arith.divf %11, %12 : vector<8x1xf32>
    %c0_7 = arith.constant 0 : index
    %c0_8 = arith.constant 0 : index
    %14 = vector.load %arg2[%c0_7, %c0_8] : memref<8x1xf32, #tpu.memory_space<vmem>>, vector<8x1xf32>
    %cst_9 = arith.constant 9.99999974E-6 : f32
    %15 = vector.broadcast %cst_9 : f32 to vector<8x1xf32>
    %16 = arith.addf %13, %15 : vector<8x1xf32>
    %17 = math.rsqrt %16 : vector<8x1xf32>
    %18 = arith.mulf %14, %17 : vector<8x1xf32>
    %c0_10 = arith.constant 0 : index
    %c0_11 = arith.constant 0 : index
    %19 = vector.load %arg3[%c0_10, %c0_11] : memref<8x1xf32, #tpu.memory_space<vmem>>, vector<8x1xf32>
    %20 = arith.mulf %6, %18 : vector<8x1xf32>
    %21 = arith.subf %19, %20 : vector<8x1xf32>
    %22 = vector.broadcast %18 : vector<8x1xf32> to vector<8x324xf32>
    %23 = arith.mulf %2, %22 : vector<8x324xf32>
    %24 = vector.broadcast %21 : vector<8x1xf32> to vector<8x324xf32>
    %25 = arith.addf %23, %24 : vector<8x324xf32>
    %cst_12 = arith.constant 0.000000e+00 : f32
    %26 = vector.broadcast %cst_12 : f32 to vector<8x324xf32>
    %27 = arith.maximumf %25, %26 : vector<8x324xf32>
    %c0_13 = arith.constant 0 : index
    %c0_14 = arith.constant 0 : index
    %28 = vector.load %arg4[%c0_13, %c0_14] : memref<8x324xf32, #tpu.memory_space<vmem>>, vector<8x324xf32>
    tpu.vector_store %arg4[%c0_13, %c0_14], %27 {strides = array<i32>} : memref<8x324xf32, #tpu.memory_space<vmem>>, vector<8x324xf32>,
    return
  }
}

module attributes {stable_mosaic.version = 11 : i64} {
  func.func @_deconv_bn_relu_kernel(%arg0: memref<4x200xbf16, #tpu.memory_space<vmem>>, %arg1: memref<200x1156xbf16, #tpu.memory_space<vmem>>, %arg2: memref<4x1xf32, #tpu.memory_space<vmem>>, %arg3: memref<4x1xf32, #tpu.memory_space<vmem>>, %arg4: memref<4x1156xf32, #tpu.memory_space<vmem>>) attributes {dimension_semantics = [], scalar_prefetch = 0 : i64, scratch_operands = 0 : i64, tpu.core_type = #tpu.core_type<tc>} {
    %c0 = arith.constant 0 : index
    %c0_0 = arith.constant 0 : index
    %0 = vector.load %arg0[%c0, %c0_0] : memref<4x200xbf16, #tpu.memory_space<vmem>>, vector<4x200xbf16>
    %c0_1 = arith.constant 0 : index
    %c0_2 = arith.constant 0 : index
    %1 = vector.load %arg1[%c0_1, %c0_2] : memref<200x1156xbf16, #tpu.memory_space<vmem>>, vector<200x1156xbf16>
    %cst = arith.constant dense<0.000000e+00> : vector<4x1156xf32>
    %2 = tpu.matmul %0, %1, %cst {dimension_numbers = #tpu.dot_dimension_numbers<[1], [0], [0], [1], [0, 0, 1, 1], [], []>} : vector<4x200xbf16>, vector<200x1156xbf16>, vector<4x1156xf32> -> vector<4x1156xf32>
    %cst_3 = arith.constant dense<0.000000e+00> : vector<4xf32>
    %3 = vector.multi_reduction <add>, %2, %cst_3 [1] : vector<4x1156xf32> to vector<4xf32>
    %4 = vector.shape_cast %3 : vector<4xf32> to vector<4x1xf32>
    %cst_4 = arith.constant 1.156000e+03 : f32
    %5 = vector.broadcast %cst_4 : f32 to vector<4x1xf32>
    %6 = arith.divf %4, %5 : vector<4x1xf32>
    %7 = vector.broadcast %6 : vector<4x1xf32> to vector<4x1156xf32>
    %8 = arith.subf %2, %7 : vector<4x1156xf32>
    %9 = arith.mulf %8, %8 : vector<4x1156xf32>
    %cst_5 = arith.constant dense<0.000000e+00> : vector<4xf32>
    %10 = vector.multi_reduction <add>, %9, %cst_5 [1] : vector<4x1156xf32> to vector<4xf32>
    %11 = vector.shape_cast %10 : vector<4xf32> to vector<4x1xf32>
    %cst_6 = arith.constant 1.156000e+03 : f32
    %12 = vector.broadcast %cst_6 : f32 to vector<4x1xf32>
    %13 = arith.divf %11, %12 : vector<4x1xf32>
    %c0_7 = arith.constant 0 : index
    %c0_8 = arith.constant 0 : index
    %14 = vector.load %arg2[%c0_7, %c0_8] : memref<4x1xf32, #tpu.memory_space<vmem>>, vector<4x1xf32>
    %cst_9 = arith.constant 9.99999974E-6 : f32
    %15 = vector.broadcast %cst_9 : f32 to vector<4x1xf32>
    %16 = arith.addf %13, %15 : vector<4x1xf32>
    %17 = math.rsqrt %16 : vector<4x1xf32>
    %18 = arith.mulf %14, %17 : vector<4x1xf32>
    %c0_10 = arith.constant 0 : index
    %c0_11 = arith.constant 0 : index
    %19 = vector.load %arg3[%c0_10, %c0_11] : memref<4x1xf32, #tpu.memory_space<vmem>>, vector<4x1xf32>
    %20 = arith.mulf %6, %18 : vector<4x1xf32>
    %21 = arith.subf %19, %20 : vector<4x1xf32>
    %22 = vector.broadcast %18 : vector<4x1xf32> to vector<4x1156xf32>
    %23 = arith.mulf %2, %22 : vector<4x1156xf32>
    %24 = vector.broadcast %21 : vector<4x1xf32> to vector<4x1156xf32>
    %25 = arith.addf %23, %24 : vector<4x1156xf32>
    %cst_12 = arith.constant 0.000000e+00 : f32
    %26 = vector.broadcast %cst_12 : f32 to vector<4x1156xf32>
    %27 = arith.maximumf %25, %26 : vector<4x1156xf32>
    %c0_13 = arith.constant 0 : index
    %c0_14 = arith.constant 0 : index
    %28 = vector.load %arg4[%c0_13, %c0_14] : memref<4x1156xf32, #tpu.memory_space<vmem>>, vector<4x1156xf32>
    tpu.vector_store %arg4[%c0_13, %c0_14], %27 {strides = array<i32>} : memref<4x1156xf32, #tpu.memory_space<vmem>>, vector<4x1156xf32>,
    return
  }
}

module attributes {stable_mosaic.version = 11 : i64} {
  func.func @_deconv_bias_tanh_kernel(%arg0: memref<3x100xbf16, #tpu.memory_space<vmem>>, %arg1: memref<100x4356xbf16, #tpu.memory_space<vmem>>, %arg2: memref<3x1xf32, #tpu.memory_space<vmem>>, %arg3: memref<3x4356xf32, #tpu.memory_space<vmem>>) attributes {dimension_semantics = [], scalar_prefetch = 0 : i64, scratch_operands = 0 : i64, tpu.core_type = #tpu.core_type<tc>} {
    %c0 = arith.constant 0 : index
    %c0_0 = arith.constant 0 : index
    %0 = vector.load %arg0[%c0, %c0_0] : memref<3x100xbf16, #tpu.memory_space<vmem>>, vector<3x100xbf16>
    %c0_1 = arith.constant 0 : index
    %c0_2 = arith.constant 0 : index
    %1 = vector.load %arg1[%c0_1, %c0_2] : memref<100x4356xbf16, #tpu.memory_space<vmem>>, vector<100x4356xbf16>
    %cst = arith.constant dense<0.000000e+00> : vector<3x4356xf32>
    %2 = tpu.matmul %0, %1, %cst {dimension_numbers = #tpu.dot_dimension_numbers<[1], [0], [0], [1], [0, 0, 1, 1], [], []>} : vector<3x100xbf16>, vector<100x4356xbf16>, vector<3x4356xf32> -> vector<3x4356xf32>
    %c0_3 = arith.constant 0 : index
    %c0_4 = arith.constant 0 : index
    %3 = vector.load %arg2[%c0_3, %c0_4] : memref<3x1xf32, #tpu.memory_space<vmem>>, vector<3x1xf32>
    %4 = vector.broadcast %3 : vector<3x1xf32> to vector<3x4356xf32>
    %5 = arith.addf %2, %4 : vector<3x4356xf32>
    %6 = math.tanh %5 : vector<3x4356xf32>
    %c0_5 = arith.constant 0 : index
    %c0_6 = arith.constant 0 : index
    %7 = vector.load %arg3[%c0_5, %c0_6] : memref<3x4356xf32, #tpu.memory_space<vmem>>, vector<3x4356xf32>
    tpu.vector_store %arg3[%c0_5, %c0_6], %6 {strides = array<i32>} : memref<3x4356xf32, #tpu.memory_space<vmem>>, vector<3x4356xf32>,
    return
  }
}

</mosaic_0001>

<llo_original>
// kernel: generator_forward.4
$region0: #{generator_forward.4}
  #allocation0 [shape = 'u32[]', space=smem, size = 0x4, offset = 0x4, fixed_abs, tag = 'smem constant byte address 0x4 - core index']
  #allocation1 [shape = 'u32[72,128]{1,0:T(1,128)}', space=vmem, size = 0x9000, scoped, tag = 'internal scratch']
  %s0 = inlined_call_operand.vmem [shape: bf16[4,100], index: 0, kind: input, shape index: {}]
  %s1 = inlined_call_operand.vmem [shape: bf16[100,400], index: 1, kind: input, shape index: {}]
  %s2 = inlined_call_operand.hbm [shape: f32[1,400], index: 2, kind: input, shape index: {}]
  %s3 = inlined_call_operand.hbm [shape: f32[1,400], index: 3, kind: input, shape index: {}]
  %s4 = inlined_call_operand.vmem [shape: f32[4,400], index: 4, kind: output, shape index: {}]
  %s5 = sld [smem:[#allocation0]]
  $region34: #{generator_forward.4} parent=0
    _
  %s7 = ssub.s32 1, %s5
  %s8 = scalar_select 0, %s7, %s5
  $region1: #{generator_forward.4} parent=0
    #allocation2 [shape = 'u8[2048]{0}', space=vmem, size = 0x800, scoped, tag = 'input window, operand 2, single buffered']
    #allocation3 [shape = 's32[1]{0}', space=sflag, size = 0x4, scoped, tag = 'scoped memory for generator_forward.4']
    #allocation4 [shape = 'u8[2048]{0}', space=vmem, size = 0x800, scoped, tag = 'input window, operand 3, single buffered']
    #allocation5 [shape = 's32[1]{0}', space=sflag, size = 0x4, scoped, tag = 'scoped memory for generator_forward.4']
    %9 = vsyncpa [#allocation3], 0
    %10 = vsyncpa [#allocation5], 0
    // Predicated region
    $region2: #{generator_forward.4} parent=1 // pred_check
      _
    $region3: #{generator_forward.4} parent=1 // pred_check_branch
      %12 = sbr.rel (0) target = $region5
    $region4: #{generator_forward.4} parent=1 // pred_region
      _
    $region5: #{generator_forward.4} parent=1 // pred_fallthru
      _
    // Predicated region
    $region6: #{generator_forward.4} parent=1 // pred_check
      _
    $region7: #{generator_forward.4} parent=1 // pred_check_branch
      %14 = sbr.rel (0) target = $region9
    $region8: #{generator_forward.4} parent=1 // pred_region
      _
    $region9: #{generator_forward.4} parent=1 // pred_fallthru
      _
    // Predicated region
    $region10: #{generator_forward.4} parent=1 // pred_check
      _
    $region11: #{generator_forward.4} parent=1 // pred_check_branch
      %16 = sbr.rel (0) target = $region13
    $region12: #{generator_forward.4} parent=1 // pred_region
      %18 = vsyncadd [#allocation3], 0
      %s20 = sshll.u32 %s2, 4
      %s21 = int_to_ptr.hbm [resolvable:$true] %s20
      %s22 = sshll.u32 [#allocation2], 4
      %s23 = int_to_ptr.vmem [resolvable:$true] %s22
      %25 = dma.hbm_to_vmem [thread:$0]  %s21, 64, %s23, [#allocation3]
    $region13: #{generator_forward.4} parent=1 // pred_fallthru
      _
    // Predicated region
    $region14: #{generator_forward.4} parent=1 // pred_check
      _
    $region15: #{generator_forward.4} parent=1 // pred_check_branch
      %27 = sbr.rel (0) target = $region17
    $region16: #{generator_forward.4} parent=1 // pred_region
      %29 = vsyncadd [#allocation5], 0
      %s31 = sshll.u32 %s3, 4
      %s32 = int_to_ptr.hbm [resolvable:$true] %s31
      %s33 = sshll.u32 [#allocation4], 4
      %s34 = int_to_ptr.vmem [resolvable:$true] %s33
      %36 = dma.hbm_to_vmem [thread:$0]  %s32, 64, %s34, [#allocation5]
    $region17: #{generator_forward.4} parent=1 // pred_fallthru
      _
    // Predicated region
    $region18: #{generator_forward.4} parent=1 // pred_check
      _
    $region19: #{generator_forward.4} parent=1 // pred_check_branch
      %38 = sbr.rel (0) target = $region21
    $region20: #{generator_forward.4} parent=1 // pred_region
      %40 = dma.done [#allocation3], 64
    $region21: #{generator_forward.4} parent=1 // pred_fallthru
      _
    // Predicated region
    $region22: #{generator_forward.4} parent=1 // pred_check
      _
    $region23: #{generator_forward.4} parent=1 // pred_check_branch
      %42 = sbr.rel (0) target = $region25
    $region24: #{generator_forward.4} parent=1 // pred_region
      %44 = dma.done [#allocation5], 64
    $region25: #{generator_forward.4} parent=1 // pred_fallthru
      _
    %v46 = vld [vmem:[%s0] sm:$0x3]
    %v47 = vld [vmem:[%s1] sm:$0xff]
    %v48 = vld [vmem:[%s1 + $0x8] sm:$0xff]
    %v49 = vld [vmem:[%s1 + $0x10] sm:$0xff]
    %v50 = vld [vmem:[%s1 + $0x18] sm:$0xff]
    %v51 = vld [vmem:[%s1 + $0x20] sm:$0xff]
    %v52 = vld [vmem:[%s1 + $0x28] sm:$0xff]
    %v53 = vld [vmem:[%s1 + $0x30] sm:$0xff]
    %v54 = vld [vmem:[%s1 + $0x38] sm:$0xff]
    %v55 = vld [vmem:[%s1 + $0x40] sm:$0xff]
    %v56 = vld [vmem:[%s1 + $0x48] sm:$0xff]
    %v57 = vld [vmem:[%s1 + $0x50] sm:$0xff]
    %v58 = vld [vmem:[%s1 + $0x58] sm:$0xff]
    %v59 = vld [vmem:[%s1 + $0x60] sm:$0xff]
    %v60 = vld [vmem:[%s1 + $0x68] sm:$0xff]
    %v61 = vld [vmem:[%s1 + $0x70] sm:$0xff]
    %v62 = vld [vmem:[%s1 + $0x78] sm:$0xff]
    %v63 = vld [vmem:[%s1 + $0x80] sm:$0xff]
    %v64 = vld [vmem:[%s1 + $0x88] sm:$0xff]
    %v65 = vld [vmem:[%s1 + $0x90] sm:$0xff]
    %v66 = vld [vmem:[%s1 + $0x98] sm:$0xff]
    %v67 = vld [vmem:[%s1 + $0xa0] sm:$0xff]
    %v68 = vld [vmem:[%s1 + $0xa8] sm:$0xff]
    %v69 = vld [vmem:[%s1 + $0xb0] sm:$0xff]
    %v70 = vld [vmem:[%s1 + $0xb8] sm:$0xff]
    %v71 = vld [vmem:[%s1 + $0xc0] sm:$0x33]
    %v72 = vld [vmem:[%s1 + $0xc8] sm:$0x33]
    %v99 = vunpack.c.l.b16 %v47
    %v100 = vunpack.c.h.b16 %v47
    %v101 = vunpack.c.l.b16 %v48
    %v102 = vunpack.c.h.b16 %v48
    %v103 = vunpack.c.l.b16 %v49
    %v104 = vunpack.c.h.b16 %v49
    %v105 = vunpack.c.l.b16 %v50
    %v106 = vunpack.c.h.b16 %v50
    %v107 = vunpack.c.l.b16 %v51
    %v108 = vunpack.c.h.b16 %v51
    %v109 = vunpack.c.l.b16 %v52
    %v110 = vunpack.c.h.b16 %v52
    %v111 = vunpack.c.l.b16 %v53
    %v112 = vunpack.c.h.b16 %v53
    %v113 = vunpack.c.l.b16 %v54
    %v114 = vunpack.c.h.b16 %v54
    %v115 = vunpack.c.l.b16 %v55
    %v116 = vunpack.c.h.b16 %v55
    %v117 = vunpack.c.l.b16 %v56
    %v118 = vunpack.c.h.b16 %v56
    %v119 = vunpack.c.l.b16 %v57
    %v120 = vunpack.c.h.b16 %v57
    %v121 = vunpack.c.l.b16 %v58
    %v122 = vunpack.c.h.b16 %v58
    %v123 = vunpack.c.l.b16 %v59
    %v124 = vunpack.c.h.b16 %v59
    %v125 = vunpack.c.l.b16 %v60
    %v126 = vunpack.c.h.b16 %v60
    %v127 = vunpack.c.l.b16 %v61
    %v128 = vunpack.c.h.b16 %v61
    %v129 = vunpack.c.l.b16 %v62
    %v130 = vunpack.c.h.b16 %v62
    %v131 = vunpack.c.l.b16 %v63
    %v132 = vunpack.c.h.b16 %v63
    %v133 = vunpack.c.l.b16 %v64
    %v134 = vunpack.c.h.b16 %v64
    %v135 = vunpack.c.l.b16 %v65
    %v136 = vunpack.c.h.b16 %v65
    %v137 = vunpack.c.l.b16 %v66
    %v138 = vunpack.c.h.b16 %v66
    %v139 = vunpack.c.l.b16 %v67
    %v140 = vunpack.c.h.b16 %v67
    %v141 = vunpack.c.l.b16 %v68
    %v142 = vunpack.c.h.b16 %v68
    %v143 = vunpack.c.l.b16 %v69
    %v144 = vunpack.c.h.b16 %v69
    %v145 = vunpack.c.l.b16 %v70
    %v146 = vunpack.c.h.b16 %v70
    %v147 = vunpack.c.l.b16 %v71
    %v148 = vunpack.c.h.b16 %v71
    %v149 = vunpack.c.l.b16 %v72
    %v150 = vunpack.c.h.b16 %v72
    %v151 = vpack.c.b16 %v103, %v99
    %v152 = vpack.c.b16 %v104, %v100
    %v153 = vpack.c.b16 %v105, %v101
    %v154 = vpack.c.b16 %v106, %v102
    %v155 = vpack.c.b16 %v111, %v107
    %v156 = vpack.c.b16 %v112, %v108
    %v157 = vpack.c.b16 %v113, %v109
    %v158 = vpack.c.b16 %v114, %v110
    %v159 = vpack.c.b16 %v119, %v115
    %v160 = vpack.c.b16 %v120, %v116
    %v161 = vpack.c.b16 %v121, %v117
    %v162 = vpack.c.b16 %v122, %v118
    %v163 = vpack.c.b16 %v127, %v123
    %v164 = vpack.c.b16 %v128, %v124
    %v165 = vpack.c.b16 %v129, %v125
    %v166 = vpack.c.b16 %v130, %v126
    %v167 = vpack.c.b16 %v135, %v131
    %v168 = vpack.c.b16 %v136, %v132
    %v169 = vpack.c.b16 %v137, %v133
    %v170 = vpack.c.b16 %v138, %v134
    %v171 = vpack.c.b16 %v143, %v139
    %v172 = vpack.c.b16 %v144, %v140
    %v173 = vpack.c.b16 %v145, %v141
    %v174 = vpack.c.b16 %v146, %v142
    %v175 = vpack.c.b16 %v147, %v147
    %v176 = vpack.c.b16 %v148, %v148
    %v177 = vpack.c.b16 %v149, %v149
    %v178 = vpack.c.b16 %v150, %v150
    %vm203 = vcmask 818176
    %v205 = vsel %vm203, %v46, 0
    %vm207 = vcmask 1041408
    %v209 = vsel %vm207, %v175, 0
    %v212 = vsel %vm207, %v176, 0
    %v215 = vsel %vm207, %v177, 0
    %v218 = vsel %vm207, %v178, 0
    %220 = vmatpush.bf16.msra.mxu0 0
    %221 = vmatpush.bf16.msra.mxu0 %v209
    %222 = vmatpush.bf16.msra.mxu0 %v171
    %223 = vmatpush.bf16.msra.mxu0 %v167
    %224 = vmatpush.bf16.msra.mxu0 %v163
    %225 = vmatpush.bf16.msra.mxu0 %v159
    %226 = vmatpush.bf16.msra.mxu0 %v155
    %227 = vmatpush.bf16.msra.mxu0 %v151
    %228 = vmatmul.bf16.gmra.mxu0 %v205
    %v229 = vpop.f32.mrf.mxu0
    %v230 = vadd.f32 0.0, %v229
    %v231 = vpop.f32.mrf.mxu0
    %232 = vdwg.mxu0
    %233 = vmatpush.bf16.msra.mxu0 0
    %234 = vmatpush.bf16.msra.mxu0 %v212
    %235 = vmatpush.bf16.msra.mxu0 %v172
    %236 = vmatpush.bf16.msra.mxu0 %v168
    %237 = vmatpush.bf16.msra.mxu0 %v164
    %238 = vmatpush.bf16.msra.mxu0 %v160
    %239 = vmatpush.bf16.msra.mxu0 %v156
    %240 = vmatpush.bf16.msra.mxu0 %v152
    %241 = vmatmul.bf16.gmra.mxu0 %v205
    %v242 = vpop.f32.mrf.mxu0
    %v243 = vadd.f32 0.0, %v242
    %v244 = vpop.f32.mrf.mxu0
    %245 = vdwg.mxu0
    %246 = vmatpush.bf16.msra.mxu0 0
    %247 = vmatpush.bf16.msra.mxu0 %v215
    %248 = vmatpush.bf16.msra.mxu0 %v173
    %249 = vmatpush.bf16.msra.mxu0 %v169
    %250 = vmatpush.bf16.msra.mxu0 %v165
    %251 = vmatpush.bf16.msra.mxu0 %v161
    %252 = vmatpush.bf16.msra.mxu0 %v157
    %253 = vmatpush.bf16.msra.mxu0 %v153
    %254 = vmatmul.bf16.gmra.mxu0 %v205
    %v255 = vpop.f32.mrf.mxu0
    %v256 = vadd.f32 0.0, %v255
    %v257 = vpop.f32.mrf.mxu0
    %258 = vdwg.mxu0
    %259 = vmatpush.bf16.msra.mxu0 0
    %260 = vmatpush.bf16.msra.mxu0 %v218
    %261 = vmatpush.bf16.msra.mxu0 %v174
    %262 = vmatpush.bf16.msra.mxu0 %v170
    %263 = vmatpush.bf16.msra.mxu0 %v166
    %264 = vmatpush.bf16.msra.mxu0 %v162
    %265 = vmatpush.bf16.msra.mxu0 %v158
    %266 = vmatpush.bf16.msra.mxu0 %v154
    %267 = vmatmul.bf16.gmra.mxu0 %v205
    %v268 = vpop.f32.mrf.mxu0
    %v269 = vadd.f32 0.0, %v268
    %v270 = vpop.f32.mrf.mxu0
    %271 = vdwg.mxu0
    %vm272 = vcmask 1043456
    %v273 = vsel %vm272, %v230, 0.0
    %v274 = vrot.slane %v273, 4
    %v275 = vadd.f32 %v273, %v274
    %v276 = vrot.slane %v275, 2
    %v277 = vadd.f32 %v275, %v276
    %v278 = vrot.slane %v277, 1
    %v279 = vadd.f32 %v277, %v278
    %v280 = vsel %vm272, %v243, 0.0
    %v281 = vrot.slane %v280, 4
    %v282 = vadd.f32 %v280, %v281
    %v283 = vrot.slane %v282, 2
    %v284 = vadd.f32 %v282, %v283
    %v285 = vrot.slane %v284, 1
    %v286 = vadd.f32 %v284, %v285
    %v287 = vsel %vm272, %v256, 0.0
    %v288 = vrot.slane %v287, 4
    %v289 = vadd.f32 %v287, %v288
    %v290 = vrot.slane %v289, 2
    %v291 = vadd.f32 %v289, %v290
    %v292 = vrot.slane %v291, 1
    %v293 = vadd.f32 %v291, %v292
    %vm294 = vcmask 125952
    %v295 = vsel %vm294, %v269, 0.0
    %v296 = vrot.slane %v295, 4
    %v297 = vadd.f32 %v295, %v296
    %v298 = vrot.slane %v297, 2
    %v299 = vadd.f32 %v297, %v298
    %v300 = vrot.slane %v299, 1
    %v301 = vadd.f32 %v299, %v300
    %v302 = vrcp.pop 4.0
    %v303 = vmul.f32 4.0, %v302
    %v304 = vsub.f32 1.0, %v303
    %v305 = vmul.f32 %v302, %v304
    %v306 = vadd.f32 %v302, %v305
    %vm307 = vweird.f32 %v302
    %v308 = vsel %vm307, %v302, %v306
    %v309 = vmul.f32 %v279, %v308
    %v310 = vmul.f32 %v286, %v308
    %v311 = vmul.f32 %v293, %v308
    %v312 = vmul.f32 %v301, %v308
    %v313 = vsub.f32 %v230, %v309
    %v314 = vsub.f32 %v243, %v310
    %v315 = vsub.f32 %v256, %v311
    %v316 = vsub.f32 %v269, %v312
    %v317 = vmul.f32 %v313, %v313
    %v318 = vmul.f32 %v314, %v314
    %v319 = vmul.f32 %v315, %v315
    %v320 = vmul.f32 %v316, %v316
    %v321 = vsel %vm272, %v317, 0.0
    %v322 = vrot.slane %v321, 4
    %v323 = vadd.f32 %v321, %v322
    %v324 = vrot.slane %v323, 2
    %v325 = vadd.f32 %v323, %v324
    %v326 = vrot.slane %v325, 1
    %v327 = vadd.f32 %v325, %v326
    %v328 = vsel %vm272, %v318, 0.0
    %v329 = vrot.slane %v328, 4
    %v330 = vadd.f32 %v328, %v329
    %v331 = vrot.slane %v330, 2
    %v332 = vadd.f32 %v330, %v331
    %v333 = vrot.slane %v332, 1
    %v334 = vadd.f32 %v332, %v333
    %v335 = vsel %vm272, %v319, 0.0
    %v336 = vrot.slane %v335, 4
    %v337 = vadd.f32 %v335, %v336
    %v338 = vrot.slane %v337, 2
    %v339 = vadd.f32 %v337, %v338
    %v340 = vrot.slane %v339, 1
    %v341 = vadd.f32 %v339, %v340
    %v342 = vsel %vm294, %v320, 0.0
    %v343 = vrot.slane %v342, 4
    %v344 = vadd.f32 %v342, %v343
    %v345 = vrot.slane %v344, 2
    %v346 = vadd.f32 %v344, %v345
    %v347 = vrot.slane %v346, 1
    %v348 = vadd.f32 %v346, %v347
    %v349 = vmul.f32 %v327, %v308
    %v350 = vmul.f32 %v334, %v308
    %v351 = vmul.f32 %v341, %v308
    %v352 = vmul.f32 %v348, %v308
    %v353 = vld [vmem:[#allocation2] sm:$0xf]
    %v354 = vadd.f32 %v349, 1e-05
    %v355 = vadd.f32 %v350, 1e-05
    %v356 = vadd.f32 %v351, 1e-05
    %v357 = vadd.f32 %v352, 1e-05
    %v358 = vrsqrt.pop %v354
    %v359 = vmul.f32 %v358, %v354
    %v360 = vmul.f32 %v359, %v358
    %v361 = vmul.f32 0.5, %v360
    %v362 = vsub.f32 1.5, %v361
    %v363 = vmul.f32 %v358, %v362
    %vm364 = vweird.f32 %v354
    %vm365 = vweird.f32 %v358
    %vm366 = vmor %vm364, %vm365
    %v367 = vsel %vm366, %v358, %v363
    %v368 = vrsqrt.pop %v355
    %v369 = vmul.f32 %v368, %v355
    %v370 = vmul.f32 %v369, %v368
    %v371 = vmul.f32 0.5, %v370
    %v372 = vsub.f32 1.5, %v371
    %v373 = vmul.f32 %v368, %v372
    %vm374 = vweird.f32 %v355
    %vm375 = vweird.f32 %v368
    %vm376 = vmor %vm374, %vm375
    %v377 = vsel %vm376, %v368, %v373
    %v378 = vrsqrt.pop %v356
    %v379 = vmul.f32 %v378, %v356
    %v380 = vmul.f32 %v379, %v378
    %v381 = vmul.f32 0.5, %v380
    %v382 = vsub.f32 1.5, %v381
    %v383 = vmul.f32 %v378, %v382
    %vm384 = vweird.f32 %v356
    %vm385 = vweird.f32 %v378
    %vm386 = vmor %vm384, %vm385
    %v387 = vsel %vm386, %v378, %v383
    %v388 = vrsqrt.pop %v357
    %v389 = vmul.f32 %v388, %v357
    %v390 = vmul.f32 %v389, %v388
    %v391 = vmul.f32 0.5, %v390
    %v392 = vsub.f32 1.5, %v391
    %v393 = vmul.f32 %v388, %v392
    %vm394 = vweird.f32 %v357
    %vm395 = vweird.f32 %v388
    %vm396 = vmor %vm394, %vm395
    %v397 = vsel %vm396, %v388, %v393
    %v402 = vrot.slane %v377, 7
    %v403 = vrot.slane %v387, 6
    %v404 = vrot.slane %v397, 5
    %vm405 = vcmask 1040384
    %v406 = vsel %vm405, %v367, %v402
    %vm407 = vcmask 1042434
    %v408 = vsel %vm407, %v403, %v404
    %v409 = vsel %vm207, %v406, %v408
    %v411 = vmul.f32 %v353, %v409
    %v412 = vld [vmem:[#allocation4] sm:$0xf]
    %v414 = vperm.slane %v411, 0
    %v415 = vperm.slane %v411, 1
    %v416 = vperm.slane %v411, 2
    %v417 = vperm.slane %v411, 3
    %v422 = vmul.f32 %v309, %v414
    %v423 = vmul.f32 %v310, %v415
    %v424 = vmul.f32 %v311, %v416
    %v425 = vmul.f32 %v312, %v417
    %v430 = vrot.slane %v423, 7
    %v431 = vrot.slane %v424, 6
    %v432 = vrot.slane %v425, 5
    %v433 = vsel %vm405, %v422, %v430
    %v434 = vsel %vm407, %v431, %v432
    %v435 = vsel %vm207, %v433, %v434
    %v437 = vsub.f32 %v412, %v435
    %v438 = vmul.f32 %v230, %v414
    %v439 = vmul.f32 %v243, %v415
    %v440 = vmul.f32 %v256, %v416
    %v441 = vmul.f32 %v269, %v417
    %v443 = vperm.slane %v437, 0
    %v444 = vperm.slane %v437, 1
    %v445 = vperm.slane %v437, 2
    %v446 = vperm.slane %v437, 3
    %v451 = vadd.f32 %v438, %v443
    %v452 = vadd.f32 %v439, %v444
    %v453 = vadd.f32 %v440, %v445
    %v454 = vadd.f32 %v441, %v446
    %v455 = vmax.f32 %v451, 0.0
    %v456 = vmax.f32 %v452, 0.0
    %v457 = vmax.f32 %v453, 0.0
    %v458 = vmax.f32 %v454, 0.0
    %v463 = vrot.slane %v456, 4
    %v464 = vrot.slane %v458, 4
    %v465 = vsel %vm272, %v455, %v463
    %v466 = vsel %vm272, %v457, %v464
    %469 = vst [vmem:[%s4] sm:$0xff] %v465
    %vm470 = vcmask 130052
    %vm471 = vmor %vm470, %vm272
    %472 = vst.msk [vmem:[%s4 + $0x8] sm:$0xff] %vm471, %v466
    // Predicated region
    $region26: #{generator_forward.4} parent=1 // pred_check
      _
    $region27: #{generator_forward.4} parent=1 // pred_check_branch
      %474 = sbr.rel (0) target = $region29
    $region28: #{generator_forward.4} parent=1 // pred_region
      _
    $region29: #{generator_forward.4} parent=1 // pred_fallthru
      _
    // Predicated region
    $region30: #{generator_forward.4} parent=1 // pred_check
      _
    $region31: #{generator_forward.4} parent=1 // pred_check_branch
      %476 = sbr.rel (0) target = $region33
    $region32: #{generator_forward.4} parent=1 // pred_region
      _
    $region33: #{generator_forward.4} parent=1 // pred_fallthru
      _
    %477 = vsyncpa [#allocation3], 1
    %478 = vsyncpa [#allocation5], 1

// kernel: generator_forward.5
$region0: #{generator_forward.5}
  #allocation0 [shape = 'u32[]', space=smem, size = 0x4, offset = 0x4, fixed_abs, tag = 'smem constant byte address 0x4 - core index']
  #allocation1 [shape = 'u32[72,128]{1,0:T(1,128)}', space=vmem, size = 0x9000, scoped, tag = 'internal scratch']
  %s0 = inlined_call_operand.vmem [shape: bf16[8,400], index: 0, kind: input, shape index: {}]
  %s1 = inlined_call_operand.vmem [shape: bf16[400,324], index: 1, kind: input, shape index: {}]
  %s2 = inlined_call_operand.vmem [shape: f32[8,1], index: 2, kind: input, shape index: {}]
  %s3 = inlined_call_operand.vmem [shape: f32[8,1], index: 3, kind: input, shape index: {}]
  %s4 = inlined_call_operand.vmem [shape: f32[8,324], index: 4, kind: output, shape index: {}]
  %s5 = sld [smem:[#allocation0]]
  $region26: #{generator_forward.5} parent=0
    _
  %s7 = ssub.s32 1, %s5
  %s8 = scalar_select 0, %s7, %s5
  // Predicated region
  $region2: #{generator_forward.5} parent=0 // pred_check
    _
  $region3: #{generator_forward.5} parent=0 // pred_check_branch
    %10 = sbr.rel (0) target = $region5
  $region4: #{generator_forward.5} parent=0 // pred_region
    _
  $region5: #{generator_forward.5} parent=0 // pred_fallthru
    _
  // Predicated region
  $region6: #{generator_forward.5} parent=0 // pred_check
    _
  $region7: #{generator_forward.5} parent=0 // pred_check_branch
    %12 = sbr.rel (0) target = $region9
  $region8: #{generator_forward.5} parent=0 // pred_region
    _
  $region9: #{generator_forward.5} parent=0 // pred_fallthru
    _
  // Predicated region
  $region10: #{generator_forward.5} parent=0 // pred_check
    _
  $region11: #{generator_forward.5} parent=0 // pred_check_branch
    %14 = sbr.rel (0) target = $region13
  $region12: #{generator_forward.5} parent=0 // pred_region
    _
  $region13: #{generator_forward.5} parent=0 // pred_fallthru
    _
  // Predicated region
  $region14: #{generator_forward.5} parent=0 // pred_check
    _
  $region15: #{generator_forward.5} parent=0 // pred_check_branch
    %16 = sbr.rel (0) target = $region17
  $region16: #{generator_forward.5} parent=0 // pred_region
    _
  $region17: #{generator_forward.5} parent=0 // pred_fallthru
    _
  %v18 = vld [vmem:[%s0] sm:$0xff]
  %v19 = vld [vmem:[%s0 + $0x8] sm:$0xff]
  %v20 = vld [vmem:[%s1] sm:$0xff]
  %v21 = vld [vmem:[%s1 + $0x8] sm:$0xf]
  %v22 = vld [vmem:[%s1 + $0xc] sm:$0xff]
  %v23 = vld [vmem:[%s1 + $0x14] sm:$0xf]
  %v24 = vld [vmem:[%s1 + $0x18] sm:$0xff]
  %v25 = vld [vmem:[%s1 + $0x20] sm:$0xf]
  %v26 = vld [vmem:[%s1 + $0x24] sm:$0xff]
  %v27 = vld [vmem:[%s1 + $0x2c] sm:$0xf]
  %v28 = vld [vmem:[%s1 + $0x30] sm:$0xff]
  %v29 = vld [vmem:[%s1 + $0x38] sm:$0xf]
  %v30 = vld [vmem:[%s1 + $0x3c] sm:$0xff]
  %v31 = vld [vmem:[%s1 + $0x44] sm:$0xf]
  %v32 = vld [vmem:[%s1 + $0x48] sm:$0xff]
  %v33 = vld [vmem:[%s1 + $0x50] sm:$0xf]
  %v34 = vld [vmem:[%s1 + $0x54] sm:$0xff]
  %v35 = vld [vmem:[%s1 + $0x5c] sm:$0xf]
  %v36 = vld [vmem:[%s1 + $0x60] sm:$0xff]
  %v37 = vld [vmem:[%s1 + $0x68] sm:$0xf]
  %v38 = vld [vmem:[%s1 + $0x6c] sm:$0xff]
  %v39 = vld [vmem:[%s1 + $0x74] sm:$0xf]
  %v40 = vld [vmem:[%s1 + $0x78] sm:$0xff]
  %v41 = vld [vmem:[%s1 + $0x80] sm:$0xf]
  %v42 = vld [vmem:[%s1 + $0x84] sm:$0xff]
  %v43 = vld [vmem:[%s1 + $0x8c] sm:$0xf]
  %v44 = vld [vmem:[%s1 + $0x90] sm:$0xff]
  %v45 = vld [vmem:[%s1 + $0x98] sm:$0xf]
  %v46 = vld [vmem:[%s1 + $0x9c] sm:$0xff]
  %v47 = vld [vmem:[%s1 + $0xa4] sm:$0xf]
  %v48 = vld [vmem:[%s1 + $0xa8] sm:$0xff]
  %v49 = vld [vmem:[%s1 + $0xb0] sm:$0xf]
  %v50 = vld [vmem:[%s1 + $0xb4] sm:$0xff]
  %v51 = vld [vmem:[%s1 + $0xbc] sm:$0xf]
  %v52 = vld [vmem:[%s1 + $0xc0] sm:$0xff]
  %v53 = vld [vmem:[%s1 + $0xc8] sm:$0xf]
  %v54 = vld [vmem:[%s1 + $0xcc] sm:$0xff]
  %v55 = vld [vmem:[%s1 + $0xd4] sm:$0xf]
  %v56 = vld [vmem:[%s1 + $0xd8] sm:$0xff]
  %v57 = vld [vmem:[%s1 + $0xe0] sm:$0xf]
  %v58 = vld [vmem:[%s1 + $0xe4] sm:$0xff]
  %v59 = vld [vmem:[%s1 + $0xec] sm:$0xf]
  %v60 = vld [vmem:[%s1 + $0xf0] sm:$0xff]
  %v61 = vld [vmem:[%s1 + $0xf8] sm:$0xf]
  %v62 = vld [vmem:[%s1 + $0xfc] sm:$0xff]
  %v63 = vld [vmem:[%s1 + $0x104] sm:$0xf]
  %v64 = vld [vmem:[%s1 + $0x108] sm:$0xff]
  %v65 = vld [vmem:[%s1 + $0x110] sm:$0xf]
  %v66 = vld [vmem:[%s1 + $0x114] sm:$0xff]
  %v67 = vld [vmem:[%s1 + $0x11c] sm:$0xf]
  %v68 = vld [vmem:[%s1 + $0x120] sm:$0xff]
  %v69 = vld [vmem:[%s1 + $0x128] sm:$0xf]
  %v70 = vld [vmem:[%s1 + $0x12c] sm:$0xff]
  %v71 = vld [vmem:[%s1 + $0x134] sm:$0xf]
  %v72 = vld [vmem:[%s1 + $0x138] sm:$0xff]
  %v73 = vld [vmem:[%s1 + $0x140] sm:$0xf]
  %v74 = vld [vmem:[%s1 + $0x144] sm:$0xff]
  %v75 = vld [vmem:[%s1 + $0x14c] sm:$0xf]
  %v76 = vld [vmem:[%s1 + $0x150] sm:$0xff]
  %v77 = vld [vmem:[%s1 + $0x158] sm:$0xf]
  %v78 = vld [vmem:[%s1 + $0x15c] sm:$0xff]
  %v79 = vld [vmem:[%s1 + $0x164] sm:$0xf]
  %v80 = vld [vmem:[%s1 + $0x168] sm:$0xff]
  %v81 = vld [vmem:[%s1 + $0x170] sm:$0xf]
  %v82 = vld [vmem:[%s1 + $0x174] sm:$0xff]
  %v83 = vld [vmem:[%s1 + $0x17c] sm:$0xf]
  %v84 = vld [vmem:[%s1 + $0x180] sm:$0xff]
  %v85 = vld [vmem:[%s1 + $0x188] sm:$0xf]
  %v86 = vld [vmem:[%s1 + $0x18c] sm:$0xff]
  %v87 = vld [vmem:[%s1 + $0x194] sm:$0xf]
  %v88 = vld [vmem:[%s1 + $0x198] sm:$0xff]
  %v89 = vld [vmem:[%s1 + $0x1a0] sm:$0xf]
  %v90 = vld [vmem:[%s1 + $0x1a4] sm:$0xff]
  %v91 = vld [vmem:[%s1 + $0x1ac] sm:$0xf]
  %v92 = vld [vmem:[%s1 + $0x1b0] sm:$0xff]
  %v93 = vld [vmem:[%s1 + $0x1b8] sm:$0xf]
  %v94 = vld [vmem:[%s1 + $0x1bc] sm:$0xff]
  %v95 = vld [vmem:[%s1 + $0x1c4] sm:$0xf]
  %v96 = vld [vmem:[%s1 + $0x1c8] sm:$0xff]
  %v97 = vld [vmem:[%s1 + $0x1d0] sm:$0xf]
  %v98 = vld [vmem:[%s1 + $0x1d4] sm:$0xff]
  %v99 = vld [vmem:[%s1 + $0x1dc] sm:$0xf]
  %v100 = vld [vmem:[%s1 + $0x1e0] sm:$0xff]
  %v101 = vld [vmem:[%s1 + $0x1e8] sm:$0xf]
  %v102 = vld [vmem:[%s1 + $0x1ec] sm:$0xff]
  %v103 = vld [vmem:[%s1 + $0x1f4] sm:$0xf]
  %v104 = vld [vmem:[%s1 + $0x1f8] sm:$0xff]
  %v105 = vld [vmem:[%s1 + $0x200] sm:$0xf]
  %v106 = vld [vmem:[%s1 + $0x204] sm:$0xff]
  %v107 = vld [vmem:[%s1 + $0x20c] sm:$0xf]
  %v108 = vld [vmem:[%s1 + $0x210] sm:$0xff]
  %v109 = vld [vmem:[%s1 + $0x218] sm:$0xf]
  %v110 = vld [vmem:[%s1 + $0x21c] sm:$0xff]
  %v111 = vld [vmem:[%s1 + $0x224] sm:$0xf]
  %v112 = vld [vmem:[%s1 + $0x228] sm:$0xff]
  %v113 = vld [vmem:[%s1 + $0x230] sm:$0xf]
  %v114 = vld [vmem:[%s1 + $0x234] sm:$0xff]
  %v115 = vld [vmem:[%s1 + $0x23c] sm:$0xf]
  %v116 = vld [vmem:[%s1 + $0x240] sm:$0xff]
  %v117 = vld [vmem:[%s1 + $0x248] sm:$0xf]
  %v118 = vld [vmem:[%s1 + $0x24c] sm:$0xff]
  %v119 = vld [vmem:[%s1 + $0x254] sm:$0xf]
  %v122 = vunpack.c.l.b16 %v18
  %v123 = vunpack.c.h.b16 %v18
  %v124 = vunpack.c.l.b16 %v19
  %v125 = vunpack.c.h.b16 %v19
  %v126 = vpack.c.b16 %v122, %v122
  %v127 = vpack.c.b16 %v123, %v123
  %v128 = vpack.c.b16 %v124, %v124
  %v129 = vpack.c.b16 %v125, %v125
  %v233 = vunpack.c.l.b16 %v20
  %v234 = vunpack.c.h.b16 %v20
  %v235 = vunpack.c.l.b16 %v21
  %v236 = vunpack.c.l.b16 %v22
  %v237 = vunpack.c.h.b16 %v22
  %v238 = vunpack.c.l.b16 %v23
  %v239 = vunpack.c.l.b16 %v24
  %v240 = vunpack.c.h.b16 %v24
  %v241 = vunpack.c.l.b16 %v25
  %v242 = vunpack.c.l.b16 %v26
  %v243 = vunpack.c.h.b16 %v26
  %v244 = vunpack.c.l.b16 %v27
  %v245 = vunpack.c.l.b16 %v28
  %v246 = vunpack.c.h.b16 %v28
  %v247 = vunpack.c.l.b16 %v29
  %v248 = vunpack.c.l.b16 %v30
  %v249 = vunpack.c.h.b16 %v30
  %v250 = vunpack.c.l.b16 %v31
  %v251 = vunpack.c.l.b16 %v32
  %v252 = vunpack.c.h.b16 %v32
  %v253 = vunpack.c.l.b16 %v33
  %v254 = vunpack.c.l.b16 %v34
  %v255 = vunpack.c.h.b16 %v34
  %v256 = vunpack.c.l.b16 %v35
  %v257 = vunpack.c.l.b16 %v36
  %v258 = vunpack.c.h.b16 %v36
  %v259 = vunpack.c.l.b16 %v37
  %v260 = vunpack.c.l.b16 %v38
  %v261 = vunpack.c.h.b16 %v38
  %v262 = vunpack.c.l.b16 %v39
  %v263 = vunpack.c.l.b16 %v40
  %v264 = vunpack.c.h.b16 %v40
  %v265 = vunpack.c.l.b16 %v41
  %v266 = vunpack.c.l.b16 %v42
  %v267 = vunpack.c.h.b16 %v42
  %v268 = vunpack.c.l.b16 %v43
  %v269 = vunpack.c.l.b16 %v44
  %v270 = vunpack.c.h.b16 %v44
  %v271 = vunpack.c.l.b16 %v45
  %v272 = vunpack.c.l.b16 %v46
  %v273 = vunpack.c.h.b16 %v46
  %v274 = vunpack.c.l.b16 %v47
  %v275 = vunpack.c.l.b16 %v48
  %v276 = vunpack.c.h.b16 %v48
  %v277 = vunpack.c.l.b16 %v49
  %v278 = vunpack.c.l.b16 %v50
  %v279 = vunpack.c.h.b16 %v50
  %v280 = vunpack.c.l.b16 %v51
  %v281 = vunpack.c.l.b16 %v52
  %v282 = vunpack.c.h.b16 %v52
  %v283 = vunpack.c.l.b16 %v53
  %v284 = vunpack.c.l.b16 %v54
  %v285 = vunpack.c.h.b16 %v54
  %v286 = vunpack.c.l.b16 %v55
  %v287 = vunpack.c.l.b16 %v56
  %v288 = vunpack.c.h.b16 %v56
  %v289 = vunpack.c.l.b16 %v57
  %v290 = vunpack.c.l.b16 %v58
  %v291 = vunpack.c.h.b16 %v58
  %v292 = vunpack.c.l.b16 %v59
  %v293 = vunpack.c.l.b16 %v60
  %v294 = vunpack.c.h.b16 %v60
  %v295 = vunpack.c.l.b16 %v61
  %v296 = vunpack.c.l.b16 %v62
  %v297 = vunpack.c.h.b16 %v62
  %v298 = vunpack.c.l.b16 %v63
  %v299 = vunpack.c.l.b16 %v64
  %v300 = vunpack.c.h.b16 %v64
  %v301 = vunpack.c.l.b16 %v65
  %v302 = vunpack.c.l.b16 %v66
  %v303 = vunpack.c.h.b16 %v66
  %v304 = vunpack.c.l.b16 %v67
  %v305 = vunpack.c.l.b16 %v68
  %v306 = vunpack.c.h.b16 %v68
  %v307 = vunpack.c.l.b16 %v69
  %v308 = vunpack.c.l.b16 %v70
  %v309 = vunpack.c.h.b16 %v70
  %v310 = vunpack.c.l.b16 %v71
  %v311 = vunpack.c.l.b16 %v72
  %v312 = vunpack.c.h.b16 %v72
  %v313 = vunpack.c.l.b16 %v73
  %v314 = vunpack.c.l.b16 %v74
  %v315 = vunpack.c.h.b16 %v74
  %v316 = vunpack.c.l.b16 %v75
  %v317 = vunpack.c.l.b16 %v76
  %v318 = vunpack.c.h.b16 %v76
  %v319 = vunpack.c.l.b16 %v77
  %v320 = vunpack.c.l.b16 %v78
  %v321 = vunpack.c.h.b16 %v78
  %v322 = vunpack.c.l.b16 %v79
  %v323 = vunpack.c.l.b16 %v80
  %v324 = vunpack.c.h.b16 %v80
  %v325 = vunpack.c.l.b16 %v81
  %v326 = vunpack.c.l.b16 %v82
  %v327 = vunpack.c.h.b16 %v82
  %v328 = vunpack.c.l.b16 %v83
  %v329 = vunpack.c.l.b16 %v84
  %v330 = vunpack.c.h.b16 %v84
  %v331 = vunpack.c.l.b16 %v85
  %v332 = vunpack.c.l.b16 %v86
  %v333 = vunpack.c.h.b16 %v86
  %v334 = vunpack.c.l.b16 %v87
  %v335 = vunpack.c.l.b16 %v88
  %v336 = vunpack.c.h.b16 %v88
  %v337 = vunpack.c.l.b16 %v89
  %v338 = vunpack.c.l.b16 %v90
  %v339 = vunpack.c.h.b16 %v90
  %v340 = vunpack.c.l.b16 %v91
  %v341 = vunpack.c.l.b16 %v92
  %v342 = vunpack.c.h.b16 %v92
  %v343 = vunpack.c.l.b16 %v93
  %v344 = vunpack.c.l.b16 %v94
  %v345 = vunpack.c.h.b16 %v94
  %v346 = vunpack.c.l.b16 %v95
  %v347 = vunpack.c.l.b16 %v96
  %v348 = vunpack.c.h.b16 %v96
  %v349 = vunpack.c.l.b16 %v97
  %v350 = vunpack.c.l.b16 %v98
  %v351 = vunpack.c.h.b16 %v98
  %v352 = vunpack.c.l.b16 %v99
  %v353 = vunpack.c.l.b16 %v100
  %v354 = vunpack.c.h.b16 %v100
  %v355 = vunpack.c.l.b16 %v101
  %v356 = vunpack.c.l.b16 %v102
  %v357 = vunpack.c.h.b16 %v102
  %v358 = vunpack.c.l.b16 %v103
  %v359 = vunpack.c.l.b16 %v104
  %v360 = vunpack.c.h.b16 %v104
  %v361 = vunpack.c.l.b16 %v105
  %v362 = vunpack.c.l.b16 %v106
  %v363 = vunpack.c.h.b16 %v106
  %v364 = vunpack.c.l.b16 %v107
  %v365 = vunpack.c.l.b16 %v108
  %v366 = vunpack.c.h.b16 %v108
  %v367 = vunpack.c.l.b16 %v109
  %v368 = vunpack.c.l.b16 %v110
  %v369 = vunpack.c.h.b16 %v110
  %v370 = vunpack.c.l.b16 %v111
  %v371 = vunpack.c.l.b16 %v112
  %v372 = vunpack.c.h.b16 %v112
  %v373 = vunpack.c.l.b16 %v113
  %v374 = vunpack.c.l.b16 %v114
  %v375 = vunpack.c.h.b16 %v114
  %v376 = vunpack.c.l.b16 %v115
  %v377 = vunpack.c.l.b16 %v116
  %v378 = vunpack.c.h.b16 %v116
  %v379 = vunpack.c.l.b16 %v117
  %v380 = vunpack.c.l.b16 %v118
  %v381 = vunpack.c.h.b16 %v118
  %v382 = vunpack.c.l.b16 %v119
  %v383 = vpack.c.b16 %v236, %v233
  %v384 = vpack.c.b16 %v237, %v234
  %v385 = vpack.c.b16 %v238, %v235
  %v386 = vpack.c.b16 %v242, %v239
  %v387 = vpack.c.b16 %v243, %v240
  %v388 = vpack.c.b16 %v244, %v241
  %v389 = vpack.c.b16 %v248, %v245
  %v390 = vpack.c.b16 %v249, %v246
  %v391 = vpack.c.b16 %v250, %v247
  %v392 = vpack.c.b16 %v254, %v251
  %v393 = vpack.c.b16 %v255, %v252
  %v394 = vpack.c.b16 %v256, %v253
  %v395 = vpack.c.b16 %v260, %v257
  %v396 = vpack.c.b16 %v261, %v258
  %v397 = vpack.c.b16 %v262, %v259
  %v398 = vpack.c.b16 %v266, %v263
  %v399 = vpack.c.b16 %v267, %v264
  %v400 = vpack.c.b16 %v268, %v265
  %v401 = vpack.c.b16 %v272, %v269
  %v402 = vpack.c.b16 %v273, %v270
  %v403 = vpack.c.b16 %v274, %v271
  %v404 = vpack.c.b16 %v278, %v275
  %v405 = vpack.c.b16 %v279, %v276
  %v406 = vpack.c.b16 %v280, %v277
  %v407 = vpack.c.b16 %v284, %v281
  %v408 = vpack.c.b16 %v285, %v282
  %v409 = vpack.c.b16 %v286, %v283
  %v410 = vpack.c.b16 %v290, %v287
  %v411 = vpack.c.b16 %v291, %v288
  %v412 = vpack.c.b16 %v292, %v289
  %v413 = vpack.c.b16 %v296, %v293
  %v414 = vpack.c.b16 %v297, %v294
  %v415 = vpack.c.b16 %v298, %v295
  %v416 = vpack.c.b16 %v302, %v299
  %v417 = vpack.c.b16 %v303, %v300
  %v418 = vpack.c.b16 %v304, %v301
  %v419 = vpack.c.b16 %v308, %v305
  %v420 = vpack.c.b16 %v309, %v306
  %v421 = vpack.c.b16 %v310, %v307
  %v422 = vpack.c.b16 %v314, %v311
  %v423 = vpack.c.b16 %v315, %v312
  %v424 = vpack.c.b16 %v316, %v313
  %v425 = vpack.c.b16 %v320, %v317
  %v426 = vpack.c.b16 %v321, %v318
  %v427 = vpack.c.b16 %v322, %v319
  %v428 = vpack.c.b16 %v326, %v323
  %v429 = vpack.c.b16 %v327, %v324
  %v430 = vpack.c.b16 %v328, %v325
  %v431 = vpack.c.b16 %v332, %v329
  %v432 = vpack.c.b16 %v333, %v330
  %v433 = vpack.c.b16 %v334, %v331
  %v434 = vpack.c.b16 %v338, %v335
  %v435 = vpack.c.b16 %v339, %v336
  %v436 = vpack.c.b16 %v340, %v337
  %v437 = vpack.c.b16 %v344, %v341
  %v438 = vpack.c.b16 %v345, %v342
  %v439 = vpack.c.b16 %v346, %v343
  %v440 = vpack.c.b16 %v350, %v347
  %v441 = vpack.c.b16 %v351, %v348
  %v442 = vpack.c.b16 %v352, %v349
  %v443 = vpack.c.b16 %v356, %v353
  %v444 = vpack.c.b16 %v357, %v354
  %v445 = vpack.c.b16 %v358, %v355
  %v446 = vpack.c.b16 %v362, %v359
  %v447 = vpack.c.b16 %v363, %v360
  %v448 = vpack.c.b16 %v364, %v361
  %v449 = vpack.c.b16 %v368, %v365
  %v450 = vpack.c.b16 %v369, %v366
  %v451 = vpack.c.b16 %v370, %v367
  %v452 = vpack.c.b16 %v374, %v371
  %v453 = vpack.c.b16 %v375, %v372
  %v454 = vpack.c.b16 %v376, %v373
  %v455 = vpack.c.b16 %v380, %v377
  %v456 = vpack.c.b16 %v381, %v378
  %v457 = vpack.c.b16 %v382, %v379
  %vm533 = vcmask 130048
  %v535 = vsel %vm533, %v129, 0
  %537 = vmatpush.bf16.msra.mxu0 %v404
  %538 = vmatpush.bf16.msra.mxu0 %v401
  %539 = vmatpush.bf16.msra.mxu0 %v398
  %540 = vmatpush.bf16.msra.mxu0 %v395
  %541 = vmatpush.bf16.msra.mxu0 %v392
  %542 = vmatpush.bf16.msra.mxu0 %v389
  %543 = vmatpush.bf16.msra.mxu0 %v386
  %544 = vmatpush.bf16.msra.mxu0 %v383
  %545 = vmatmul.bf16.gmra.mxu0 %v126
  %v546 = vpop.f32.mrf.mxu0
  %v547 = vadd.f32 0.0, %v546
  %v548 = vpop.f32.mrf.mxu0
  %549 = vdwg.mxu0
  %550 = vmatpush.bf16.msra.mxu0 %v428
  %551 = vmatpush.bf16.msra.mxu0 %v425
  %552 = vmatpush.bf16.msra.mxu0 %v422
  %553 = vmatpush.bf16.msra.mxu0 %v419
  %554 = vmatpush.bf16.msra.mxu0 %v416
  %555 = vmatpush.bf16.msra.mxu0 %v413
  %556 = vmatpush.bf16.msra.mxu0 %v410
  %557 = vmatpush.bf16.msra.mxu0 %v407
  %558 = vmatmul.bf16.gmra.mxu0 %v127
  %v559 = vpop.f32.mrf.mxu0
  %v560 = vadd.f32 %v547, %v559
  %v561 = vpop.f32.mrf.mxu0
  %562 = vdwg.mxu0
  %563 = vmatpush.bf16.msra.mxu0 %v452
  %564 = vmatpush.bf16.msra.mxu0 %v449
  %565 = vmatpush.bf16.msra.mxu0 %v446
  %566 = vmatpush.bf16.msra.mxu0 %v443
  %567 = vmatpush.bf16.msra.mxu0 %v440
  %568 = vmatpush.bf16.msra.mxu0 %v437
  %569 = vmatpush.bf16.msra.mxu0 %v434
  %570 = vmatpush.bf16.msra.mxu0 %v431
  %571 = vmatmul.bf16.gmra.mxu0 %v128
  %v572 = vpop.f32.mrf.mxu0
  %v573 = vadd.f32 %v560, %v572
  %v574 = vpop.f32.mrf.mxu0
  %575 = vdwg.mxu0
  %576 = vmatpush.bf16.msra.mxu0 0
  %577 = vmatpush.bf16.msra.mxu0 0
  %578 = vmatpush.bf16.msra.mxu0 0
  %579 = vmatpush.bf16.msra.mxu0 0
  %580 = vmatpush.bf16.msra.mxu0 0
  %581 = vmatpush.bf16.msra.mxu0 0
  %582 = vmatpush.bf16.msra.mxu0 0
  %583 = vmatpush.bf16.msra.mxu0 %v455
  %584 = vmatmul.bf16.gmra.mxu0 %v535
  %v585 = vpop.f32.mrf.mxu0
  %v586 = vadd.f32 %v573, %v585
  %v587 = vpop.f32.mrf.mxu0
  %588 = vdwg.mxu0
  %589 = vmatpush.bf16.msra.mxu0 %v405
  %590 = vmatpush.bf16.msra.mxu0 %v402
  %591 = vmatpush.bf16.msra.mxu0 %v399
  %592 = vmatpush.bf16.msra.mxu0 %v396
  %593 = vmatpush.bf16.msra.mxu0 %v393
  %594 = vmatpush.bf16.msra.mxu0 %v390
  %595 = vmatpush.bf16.msra.mxu0 %v387
  %596 = vmatpush.bf16.msra.mxu0 %v384
  %597 = vmatmul.bf16.gmra.mxu0 %v126
  %v598 = vpop.f32.mrf.mxu0
  %v599 = vadd.f32 0.0, %v598
  %v600 = vpop.f32.mrf.mxu0
  %601 = vdwg.mxu0
  %602 = vmatpush.bf16.msra.mxu0 %v429
  %603 = vmatpush.bf16.msra.mxu0 %v426
  %604 = vmatpush.bf16.msra.mxu0 %v423
  %605 = vmatpush.bf16.msra.mxu0 %v420
  %606 = vmatpush.bf16.msra.mxu0 %v417
  %607 = vmatpush.bf16.msra.mxu0 %v414
  %608 = vmatpush.bf16.msra.mxu0 %v411
  %609 = vmatpush.bf16.msra.mxu0 %v408
  %610 = vmatmul.bf16.gmra.mxu0 %v127
  %v611 = vpop.f32.mrf.mxu0
  %v612 = vadd.f32 %v599, %v611
  %v613 = vpop.f32.mrf.mxu0
  %614 = vdwg.mxu0
  %615 = vmatpush.bf16.msra.mxu0 %v453
  %616 = vmatpush.bf16.msra.mxu0 %v450
  %617 = vmatpush.bf16.msra.mxu0 %v447
  %618 = vmatpush.bf16.msra.mxu0 %v444
  %619 = vmatpush.bf16.msra.mxu0 %v441
  %620 = vmatpush.bf16.msra.mxu0 %v438
  %621 = vmatpush.bf16.msra.mxu0 %v435
  %622 = vmatpush.bf16.msra.mxu0 %v432
  %623 = vmatmul.bf16.gmra.mxu0 %v128
  %v624 = vpop.f32.mrf.mxu0
  %v625 = vadd.f32 %v612, %v624
  %v626 = vpop.f32.mrf.mxu0
  %627 = vdwg.mxu0
  %628 = vmatpush.bf16.msra.mxu0 0
  %629 = vmatpush.bf16.msra.mxu0 0
  %630 = vmatpush.bf16.msra.mxu0 0
  %631 = vmatpush.bf16.msra.mxu0 0
  %632 = vmatpush.bf16.msra.mxu0 0
  %633 = vmatpush.bf16.msra.mxu0 0
  %634 = vmatpush.bf16.msra.mxu0 0
  %635 = vmatpush.bf16.msra.mxu0 %v456
  %636 = vmatmul.bf16.gmra.mxu0 %v535
  %v637 = vpop.f32.mrf.mxu0
  %v638 = vadd.f32 %v625, %v637
  %v639 = vpop.f32.mrf.mxu0
  %640 = vdwg.mxu0
  %641 = vmatpush.bf16.msra.mxu0 %v406
  %642 = vmatpush.bf16.msra.mxu0 %v403
  %643 = vmatpush.bf16.msra.mxu0 %v400
  %644 = vmatpush.bf16.msra.mxu0 %v397
  %645 = vmatpush.bf16.msra.mxu0 %v394
  %646 = vmatpush.bf16.msra.mxu0 %v391
  %647 = vmatpush.bf16.msra.mxu0 %v388
  %648 = vmatpush.bf16.msra.mxu0 %v385
  %649 = vmatmul.bf16.gmra.mxu0 %v126
  %v650 = vpop.f32.mrf.mxu0
  %v651 = vadd.f32 0.0, %v650
  %v652 = vpop.f32.mrf.mxu0
  %653 = vdwg.mxu0
  %654 = vmatpush.bf16.msra.mxu0 %v430
  %655 = vmatpush.bf16.msra.mxu0 %v427
  %656 = vmatpush.bf16.msra.mxu0 %v424
  %657 = vmatpush.bf16.msra.mxu0 %v421
  %658 = vmatpush.bf16.msra.mxu0 %v418
  %659 = vmatpush.bf16.msra.mxu0 %v415
  %660 = vmatpush.bf16.msra.mxu0 %v412
  %661 = vmatpush.bf16.msra.mxu0 %v409
  %662 = vmatmul.bf16.gmra.mxu0 %v127
  %v663 = vpop.f32.mrf.mxu0
  %v664 = vadd.f32 %v651, %v663
  %v665 = vpop.f32.mrf.mxu0
  %666 = vdwg.mxu0
  %667 = vmatpush.bf16.msra.mxu0 %v454
  %668 = vmatpush.bf16.msra.mxu0 %v451
  %669 = vmatpush.bf16.msra.mxu0 %v448
  %670 = vmatpush.bf16.msra.mxu0 %v445
  %671 = vmatpush.bf16.msra.mxu0 %v442
  %672 = vmatpush.bf16.msra.mxu0 %v439
  %673 = vmatpush.bf16.msra.mxu0 %v436
  %674 = vmatpush.bf16.msra.mxu0 %v433
  %675 = vmatmul.bf16.gmra.mxu0 %v128
  %v676 = vpop.f32.mrf.mxu0
  %v677 = vadd.f32 %v664, %v676
  %v678 = vpop.f32.mrf.mxu0
  %679 = vdwg.mxu0
  %680 = vmatpush.bf16.msra.mxu0 0
  %681 = vmatpush.bf16.msra.mxu0 0
  %682 = vmatpush.bf16.msra.mxu0 0
  %683 = vmatpush.bf16.msra.mxu0 0
  %684 = vmatpush.bf16.msra.mxu0 0
  %685 = vmatpush.bf16.msra.mxu0 0
  %686 = vmatpush.bf16.msra.mxu0 0
  %687 = vmatpush.bf16.msra.mxu0 %v457
  %688 = vmatmul.bf16.gmra.mxu0 %v535
  %v689 = vpop.f32.mrf.mxu0
  %v690 = vadd.f32 %v677, %v689
  %v691 = vpop.f32.mrf.mxu0
  %692 = vdwg.mxu0
  %v693 = vadd.f32 %v586, %v638
  %vm694 = vcmask 556032
  %v695 = vsel %vm694, %v690, 0.0
  %v696 = vadd.f32 %v693, %v695
  %697 = vadd.xlane.f32.xlu0 %v696
  %v698 = vpop.xlane.xlu0 %697
  %v699 = vrcp.pop 324.0
  %v700 = vmul.f32 324.0, %v699
  %v701 = vsub.f32 1.0, %v700
  %v702 = vmul.f32 %v699, %v701
  %v703 = vadd.f32 %v699, %v702
  %vm704 = vweird.f32 %v699
  %v705 = vsel %vm704, %v699, %v703
  %v706 = vmul.f32 %v698, %v705
  %v707 = vsub.f32 %v586, %v706
  %v708 = vsub.f32 %v638, %v706
  %v709 = vsub.f32 %v690, %v706
  %v710 = vmul.f32 %v707, %v707
  %v711 = vmul.f32 %v708, %v708
  %v712 = vmul.f32 %v709, %v709
  %v713 = vadd.f32 %v710, %v711
  %v714 = vsel %vm694, %v712, 0.0
  %v715 = vadd.f32 %v713, %v714
  %716 = vadd.xlane.f32.xlu0 %v715
  %v717 = vpop.xlane.xlu0 %716
  %v718 = vmul.f32 %v717, %v705
  %v719 = vld [vmem:[%s2] sm:$0xff]
  %v720 = vadd.f32 %v718, 1e-05
  %v721 = vrsqrt.pop %v720
  %v722 = vmul.f32 %v721, %v720
  %v723 = vmul.f32 %v722, %v721
  %v724 = vmul.f32 0.5, %v723
  %v725 = vsub.f32 1.5, %v724
  %v726 = vmul.f32 %v721, %v725
  %vm727 = vweird.f32 %v720
  %vm728 = vweird.f32 %v721
  %vm729 = vmor %vm727, %vm728
  %v730 = vsel %vm729, %v721, %v726
  %v731 = vmul.f32 %v719, %v730
  %v732 = vld [vmem:[%s3] sm:$0xff]
  %v733 = vmul.f32 %v706, %v731
  %v734 = vsub.f32 %v732, %v733
  %736 = vset.pattern.permute.xlu0 0
  %737 = vperm.xlu0 %736, %v731
  %v738 = vpop.permute.xlu0 %737
  %v740 = vmul.f32 %v586, %v738
  %v741 = vmul.f32 %v638, %v738
  %v742 = vmul.f32 %v690, %v738
  %744 = vset.pattern.permute.xlu0 0
  %745 = vperm.xlu0 %744, %v734
  %v746 = vpop.permute.xlu0 %745
  %v748 = vadd.f32 %v740, %v746
  %v749 = vadd.f32 %v741, %v746
  %v750 = vadd.f32 %v742, %v746
  %v751 = vmax.f32 %v748, 0.0
  %v752 = vmax.f32 %v749, 0.0
  %v753 = vmax.f32 %v750, 0.0
  %754 = vst [vmem:[%s4] sm:$0xff] %v751
  %755 = vst [vmem:[%s4 + $0x8] sm:$0xff] %v752
  %756 = vst.msk [vmem:[%s4 + $0x10] sm:$0xff] %vm694, %v753
  // Predicated region
  $region18: #{generator_forward.5} parent=0 // pred_check
    _
  $region19: #{generator_forward.5} parent=0 // pred_check_branch
    %758 = sbr.rel (0) target = $region21
  $region20: #{generator_forward.5} parent=0 // pred_region
    _
  $region21: #{generator_forward.5} parent=0 // pred_fallthru
    _
  // Predicated region
  $region22: #{generator_forward.5} parent=0 // pred_check
    _
  $region23: #{generator_forward.5} parent=0 // pred_check_branch
    %760 = sbr.rel (0) target = $region25
  $region24: #{generator_forward.5} parent=0 // pred_region
    _
  $region25: #{generator_forward.5} parent=0 // pred_fallthru
    _

// kernel: generator_forward.6
$region0: #{generator_forward.6}
  #allocation0 [shape = 'u32[]', space=smem, size = 0x4, offset = 0x4, fixed_abs, tag = 'smem constant byte address 0x4 - core index']
  #allocation1 [shape = 'u32[72,128]{1,0:T(1,128)}', space=vmem, size = 0x9000, scoped, tag = 'internal scratch']
  %s0 = inlined_call_operand.vmem [shape: bf16[4,200], index: 0, kind: input, shape index: {}]
  %s1 = inlined_call_operand.vmem [shape: bf16[200,1156], index: 1, kind: input, shape index: {}]
  %s2 = inlined_call_operand.vmem [shape: f32[4,1], index: 2, kind: input, shape index: {}]
  %s3 = inlined_call_operand.vmem [shape: f32[4,1], index: 3, kind: input, shape index: {}]
  %s4 = inlined_call_operand.vmem [shape: f32[4,1156], index: 4, kind: output, shape index: {}]
  %s5 = sld [smem:[#allocation0]]
  $region26: #{generator_forward.6} parent=0
    _
  %s7 = ssub.s32 1, %s5
  %s8 = scalar_select 0, %s7, %s5
  // Predicated region
  $region2: #{generator_forward.6} parent=0 // pred_check
    _
  $region3: #{generator_forward.6} parent=0 // pred_check_branch
    %10 = sbr.rel (0) target = $region5
  $region4: #{generator_forward.6} parent=0 // pred_region
    _
  $region5: #{generator_forward.6} parent=0 // pred_fallthru
    _
  // Predicated region
  $region6: #{generator_forward.6} parent=0 // pred_check
    _
  $region7: #{generator_forward.6} parent=0 // pred_check_branch
    %12 = sbr.rel (0) target = $region9
  $region8: #{generator_forward.6} parent=0 // pred_region
    _
  $region9: #{generator_forward.6} parent=0 // pred_fallthru
    _
  // Predicated region
  $region10: #{generator_forward.6} parent=0 // pred_check
    _
  $region11: #{generator_forward.6} parent=0 // pred_check_branch
    %14 = sbr.rel (0) target = $region13
  $region12: #{generator_forward.6} parent=0 // pred_region
    _
  $region13: #{generator_forward.6} parent=0 // pred_fallthru
    _
  // Predicated region
  $region14: #{generator_forward.6} parent=0 // pred_check
    _
  $region15: #{generator_forward.6} parent=0 // pred_check_branch
    %16 = sbr.rel (0) target = $region17
  $region16: #{generator_forward.6} parent=0 // pred_region
    _
  $region17: #{generator_forward.6} parent=0 // pred_fallthru
    _
  %v18 = vld [vmem:[%s0] sm:$0xf]
  %v19 = vld [vmem:[%s1] sm:$0xff]
  %v20 = vld [vmem:[%s1 + $0x8] sm:$0xff]
  %v21 = vld [vmem:[%s1 + $0x10] sm:$0xff]
  %v22 = vld [vmem:[%s1 + $0x18] sm:$0xff]
  %v23 = vld [vmem:[%s1 + $0x20] sm:$0xff]
  %v24 = vld [vmem:[%s1 + $0x28] sm:$0xff]
  %v25 = vld [vmem:[%s1 + $0x30] sm:$0xff]
  %v26 = vld [vmem:[%s1 + $0x38] sm:$0xff]
  %v27 = vld [vmem:[%s1 + $0x40] sm:$0xff]
  %v28 = vld [vmem:[%s1 + $0x48] sm:$0xff]
  %v29 = vld [vmem:[%s1 + $0x50] sm:$0xff]
  %v30 = vld [vmem:[%s1 + $0x58] sm:$0xff]
  %v31 = vld [vmem:[%s1 + $0x60] sm:$0xff]
  %v32 = vld [vmem:[%s1 + $0x68] sm:$0xff]
  %v33 = vld [vmem:[%s1 + $0x70] sm:$0xff]
  %v34 = vld [vmem:[%s1 + $0x78] sm:$0xff]
  %v35 = vld [vmem:[%s1 + $0x80] sm:$0xff]
  %v36 = vld [vmem:[%s1 + $0x88] sm:$0xff]
  %v37 = vld [vmem:[%s1 + $0x90] sm:$0xff]
  %v38 = vld [vmem:[%s1 + $0x98] sm:$0xff]
  %v39 = vld [vmem:[%s1 + $0xa0] sm:$0xff]
  %v40 = vld [vmem:[%s1 + $0xa8] sm:$0xff]
  %v41 = vld [vmem:[%s1 + $0xb0] sm:$0xff]
  %v42 = vld [vmem:[%s1 + $0xb8] sm:$0xff]
  %v43 = vld [vmem:[%s1 + $0xc0] sm:$0xff]
  %v44 = vld [vmem:[%s1 + $0xc8] sm:$0xff]
  %v45 = vld [vmem:[%s1 + $0xd0] sm:$0xff]
  %v46 = vld [vmem:[%s1 + $0xd8] sm:$0xff]
  %v47 = vld [vmem:[%s1 + $0xe0] sm:$0xff]
  %v48 = vld [vmem:[%s1 + $0xe8] sm:$0xff]
  %v49 = vld [vmem:[%s1 + $0xf0] sm:$0xff]
  %v50 = vld [vmem:[%s1 + $0xf8] sm:$0xff]
  %v51 = vld [vmem:[%s1 + $0x100] sm:$0xff]
  %v52 = vld [vmem:[%s1 + $0x108] sm:$0xff]
  %v53 = vld [vmem:[%s1 + $0x110] sm:$0xff]
  %v54 = vld [vmem:[%s1 + $0x118] sm:$0xff]
  %v55 = vld [vmem:[%s1 + $0x120] sm:$0xff]
  %v56 = vld [vmem:[%s1 + $0x128] sm:$0xff]
  %v57 = vld [vmem:[%s1 + $0x130] sm:$0xff]
  %v58 = vld [vmem:[%s1 + $0x138] sm:$0xff]
  %v59 = vld [vmem:[%s1 + $0x140] sm:$0xff]
  %v60 = vld [vmem:[%s1 + $0x148] sm:$0xff]
  %v61 = vld [vmem:[%s1 + $0x150] sm:$0xff]
  %v62 = vld [vmem:[%s1 + $0x158] sm:$0xff]
  %v63 = vld [vmem:[%s1 + $0x160] sm:$0xff]
  %v64 = vld [vmem:[%s1 + $0x168] sm:$0xff]
  %v65 = vld [vmem:[%s1 + $0x170] sm:$0xff]
  %v66 = vld [vmem:[%s1 + $0x178] sm:$0xff]
  %v67 = vld [vmem:[%s1 + $0x180] sm:$0xff]
  %v68 = vld [vmem:[%s1 + $0x188] sm:$0xff]
  %v69 = vld [vmem:[%s1 + $0x190] sm:$0xff]
  %v70 = vld [vmem:[%s1 + $0x198] sm:$0xff]
  %v71 = vld [vmem:[%s1 + $0x1a0] sm:$0xff]
  %v72 = vld [vmem:[%s1 + $0x1a8] sm:$0xff]
  %v73 = vld [vmem:[%s1 + $0x1b0] sm:$0xff]
  %v74 = vld [vmem:[%s1 + $0x1b8] sm:$0xff]
  %v75 = vld [vmem:[%s1 + $0x1c0] sm:$0xff]
  %v76 = vld [vmem:[%s1 + $0x1c8] sm:$0xff]
  %v77 = vld [vmem:[%s1 + $0x1d0] sm:$0xff]
  %v78 = vld [vmem:[%s1 + $0x1d8] sm:$0xff]
  %v79 = vld [vmem:[%s1 + $0x1e0] sm:$0xff]
  %v80 = vld [vmem:[%s1 + $0x1e8] sm:$0xff]
  %v81 = vld [vmem:[%s1 + $0x1f0] sm:$0xff]
  %v82 = vld [vmem:[%s1 + $0x1f8] sm:$0xff]
  %v83 = vld [vmem:[%s1 + $0x200] sm:$0xff]
  %v84 = vld [vmem:[%s1 + $0x208] sm:$0xff]
  %v85 = vld [vmem:[%s1 + $0x210] sm:$0xff]
  %v86 = vld [vmem:[%s1 + $0x218] sm:$0xff]
  %v87 = vld [vmem:[%s1 + $0x220] sm:$0xff]
  %v88 = vld [vmem:[%s1 + $0x228] sm:$0xff]
  %v89 = vld [vmem:[%s1 + $0x230] sm:$0xff]
  %v90 = vld [vmem:[%s1 + $0x238] sm:$0xff]
  %v91 = vld [vmem:[%s1 + $0x240] sm:$0xff]
  %v92 = vld [vmem:[%s1 + $0x248] sm:$0xff]
  %v93 = vld [vmem:[%s1 + $0x250] sm:$0xff]
  %v94 = vld [vmem:[%s1 + $0x258] sm:$0xff]
  %v95 = vld [vmem:[%s1 + $0x260] sm:$0xff]
  %v96 = vld [vmem:[%s1 + $0x268] sm:$0xff]
  %v97 = vld [vmem:[%s1 + $0x270] sm:$0xff]
  %v98 = vld [vmem:[%s1 + $0x278] sm:$0xff]
  %v99 = vld [vmem:[%s1 + $0x280] sm:$0xff]
  %v100 = vld [vmem:[%s1 + $0x288] sm:$0xff]
  %v101 = vld [vmem:[%s1 + $0x290] sm:$0xff]
  %v102 = vld [vmem:[%s1 + $0x298] sm:$0xff]
  %v103 = vld [vmem:[%s1 + $0x2a0] sm:$0xff]
  %v104 = vld [vmem:[%s1 + $0x2a8] sm:$0xff]
  %v105 = vld [vmem:[%s1 + $0x2b0] sm:$0xff]
  %v106 = vld [vmem:[%s1 + $0x2b8] sm:$0xff]
  %v107 = vld [vmem:[%s1 + $0x2c0] sm:$0xff]
  %v108 = vld [vmem:[%s1 + $0x2c8] sm:$0xff]
  %v109 = vld [vmem:[%s1 + $0x2d0] sm:$0xff]
  %v110 = vld [vmem:[%s1 + $0x2d8] sm:$0xff]
  %v111 = vld [vmem:[%s1 + $0x2e0] sm:$0xff]
  %v112 = vld [vmem:[%s1 + $0x2e8] sm:$0xff]
  %v113 = vld [vmem:[%s1 + $0x2f0] sm:$0xff]
  %v114 = vld [vmem:[%s1 + $0x2f8] sm:$0xff]
  %v115 = vld [vmem:[%s1 + $0x300] sm:$0xff]
  %v116 = vld [vmem:[%s1 + $0x308] sm:$0xff]
  %v117 = vld [vmem:[%s1 + $0x310] sm:$0xff]
  %v118 = vld [vmem:[%s1 + $0x318] sm:$0xff]
  %v119 = vld [vmem:[%s1 + $0x320] sm:$0xff]
  %v120 = vld [vmem:[%s1 + $0x328] sm:$0xff]
  %v121 = vld [vmem:[%s1 + $0x330] sm:$0xff]
  %v122 = vld [vmem:[%s1 + $0x338] sm:$0xff]
  %v123 = vld [vmem:[%s1 + $0x340] sm:$0xff]
  %v124 = vld [vmem:[%s1 + $0x348] sm:$0xff]
  %v125 = vld [vmem:[%s1 + $0x350] sm:$0xff]
  %v126 = vld [vmem:[%s1 + $0x358] sm:$0xff]
  %v127 = vld [vmem:[%s1 + $0x360] sm:$0xff]
  %v128 = vld [vmem:[%s1 + $0x368] sm:$0xff]
  %v129 = vld [vmem:[%s1 + $0x370] sm:$0xff]
  %v130 = vld [vmem:[%s1 + $0x378] sm:$0xff]
  %v131 = vld [vmem:[%s1 + $0x380] sm:$0xff]
  %v132 = vld [vmem:[%s1 + $0x388] sm:$0xff]
  %v133 = vld [vmem:[%s1 + $0x390] sm:$0xff]
  %v134 = vld [vmem:[%s1 + $0x398] sm:$0xff]
  %v135 = vld [vmem:[%s1 + $0x3a0] sm:$0xff]
  %v136 = vld [vmem:[%s1 + $0x3a8] sm:$0xff]
  %v137 = vld [vmem:[%s1 + $0x3b0] sm:$0xff]
  %v138 = vld [vmem:[%s1 + $0x3b8] sm:$0xff]
  %v139 = vld [vmem:[%s1 + $0x3c0] sm:$0xff]
  %v140 = vld [vmem:[%s1 + $0x3c8] sm:$0xff]
  %v141 = vld [vmem:[%s1 + $0x3d0] sm:$0xff]
  %v142 = vld [vmem:[%s1 + $0x3d8] sm:$0xff]
  %v143 = vld [vmem:[%s1 + $0x3e0] sm:$0xff]
  %145 = vst [vmem:[#allocation1] ss:$4 sm:$0xff] %v18
  %v146 = vld.sshfl [vmem:[#allocation1] sm:$0xff pattern:$0x73625140]
  %v147 = vld.sshfl [vmem:[#allocation1 + $0x8] sm:$0xff pattern:$0x73625140]
  %v274 = vunpack.c.l.b16 %v19
  %v275 = vunpack.c.h.b16 %v19
  %v276 = vunpack.c.l.b16 %v20
  %v277 = vunpack.c.h.b16 %v20
  %v278 = vunpack.c.l.b16 %v21
  %v279 = vunpack.c.h.b16 %v21
  %v280 = vunpack.c.l.b16 %v22
  %v281 = vunpack.c.h.b16 %v22
  %v282 = vunpack.c.l.b16 %v23
  %v283 = vunpack.c.h.b16 %v23
  %v284 = vunpack.c.l.b16 %v24
  %v285 = vunpack.c.h.b16 %v24
  %v286 = vunpack.c.l.b16 %v25
  %v287 = vunpack.c.h.b16 %v25
  %v288 = vunpack.c.l.b16 %v26
  %v289 = vunpack.c.h.b16 %v26
  %v290 = vunpack.c.l.b16 %v27
  %v291 = vunpack.c.h.b16 %v27
  %v292 = vunpack.c.l.b16 %v28
  %v293 = vunpack.c.h.b16 %v28
  %v294 = vunpack.c.l.b16 %v29
  %v295 = vunpack.c.h.b16 %v29
  %v296 = vunpack.c.l.b16 %v30
  %v297 = vunpack.c.h.b16 %v30
  %v298 = vunpack.c.l.b16 %v31
  %v299 = vunpack.c.h.b16 %v31
  %v300 = vunpack.c.l.b16 %v32
  %v301 = vunpack.c.h.b16 %v32
  %v302 = vunpack.c.l.b16 %v33
  %v303 = vunpack.c.h.b16 %v33
  %v304 = vunpack.c.l.b16 %v34
  %v305 = vunpack.c.h.b16 %v34
  %v306 = vunpack.c.l.b16 %v35
  %v307 = vunpack.c.h.b16 %v35
  %v308 = vunpack.c.l.b16 %v36
  %v309 = vunpack.c.h.b16 %v36
  %v310 = vunpack.c.l.b16 %v37
  %v311 = vunpack.c.h.b16 %v37
  %v312 = vunpack.c.l.b16 %v38
  %v313 = vunpack.c.h.b16 %v38
  %v314 = vunpack.c.l.b16 %v39
  %v315 = vunpack.c.h.b16 %v39
  %v316 = vunpack.c.l.b16 %v40
  %v317 = vunpack.c.h.b16 %v40
  %v318 = vunpack.c.l.b16 %v41
  %v319 = vunpack.c.h.b16 %v41
  %v320 = vunpack.c.l.b16 %v42
  %v321 = vunpack.c.h.b16 %v42
  %v322 = vunpack.c.l.b16 %v43
  %v323 = vunpack.c.h.b16 %v43
  %v324 = vunpack.c.l.b16 %v44
  %v325 = vunpack.c.h.b16 %v44
  %v326 = vunpack.c.l.b16 %v45
  %v327 = vunpack.c.h.b16 %v45
  %v328 = vunpack.c.l.b16 %v46
  %v329 = vunpack.c.h.b16 %v46
  %v330 = vunpack.c.l.b16 %v47
  %v331 = vunpack.c.h.b16 %v47
  %v332 = vunpack.c.l.b16 %v48
  %v333 = vunpack.c.h.b16 %v48
  %v334 = vunpack.c.l.b16 %v49
  %v335 = vunpack.c.h.b16 %v49
  %v336 = vunpack.c.l.b16 %v50
  %v337 = vunpack.c.h.b16 %v50
  %v338 = vunpack.c.l.b16 %v51
  %v339 = vunpack.c.h.b16 %v51
  %v340 = vunpack.c.l.b16 %v52
  %v341 = vunpack.c.h.b16 %v52
  %v342 = vunpack.c.l.b16 %v53
  %v343 = vunpack.c.h.b16 %v53
  %v344 = vunpack.c.l.b16 %v54
  %v345 = vunpack.c.h.b16 %v54
  %v346 = vunpack.c.l.b16 %v55
  %v347 = vunpack.c.h.b16 %v55
  %v348 = vunpack.c.l.b16 %v56
  %v349 = vunpack.c.h.b16 %v56
  %v350 = vunpack.c.l.b16 %v57
  %v351 = vunpack.c.h.b16 %v57
  %v352 = vunpack.c.l.b16 %v58
  %v353 = vunpack.c.h.b16 %v58
  %v354 = vunpack.c.l.b16 %v59
  %v355 = vunpack.c.h.b16 %v59
  %v356 = vunpack.c.l.b16 %v60
  %v357 = vunpack.c.h.b16 %v60
  %v358 = vunpack.c.l.b16 %v61
  %v359 = vunpack.c.h.b16 %v61
  %v360 = vunpack.c.l.b16 %v62
  %v361 = vunpack.c.h.b16 %v62
  %v362 = vunpack.c.l.b16 %v63
  %v363 = vunpack.c.h.b16 %v63
  %v364 = vunpack.c.l.b16 %v64
  %v365 = vunpack.c.h.b16 %v64
  %v366 = vunpack.c.l.b16 %v65
  %v367 = vunpack.c.h.b16 %v65
  %v368 = vunpack.c.l.b16 %v66
  %v369 = vunpack.c.h.b16 %v66
  %v370 = vunpack.c.l.b16 %v67
  %v371 = vunpack.c.h.b16 %v67
  %v372 = vunpack.c.l.b16 %v68
  %v373 = vunpack.c.h.b16 %v68
  %v374 = vunpack.c.l.b16 %v69
  %v375 = vunpack.c.h.b16 %v69
  %v376 = vunpack.c.l.b16 %v70
  %v377 = vunpack.c.h.b16 %v70
  %v378 = vunpack.c.l.b16 %v71
  %v379 = vunpack.c.h.b16 %v71
  %v380 = vunpack.c.l.b16 %v72
  %v381 = vunpack.c.h.b16 %v72
  %v382 = vunpack.c.l.b16 %v73
  %v383 = vunpack.c.h.b16 %v73
  %v384 = vunpack.c.l.b16 %v74
  %v385 = vunpack.c.h.b16 %v74
  %v386 = vunpack.c.l.b16 %v75
  %v387 = vunpack.c.h.b16 %v75
  %v388 = vunpack.c.l.b16 %v76
  %v389 = vunpack.c.h.b16 %v76
  %v390 = vunpack.c.l.b16 %v77
  %v391 = vunpack.c.h.b16 %v77
  %v392 = vunpack.c.l.b16 %v78
  %v393 = vunpack.c.h.b16 %v78
  %v394 = vunpack.c.l.b16 %v79
  %v395 = vunpack.c.h.b16 %v79
  %v396 = vunpack.c.l.b16 %v80
  %v397 = vunpack.c.h.b16 %v80
  %v398 = vunpack.c.l.b16 %v81
  %v399 = vunpack.c.h.b16 %v81
  %v400 = vunpack.c.l.b16 %v82
  %v401 = vunpack.c.h.b16 %v82
  %v402 = vunpack.c.l.b16 %v83
  %v403 = vunpack.c.h.b16 %v83
  %v404 = vunpack.c.l.b16 %v84
  %v405 = vunpack.c.h.b16 %v84
  %v406 = vunpack.c.l.b16 %v85
  %v407 = vunpack.c.h.b16 %v85
  %v408 = vunpack.c.l.b16 %v86
  %v409 = vunpack.c.h.b16 %v86
  %v410 = vunpack.c.l.b16 %v87
  %v411 = vunpack.c.h.b16 %v87
  %v412 = vunpack.c.l.b16 %v88
  %v413 = vunpack.c.h.b16 %v88
  %v414 = vunpack.c.l.b16 %v89
  %v415 = vunpack.c.h.b16 %v89
  %v416 = vunpack.c.l.b16 %v90
  %v417 = vunpack.c.h.b16 %v90
  %v418 = vunpack.c.l.b16 %v91
  %v419 = vunpack.c.h.b16 %v91
  %v420 = vunpack.c.l.b16 %v92
  %v421 = vunpack.c.h.b16 %v92
  %v422 = vunpack.c.l.b16 %v93
  %v423 = vunpack.c.h.b16 %v93
  %v424 = vunpack.c.l.b16 %v94
  %v425 = vunpack.c.h.b16 %v94
  %v426 = vunpack.c.l.b16 %v95
  %v427 = vunpack.c.h.b16 %v95
  %v428 = vunpack.c.l.b16 %v96
  %v429 = vunpack.c.h.b16 %v96
  %v430 = vunpack.c.l.b16 %v97
  %v431 = vunpack.c.h.b16 %v97
  %v432 = vunpack.c.l.b16 %v98
  %v433 = vunpack.c.h.b16 %v98
  %v434 = vunpack.c.l.b16 %v99
  %v435 = vunpack.c.h.b16 %v99
  %v436 = vunpack.c.l.b16 %v100
  %v437 = vunpack.c.h.b16 %v100
  %v438 = vunpack.c.l.b16 %v101
  %v439 = vunpack.c.h.b16 %v101
  %v440 = vunpack.c.l.b16 %v102
  %v441 = vunpack.c.h.b16 %v102
  %v442 = vunpack.c.l.b16 %v103
  %v443 = vunpack.c.h.b16 %v103
  %v444 = vunpack.c.l.b16 %v104
  %v445 = vunpack.c.h.b16 %v104
  %v446 = vunpack.c.l.b16 %v105
  %v447 = vunpack.c.h.b16 %v105
  %v448 = vunpack.c.l.b16 %v106
  %v449 = vunpack.c.h.b16 %v106
  %v450 = vunpack.c.l.b16 %v107
  %v451 = vunpack.c.h.b16 %v107
  %v452 = vunpack.c.l.b16 %v108
  %v453 = vunpack.c.h.b16 %v108
  %v454 = vunpack.c.l.b16 %v109
  %v455 = vunpack.c.h.b16 %v109
  %v456 = vunpack.c.l.b16 %v110
  %v457 = vunpack.c.h.b16 %v110
  %v458 = vunpack.c.l.b16 %v111
  %v459 = vunpack.c.h.b16 %v111
  %v460 = vunpack.c.l.b16 %v112
  %v461 = vunpack.c.h.b16 %v112
  %v462 = vunpack.c.l.b16 %v113
  %v463 = vunpack.c.h.b16 %v113
  %v464 = vunpack.c.l.b16 %v114
  %v465 = vunpack.c.h.b16 %v114
  %v466 = vunpack.c.l.b16 %v115
  %v467 = vunpack.c.h.b16 %v115
  %v468 = vunpack.c.l.b16 %v116
  %v469 = vunpack.c.h.b16 %v116
  %v470 = vunpack.c.l.b16 %v117
  %v471 = vunpack.c.h.b16 %v117
  %v472 = vunpack.c.l.b16 %v118
  %v473 = vunpack.c.h.b16 %v118
  %v474 = vunpack.c.l.b16 %v119
  %v475 = vunpack.c.h.b16 %v119
  %v476 = vunpack.c.l.b16 %v120
  %v477 = vunpack.c.h.b16 %v120
  %v478 = vunpack.c.l.b16 %v121
  %v479 = vunpack.c.h.b16 %v121
  %v480 = vunpack.c.l.b16 %v122
  %v481 = vunpack.c.h.b16 %v122
  %v482 = vunpack.c.l.b16 %v123
  %v483 = vunpack.c.h.b16 %v123
  %v484 = vunpack.c.l.b16 %v124
  %v485 = vunpack.c.h.b16 %v124
  %v486 = vunpack.c.l.b16 %v125
  %v487 = vunpack.c.h.b16 %v125
  %v488 = vunpack.c.l.b16 %v126
  %v489 = vunpack.c.h.b16 %v126
  %v490 = vunpack.c.l.b16 %v127
  %v491 = vunpack.c.h.b16 %v127
  %v492 = vunpack.c.l.b16 %v128
  %v493 = vunpack.c.h.b16 %v128
  %v494 = vunpack.c.l.b16 %v129
  %v495 = vunpack.c.h.b16 %v129
  %v496 = vunpack.c.l.b16 %v130
  %v497 = vunpack.c.h.b16 %v130
  %v498 = vunpack.c.l.b16 %v131
  %v499 = vunpack.c.h.b16 %v131
  %v500 = vunpack.c.l.b16 %v132
  %v501 = vunpack.c.h.b16 %v132
  %v502 = vunpack.c.l.b16 %v133
  %v503 = vunpack.c.h.b16 %v133
  %v504 = vunpack.c.l.b16 %v134
  %v505 = vunpack.c.h.b16 %v134
  %v506 = vunpack.c.l.b16 %v135
  %v507 = vunpack.c.h.b16 %v135
  %v508 = vunpack.c.l.b16 %v136
  %v509 = vunpack.c.h.b16 %v136
  %v510 = vunpack.c.l.b16 %v137
  %v511 = vunpack.c.h.b16 %v137
  %v512 = vunpack.c.l.b16 %v138
  %v513 = vunpack.c.h.b16 %v138
  %v514 = vunpack.c.l.b16 %v139
  %v515 = vunpack.c.h.b16 %v139
  %v516 = vunpack.c.l.b16 %v140
  %v517 = vunpack.c.h.b16 %v140
  %v518 = vunpack.c.l.b16 %v141
  %v519 = vunpack.c.h.b16 %v141
  %v520 = vunpack.c.l.b16 %v142
  %v521 = vunpack.c.h.b16 %v142
  %v522 = vunpack.c.l.b16 %v143
  %v523 = vunpack.c.h.b16 %v143
  %v524 = vpack.c.b16 %v284, %v274
  %v525 = vpack.c.b16 %v285, %v275
  %v526 = vpack.c.b16 %v286, %v276
  %v527 = vpack.c.b16 %v287, %v277
  %v528 = vpack.c.b16 %v288, %v278
  %v529 = vpack.c.b16 %v289, %v279
  %v530 = vpack.c.b16 %v290, %v280
  %v531 = vpack.c.b16 %v291, %v281
  %v532 = vpack.c.b16 %v292, %v282
  %v533 = vpack.c.b16 %v293, %v283
  %v534 = vpack.c.b16 %v304, %v294
  %v535 = vpack.c.b16 %v305, %v295
  %v536 = vpack.c.b16 %v306, %v296
  %v537 = vpack.c.b16 %v307, %v297
  %v538 = vpack.c.b16 %v308, %v298
  %v539 = vpack.c.b16 %v309, %v299
  %v540 = vpack.c.b16 %v310, %v300
  %v541 = vpack.c.b16 %v311, %v301
  %v542 = vpack.c.b16 %v312, %v302
  %v543 = vpack.c.b16 %v313, %v303
  %v544 = vpack.c.b16 %v324, %v314
  %v545 = vpack.c.b16 %v325, %v315
  %v546 = vpack.c.b16 %v326, %v316
  %v547 = vpack.c.b16 %v327, %v317
  %v548 = vpack.c.b16 %v328, %v318
  %v549 = vpack.c.b16 %v329, %v319
  %v550 = vpack.c.b16 %v330, %v320
  %v551 = vpack.c.b16 %v331, %v321
  %v552 = vpack.c.b16 %v332, %v322
  %v553 = vpack.c.b16 %v333, %v323
  %v554 = vpack.c.b16 %v344, %v334
  %v555 = vpack.c.b16 %v345, %v335
  %v556 = vpack.c.b16 %v346, %v336
  %v557 = vpack.c.b16 %v347, %v337
  %v558 = vpack.c.b16 %v348, %v338
  %v559 = vpack.c.b16 %v349, %v339
  %v560 = vpack.c.b16 %v350, %v340
  %v561 = vpack.c.b16 %v351, %v341
  %v562 = vpack.c.b16 %v352, %v342
  %v563 = vpack.c.b16 %v353, %v343
  %v564 = vpack.c.b16 %v364, %v354
  %v565 = vpack.c.b16 %v365, %v355
  %v566 = vpack.c.b16 %v366, %v356
  %v567 = vpack.c.b16 %v367, %v357
  %v568 = vpack.c.b16 %v368, %v358
  %v569 = vpack.c.b16 %v369, %v359
  %v570 = vpack.c.b16 %v370, %v360
  %v571 = vpack.c.b16 %v371, %v361
  %v572 = vpack.c.b16 %v372, %v362
  %v573 = vpack.c.b16 %v373, %v363
  %v574 = vpack.c.b16 %v384, %v374
  %v575 = vpack.c.b16 %v385, %v375
  %v576 = vpack.c.b16 %v386, %v376
  %v577 = vpack.c.b16 %v387, %v377
  %v578 = vpack.c.b16 %v388, %v378
  %v579 = vpack.c.b16 %v389, %v379
  %v580 = vpack.c.b16 %v390, %v380
  %v581 = vpack.c.b16 %v391, %v381
  %v582 = vpack.c.b16 %v392, %v382
  %v583 = vpack.c.b16 %v393, %v383
  %v584 = vpack.c.b16 %v404, %v394
  %v585 = vpack.c.b16 %v405, %v395
  %v586 = vpack.c.b16 %v406, %v396
  %v587 = vpack.c.b16 %v407, %v397
  %v588 = vpack.c.b16 %v408, %v398
  %v589 = vpack.c.b16 %v409, %v399
  %v590 = vpack.c.b16 %v410, %v400
  %v591 = vpack.c.b16 %v411, %v401
  %v592 = vpack.c.b16 %v412, %v402
  %v593 = vpack.c.b16 %v413, %v403
  %v594 = vpack.c.b16 %v424, %v414
  %v595 = vpack.c.b16 %v425, %v415
  %v596 = vpack.c.b16 %v426, %v416
  %v597 = vpack.c.b16 %v427, %v417
  %v598 = vpack.c.b16 %v428, %v418
  %v599 = vpack.c.b16 %v429, %v419
  %v600 = vpack.c.b16 %v430, %v420
  %v601 = vpack.c.b16 %v431, %v421
  %v602 = vpack.c.b16 %v432, %v422
  %v603 = vpack.c.b16 %v433, %v423
  %v604 = vpack.c.b16 %v444, %v434
  %v605 = vpack.c.b16 %v445, %v435
  %v606 = vpack.c.b16 %v446, %v436
  %v607 = vpack.c.b16 %v447, %v437
  %v608 = vpack.c.b16 %v448, %v438
  %v609 = vpack.c.b16 %v449, %v439
  %v610 = vpack.c.b16 %v450, %v440
  %v611 = vpack.c.b16 %v451, %v441
  %v612 = vpack.c.b16 %v452, %v442
  %v613 = vpack.c.b16 %v453, %v443
  %v614 = vpack.c.b16 %v464, %v454
  %v615 = vpack.c.b16 %v465, %v455
  %v616 = vpack.c.b16 %v466, %v456
  %v617 = vpack.c.b16 %v467, %v457
  %v618 = vpack.c.b16 %v468, %v458
  %v619 = vpack.c.b16 %v469, %v459
  %v620 = vpack.c.b16 %v470, %v460
  %v621 = vpack.c.b16 %v471, %v461
  %v622 = vpack.c.b16 %v472, %v462
  %v623 = vpack.c.b16 %v473, %v463
  %v624 = vpack.c.b16 %v484, %v474
  %v625 = vpack.c.b16 %v485, %v475
  %v626 = vpack.c.b16 %v486, %v476
  %v627 = vpack.c.b16 %v487, %v477
  %v628 = vpack.c.b16 %v488, %v478
  %v629 = vpack.c.b16 %v489, %v479
  %v630 = vpack.c.b16 %v490, %v480
  %v631 = vpack.c.b16 %v491, %v481
  %v632 = vpack.c.b16 %v492, %v482
  %v633 = vpack.c.b16 %v493, %v483
  %v634 = vpack.c.b16 %v504, %v494
  %v635 = vpack.c.b16 %v505, %v495
  %v636 = vpack.c.b16 %v506, %v496
  %v637 = vpack.c.b16 %v507, %v497
  %v638 = vpack.c.b16 %v508, %v498
  %v639 = vpack.c.b16 %v509, %v499
  %v640 = vpack.c.b16 %v510, %v500
  %v641 = vpack.c.b16 %v511, %v501
  %v642 = vpack.c.b16 %v512, %v502
  %v643 = vpack.c.b16 %v513, %v503
  %v644 = vpack.c.b16 %v514, %v514
  %v645 = vpack.c.b16 %v515, %v515
  %v646 = vpack.c.b16 %v516, %v516
  %v647 = vpack.c.b16 %v517, %v517
  %v648 = vpack.c.b16 %v518, %v518
  %v649 = vpack.c.b16 %v519, %v519
  %v650 = vpack.c.b16 %v520, %v520
  %v651 = vpack.c.b16 %v521, %v521
  %v652 = vpack.c.b16 %v522, %v522
  %v653 = vpack.c.b16 %v523, %v523
  %vm774 = vcmask 588800
  %v775 = vsel %vm774, %v147, 0
  %vm777 = vcmask 1043456
  %v779 = vsel %vm777, %v644, 0
  %v782 = vsel %vm777, %v645, 0
  %v785 = vsel %vm777, %v646, 0
  %v788 = vsel %vm777, %v647, 0
  %v791 = vsel %vm777, %v648, 0
  %v794 = vsel %vm777, %v649, 0
  %v797 = vsel %vm777, %v650, 0
  %v800 = vsel %vm777, %v651, 0
  %v803 = vsel %vm777, %v652, 0
  %v806 = vsel %vm777, %v653, 0
  %808 = vmatpush.bf16.msra.mxu0 %v594
  %809 = vmatpush.bf16.msra.mxu0 %v584
  %810 = vmatpush.bf16.msra.mxu0 %v574
  %811 = vmatpush.bf16.msra.mxu0 %v564
  %812 = vmatpush.bf16.msra.mxu0 %v554
  %813 = vmatpush.bf16.msra.mxu0 %v544
  %814 = vmatpush.bf16.msra.mxu0 %v534
  %815 = vmatpush.bf16.msra.mxu0 %v524
  %816 = vmatmul.bf16.gmra.mxu0 %v146
  %v817 = vpop.f32.mrf.mxu0
  %v818 = vadd.f32 0.0, %v817
  %v819 = vpop.f32.mrf.mxu0
  %820 = vdwg.mxu0
  %821 = vmatpush.bf16.msra.mxu0 0
  %822 = vmatpush.bf16.msra.mxu0 0
  %823 = vmatpush.bf16.msra.mxu0 0
  %824 = vmatpush.bf16.msra.mxu0 %v779
  %825 = vmatpush.bf16.msra.mxu0 %v634
  %826 = vmatpush.bf16.msra.mxu0 %v624
  %827 = vmatpush.bf16.msra.mxu0 %v614
  %828 = vmatpush.bf16.msra.mxu0 %v604
  %829 = vmatmul.bf16.gmra.mxu0 %v775
  %v830 = vpop.f32.mrf.mxu0
  %v831 = vadd.f32 %v818, %v830
  %v832 = vpop.f32.mrf.mxu0
  %833 = vdwg.mxu0
  %834 = vmatpush.bf16.msra.mxu0 %v595
  %835 = vmatpush.bf16.msra.mxu0 %v585
  %836 = vmatpush.bf16.msra.mxu0 %v575
  %837 = vmatpush.bf16.msra.mxu0 %v565
  %838 = vmatpush.bf16.msra.mxu0 %v555
  %839 = vmatpush.bf16.msra.mxu0 %v545
  %840 = vmatpush.bf16.msra.mxu0 %v535
  %841 = vmatpush.bf16.msra.mxu0 %v525
  %842 = vmatmul.bf16.gmra.mxu0 %v146
  %v843 = vpop.f32.mrf.mxu0
  %v844 = vadd.f32 0.0, %v843
  %v845 = vpop.f32.mrf.mxu0
  %846 = vdwg.mxu0
  %847 = vmatpush.bf16.msra.mxu0 0
  %848 = vmatpush.bf16.msra.mxu0 0
  %849 = vmatpush.bf16.msra.mxu0 0
  %850 = vmatpush.bf16.msra.mxu0 %v782
  %851 = vmatpush.bf16.msra.mxu0 %v635
  %852 = vmatpush.bf16.msra.mxu0 %v625
  %853 = vmatpush.bf16.msra.mxu0 %v615
  %854 = vmatpush.bf16.msra.mxu0 %v605
  %855 = vmatmul.bf16.gmra.mxu0 %v775
  %v856 = vpop.f32.mrf.mxu0
  %v857 = vadd.f32 %v844, %v856
  %v858 = vpop.f32.mrf.mxu0
  %859 = vdwg.mxu0
  %860 = vmatpush.bf16.msra.mxu0 %v596
  %861 = vmatpush.bf16.msra.mxu0 %v586
  %862 = vmatpush.bf16.msra.mxu0 %v576
  %863 = vmatpush.bf16.msra.mxu0 %v566
  %864 = vmatpush.bf16.msra.mxu0 %v556
  %865 = vmatpush.bf16.msra.mxu0 %v546
  %866 = vmatpush.bf16.msra.mxu0 %v536
  %867 = vmatpush.bf16.msra.mxu0 %v526
  %868 = vmatmul.bf16.gmra.mxu0 %v146
  %v869 = vpop.f32.mrf.mxu0
  %v870 = vadd.f32 0.0, %v869
  %v871 = vpop.f32.mrf.mxu0
  %872 = vdwg.mxu0
  %873 = vmatpush.bf16.msra.mxu0 0
  %874 = vmatpush.bf16.msra.mxu0 0
  %875 = vmatpush.bf16.msra.mxu0 0
  %876 = vmatpush.bf16.msra.mxu0 %v785
  %877 = vmatpush.bf16.msra.mxu0 %v636
  %878 = vmatpush.bf16.msra.mxu0 %v626
  %879 = vmatpush.bf16.msra.mxu0 %v616
  %880 = vmatpush.bf16.msra.mxu0 %v606
  %881 = vmatmul.bf16.gmra.mxu0 %v775
  %v882 = vpop.f32.mrf.mxu0
  %v883 = vadd.f32 %v870, %v882
  %v884 = vpop.f32.mrf.mxu0
  %885 = vdwg.mxu0
  %886 = vmatpush.bf16.msra.mxu0 %v597
  %887 = vmatpush.bf16.msra.mxu0 %v587
  %888 = vmatpush.bf16.msra.mxu0 %v577
  %889 = vmatpush.bf16.msra.mxu0 %v567
  %890 = vmatpush.bf16.msra.mxu0 %v557
  %891 = vmatpush.bf16.msra.mxu0 %v547
  %892 = vmatpush.bf16.msra.mxu0 %v537
  %893 = vmatpush.bf16.msra.mxu0 %v527
  %894 = vmatmul.bf16.gmra.mxu0 %v146
  %v895 = vpop.f32.mrf.mxu0
  %v896 = vadd.f32 0.0, %v895
  %v897 = vpop.f32.mrf.mxu0
  %898 = vdwg.mxu0
  %899 = vmatpush.bf16.msra.mxu0 0
  %900 = vmatpush.bf16.msra.mxu0 0
  %901 = vmatpush.bf16.msra.mxu0 0
  %902 = vmatpush.bf16.msra.mxu0 %v788
  %903 = vmatpush.bf16.msra.mxu0 %v637
  %904 = vmatpush.bf16.msra.mxu0 %v627
  %905 = vmatpush.bf16.msra.mxu0 %v617
  %906 = vmatpush.bf16.msra.mxu0 %v607
  %907 = vmatmul.bf16.gmra.mxu0 %v775
  %v908 = vpop.f32.mrf.mxu0
  %v909 = vadd.f32 %v896, %v908
  %v910 = vpop.f32.mrf.mxu0
  %911 = vdwg.mxu0
  %912 = vmatpush.bf16.msra.mxu0 %v598
  %913 = vmatpush.bf16.msra.mxu0 %v588
  %914 = vmatpush.bf16.msra.mxu0 %v578
  %915 = vmatpush.bf16.msra.mxu0 %v568
  %916 = vmatpush.bf16.msra.mxu0 %v558
  %917 = vmatpush.bf16.msra.mxu0 %v548
  %918 = vmatpush.bf16.msra.mxu0 %v538
  %919 = vmatpush.bf16.msra.mxu0 %v528
  %920 = vmatmul.bf16.gmra.mxu0 %v146
  %v921 = vpop.f32.mrf.mxu0
  %v922 = vadd.f32 0.0, %v921
  %v923 = vpop.f32.mrf.mxu0
  %924 = vdwg.mxu0
  %925 = vmatpush.bf16.msra.mxu0 0
  %926 = vmatpush.bf16.msra.mxu0 0
  %927 = vmatpush.bf16.msra.mxu0 0
  %928 = vmatpush.bf16.msra.mxu0 %v791
  %929 = vmatpush.bf16.msra.mxu0 %v638
  %930 = vmatpush.bf16.msra.mxu0 %v628
  %931 = vmatpush.bf16.msra.mxu0 %v618
  %932 = vmatpush.bf16.msra.mxu0 %v608
  %933 = vmatmul.bf16.gmra.mxu0 %v775
  %v934 = vpop.f32.mrf.mxu0
  %v935 = vadd.f32 %v922, %v934
  %v936 = vpop.f32.mrf.mxu0
  %937 = vdwg.mxu0
  %938 = vmatpush.bf16.msra.mxu0 %v599
  %939 = vmatpush.bf16.msra.mxu0 %v589
  %940 = vmatpush.bf16.msra.mxu0 %v579
  %941 = vmatpush.bf16.msra.mxu0 %v569
  %942 = vmatpush.bf16.msra.mxu0 %v559
  %943 = vmatpush.bf16.msra.mxu0 %v549
  %944 = vmatpush.bf16.msra.mxu0 %v539
  %945 = vmatpush.bf16.msra.mxu0 %v529
  %946 = vmatmul.bf16.gmra.mxu0 %v146
  %v947 = vpop.f32.mrf.mxu0
  %v948 = vadd.f32 0.0, %v947
  %v949 = vpop.f32.mrf.mxu0
  %950 = vdwg.mxu0
  %951 = vmatpush.bf16.msra.mxu0 0
  %952 = vmatpush.bf16.msra.mxu0 0
  %953 = vmatpush.bf16.msra.mxu0 0
  %954 = vmatpush.bf16.msra.mxu0 %v794
  %955 = vmatpush.bf16.msra.mxu0 %v639
  %956 = vmatpush.bf16.msra.mxu0 %v629
  %957 = vmatpush.bf16.msra.mxu0 %v619
  %958 = vmatpush.bf16.msra.mxu0 %v609
  %959 = vmatmul.bf16.gmra.mxu0 %v775
  %v960 = vpop.f32.mrf.mxu0
  %v961 = vadd.f32 %v948, %v960
  %v962 = vpop.f32.mrf.mxu0
  %963 = vdwg.mxu0
  %964 = vmatpush.bf16.msra.mxu0 %v600
  %965 = vmatpush.bf16.msra.mxu0 %v590
  %966 = vmatpush.bf16.msra.mxu0 %v580
  %967 = vmatpush.bf16.msra.mxu0 %v570
  %968 = vmatpush.bf16.msra.mxu0 %v560
  %969 = vmatpush.bf16.msra.mxu0 %v550
  %970 = vmatpush.bf16.msra.mxu0 %v540
  %971 = vmatpush.bf16.msra.mxu0 %v530
  %972 = vmatmul.bf16.gmra.mxu0 %v146
  %v973 = vpop.f32.mrf.mxu0
  %v974 = vadd.f32 0.0, %v973
  %v975 = vpop.f32.mrf.mxu0
  %976 = vdwg.mxu0
  %977 = vmatpush.bf16.msra.mxu0 0
  %978 = vmatpush.bf16.msra.mxu0 0
  %979 = vmatpush.bf16.msra.mxu0 0
  %980 = vmatpush.bf16.msra.mxu0 %v797
  %981 = vmatpush.bf16.msra.mxu0 %v640
  %982 = vmatpush.bf16.msra.mxu0 %v630
  %983 = vmatpush.bf16.msra.mxu0 %v620
  %984 = vmatpush.bf16.msra.mxu0 %v610
  %985 = vmatmul.bf16.gmra.mxu0 %v775
  %v986 = vpop.f32.mrf.mxu0
  %v987 = vadd.f32 %v974, %v986
  %v988 = vpop.f32.mrf.mxu0
  %989 = vdwg.mxu0
  %990 = vmatpush.bf16.msra.mxu0 %v601
  %991 = vmatpush.bf16.msra.mxu0 %v591
  %992 = vmatpush.bf16.msra.mxu0 %v581
  %993 = vmatpush.bf16.msra.mxu0 %v571
  %994 = vmatpush.bf16.msra.mxu0 %v561
  %995 = vmatpush.bf16.msra.mxu0 %v551
  %996 = vmatpush.bf16.msra.mxu0 %v541
  %997 = vmatpush.bf16.msra.mxu0 %v531
  %998 = vmatmul.bf16.gmra.mxu0 %v146
  %v999 = vpop.f32.mrf.mxu0
  %v1000 = vadd.f32 0.0, %v999
  %v1001 = vpop.f32.mrf.mxu0
  %1002 = vdwg.mxu0
  %1003 = vmatpush.bf16.msra.mxu0 0
  %1004 = vmatpush.bf16.msra.mxu0 0
  %1005 = vmatpush.bf16.msra.mxu0 0
  %1006 = vmatpush.bf16.msra.mxu0 %v800
  %1007 = vmatpush.bf16.msra.mxu0 %v641
  %1008 = vmatpush.bf16.msra.mxu0 %v631
  %1009 = vmatpush.bf16.msra.mxu0 %v621
  %1010 = vmatpush.bf16.msra.mxu0 %v611
  %1011 = vmatmul.bf16.gmra.mxu0 %v775
  %v1012 = vpop.f32.mrf.mxu0
  %v1013 = vadd.f32 %v1000, %v1012
  %v1014 = vpop.f32.mrf.mxu0
  %1015 = vdwg.mxu0
  %1016 = vmatpush.bf16.msra.mxu0 %v602
  %1017 = vmatpush.bf16.msra.mxu0 %v592
  %1018 = vmatpush.bf16.msra.mxu0 %v582
  %1019 = vmatpush.bf16.msra.mxu0 %v572
  %1020 = vmatpush.bf16.msra.mxu0 %v562
  %1021 = vmatpush.bf16.msra.mxu0 %v552
  %1022 = vmatpush.bf16.msra.mxu0 %v542
  %1023 = vmatpush.bf16.msra.mxu0 %v532
  %1024 = vmatmul.bf16.gmra.mxu0 %v146
  %v1025 = vpop.f32.mrf.mxu0
  %v1026 = vadd.f32 0.0, %v1025
  %v1027 = vpop.f32.mrf.mxu0
  %1028 = vdwg.mxu0
  %1029 = vmatpush.bf16.msra.mxu0 0
  %1030 = vmatpush.bf16.msra.mxu0 0
  %1031 = vmatpush.bf16.msra.mxu0 0
  %1032 = vmatpush.bf16.msra.mxu0 %v803
  %1033 = vmatpush.bf16.msra.mxu0 %v642
  %1034 = vmatpush.bf16.msra.mxu0 %v632
  %1035 = vmatpush.bf16.msra.mxu0 %v622
  %1036 = vmatpush.bf16.msra.mxu0 %v612
  %1037 = vmatmul.bf16.gmra.mxu0 %v775
  %v1038 = vpop.f32.mrf.mxu0
  %v1039 = vadd.f32 %v1026, %v1038
  %v1040 = vpop.f32.mrf.mxu0
  %1041 = vdwg.mxu0
  %1042 = vmatpush.bf16.msra.mxu0 %v603
  %1043 = vmatpush.bf16.msra.mxu0 %v593
  %1044 = vmatpush.bf16.msra.mxu0 %v583
  %1045 = vmatpush.bf16.msra.mxu0 %v573
  %1046 = vmatpush.bf16.msra.mxu0 %v563
  %1047 = vmatpush.bf16.msra.mxu0 %v553
  %1048 = vmatpush.bf16.msra.mxu0 %v543
  %1049 = vmatpush.bf16.msra.mxu0 %v533
  %1050 = vmatmul.bf16.gmra.mxu0 %v146
  %v1051 = vpop.f32.mrf.mxu0
  %v1052 = vadd.f32 0.0, %v1051
  %v1053 = vpop.f32.mrf.mxu0
  %1054 = vdwg.mxu0
  %1055 = vmatpush.bf16.msra.mxu0 0
  %1056 = vmatpush.bf16.msra.mxu0 0
  %1057 = vmatpush.bf16.msra.mxu0 0
  %1058 = vmatpush.bf16.msra.mxu0 %v806
  %1059 = vmatpush.bf16.msra.mxu0 %v643
  %1060 = vmatpush.bf16.msra.mxu0 %v633
  %1061 = vmatpush.bf16.msra.mxu0 %v623
  %1062 = vmatpush.bf16.msra.mxu0 %v613
  %1063 = vmatmul.bf16.gmra.mxu0 %v775
  %v1064 = vpop.f32.mrf.mxu0
  %v1065 = vadd.f32 %v1052, %v1064
  %v1066 = vpop.f32.mrf.mxu0
  %1067 = vdwg.mxu0
  %v1068 = vsel %vm777, %v831, 0.0
  %v1069 = vsel %vm777, %v857, 0.0
  %v1070 = vadd.f32 %v1068, %v1069
  %v1071 = vsel %vm777, %v883, 0.0
  %v1072 = vadd.f32 %v1070, %v1071
  %v1073 = vsel %vm777, %v909, 0.0
  %v1074 = vadd.f32 %v1072, %v1073
  %v1075 = vsel %vm777, %v935, 0.0
  %v1076 = vadd.f32 %v1074, %v1075
  %v1077 = vsel %vm777, %v961, 0.0
  %v1078 = vadd.f32 %v1076, %v1077
  %v1079 = vsel %vm777, %v987, 0.0
  %v1080 = vadd.f32 %v1078, %v1079
  %v1081 = vsel %vm777, %v1013, 0.0
  %v1082 = vadd.f32 %v1080, %v1081
  %v1083 = vsel %vm777, %v1039, 0.0
  %v1084 = vadd.f32 %v1082, %v1083
  %vm1085 = vcmask 27648
  %v1086 = vsel %vm1085, %v1065, 0.0
  %v1087 = vadd.f32 %v1084, %v1086
  %1088 = vadd.xlane.f32.xlu0 %v1087
  %v1089 = vpop.xlane.xlu0 %1088
  %v1090 = vrcp.pop 1156.0
  %v1091 = vmul.f32 1156.0, %v1090
  %v1092 = vsub.f32 1.0, %v1091
  %v1093 = vmul.f32 %v1090, %v1092
  %v1094 = vadd.f32 %v1090, %v1093
  %vm1095 = vweird.f32 %v1090
  %v1096 = vsel %vm1095, %v1090, %v1094
  %v1097 = vmul.f32 %v1089, %v1096
  %v1098 = vsub.f32 %v831, %v1097
  %v1099 = vsub.f32 %v857, %v1097
  %v1100 = vsub.f32 %v883, %v1097
  %v1101 = vsub.f32 %v909, %v1097
  %v1102 = vsub.f32 %v935, %v1097
  %v1103 = vsub.f32 %v961, %v1097
  %v1104 = vsub.f32 %v987, %v1097
  %v1105 = vsub.f32 %v1013, %v1097
  %v1106 = vsub.f32 %v1039, %v1097
  %v1107 = vsub.f32 %v1065, %v1097
  %v1108 = vmul.f32 %v1098, %v1098
  %v1109 = vmul.f32 %v1099, %v1099
  %v1110 = vmul.f32 %v1100, %v1100
  %v1111 = vmul.f32 %v1101, %v1101
  %v1112 = vmul.f32 %v1102, %v1102
  %v1113 = vmul.f32 %v1103, %v1103
  %v1114 = vmul.f32 %v1104, %v1104
  %v1115 = vmul.f32 %v1105, %v1105
  %v1116 = vmul.f32 %v1106, %v1106
  %v1117 = vmul.f32 %v1107, %v1107
  %v1118 = vsel %vm777, %v1108, 0.0
  %v1119 = vsel %vm777, %v1109, 0.0
  %v1120 = vadd.f32 %v1118, %v1119
  %v1121 = vsel %vm777, %v1110, 0.0
  %v1122 = vadd.f32 %v1120, %v1121
  %v1123 = vsel %vm777, %v1111, 0.0
  %v1124 = vadd.f32 %v1122, %v1123
  %v1125 = vsel %vm777, %v1112, 0.0
  %v1126 = vadd.f32 %v1124, %v1125
  %v1127 = vsel %vm777, %v1113, 0.0
  %v1128 = vadd.f32 %v1126, %v1127
  %v1129 = vsel %vm777, %v1114, 0.0
  %v1130 = vadd.f32 %v1128, %v1129
  %v1131 = vsel %vm777, %v1115, 0.0
  %v1132 = vadd.f32 %v1130, %v1131
  %v1133 = vsel %vm777, %v1116, 0.0
  %v1134 = vadd.f32 %v1132, %v1133
  %v1135 = vsel %vm1085, %v1117, 0.0
  %v1136 = vadd.f32 %v1134, %v1135
  %1137 = vadd.xlane.f32.xlu0 %v1136
  %v1138 = vpop.xlane.xlu0 %1137
  %v1139 = vmul.f32 %v1138, %v1096
  %v1140 = vld [vmem:[%s2] sm:$0xf]
  %v1141 = vadd.f32 %v1139, 1e-05
  %v1142 = vrsqrt.pop %v1141
  %v1143 = vmul.f32 %v1142, %v1141
  %v1144 = vmul.f32 %v1143, %v1142
  %v1145 = vmul.f32 0.5, %v1144
  %v1146 = vsub.f32 1.5, %v1145
  %v1147 = vmul.f32 %v1142, %v1146
  %vm1148 = vweird.f32 %v1141
  %vm1149 = vweird.f32 %v1142
  %vm1150 = vmor %vm1148, %vm1149
  %v1151 = vsel %vm1150, %v1142, %v1147
  %v1152 = vmul.f32 %v1140, %v1151
  %v1153 = vld [vmem:[%s3] sm:$0xf]
  %v1154 = vmul.f32 %v1097, %v1152
  %v1155 = vsub.f32 %v1153, %v1154
  %1157 = vset.pattern.permute.xlu0 0
  %1158 = vperm.xlu0 %1157, %v1152
  %v1159 = vpop.permute.xlu0 %1158
  %v1161 = vmul.f32 %v831, %v1159
  %v1162 = vmul.f32 %v857, %v1159
  %v1163 = vmul.f32 %v883, %v1159
  %v1164 = vmul.f32 %v909, %v1159
  %v1165 = vmul.f32 %v935, %v1159
  %v1166 = vmul.f32 %v961, %v1159
  %v1167 = vmul.f32 %v987, %v1159
  %v1168 = vmul.f32 %v1013, %v1159
  %v1169 = vmul.f32 %v1039, %v1159
  %v1170 = vmul.f32 %v1065, %v1159
  %1172 = vset.pattern.permute.xlu0 0
  %1173 = vperm.xlu0 %1172, %v1155
  %v1174 = vpop.permute.xlu0 %1173
  %v1176 = vadd.f32 %v1161, %v1174
  %v1177 = vadd.f32 %v1162, %v1174
  %v1178 = vadd.f32 %v1163, %v1174
  %v1179 = vadd.f32 %v1164, %v1174
  %v1180 = vadd.f32 %v1165, %v1174
  %v1181 = vadd.f32 %v1166, %v1174
  %v1182 = vadd.f32 %v1167, %v1174
  %v1183 = vadd.f32 %v1168, %v1174
  %v1184 = vadd.f32 %v1169, %v1174
  %v1185 = vadd.f32 %v1170, %v1174
  %v1186 = vmax.f32 %v1176, 0.0
  %v1187 = vmax.f32 %v1177, 0.0
  %v1188 = vmax.f32 %v1178, 0.0
  %v1189 = vmax.f32 %v1179, 0.0
  %v1190 = vmax.f32 %v1180, 0.0
  %v1191 = vmax.f32 %v1181, 0.0
  %v1192 = vmax.f32 %v1182, 0.0
  %v1193 = vmax.f32 %v1183, 0.0
  %v1194 = vmax.f32 %v1184, 0.0
  %v1195 = vmax.f32 %v1185, 0.0
  %v1206 = vrot.slane %v1187, 4
  %v1207 = vrot.slane %v1189, 4
  %v1208 = vrot.slane %v1191, 4
  %v1209 = vrot.slane %v1193, 4
  %v1210 = vrot.slane %v1195, 4
  %v1211 = vsel %vm777, %v1186, %v1206
  %v1212 = vsel %vm777, %v1188, %v1207
  %v1213 = vsel %vm777, %v1190, %v1208
  %v1214 = vsel %vm777, %v1192, %v1209
  %v1215 = vsel %vm777, %v1194, %v1210
  %1221 = vst [vmem:[%s4] sm:$0xff] %v1211
  %1222 = vst [vmem:[%s4 + $0x8] sm:$0xff] %v1212
  %1223 = vst [vmem:[%s4 + $0x10] sm:$0xff] %v1213
  %1224 = vst [vmem:[%s4 + $0x18] sm:$0xff] %v1214
  %vm1225 = vcmask 31748
  %vm1226 = vmor %vm1225, %vm777
  %1227 = vst.msk [vmem:[%s4 + $0x20] sm:$0xff] %vm1226, %v1215
  // Predicated region
  $region18: #{generator_forward.6} parent=0 // pred_check
    _
  $region19: #{generator_forward.6} parent=0 // pred_check_branch
    %1229 = sbr.rel (0) target = $region21
  $region20: #{generator_forward.6} parent=0 // pred_region
    _
  $region21: #{generator_forward.6} parent=0 // pred_fallthru
    _
  // Predicated region
  $region22: #{generator_forward.6} parent=0 // pred_check
    _
  $region23: #{generator_forward.6} parent=0 // pred_check_branch
    %1231 = sbr.rel (0) target = $region25
  $region24: #{generator_forward.6} parent=0 // pred_region
    _
  $region25: #{generator_forward.6} parent=0 // pred_fallthru
    _

// kernel: generator_forward.7
$region0: #{generator_forward.7}
  #allocation0 [shape = 'u32[]', space=smem, size = 0x4, offset = 0x4, fixed_abs, tag = 'smem constant byte address 0x4 - core index']
  #allocation1 [shape = 'u32[72,128]{1,0:T(1,128)}', space=vmem, size = 0x9000, scoped, tag = 'internal scratch']
  %s0 = inlined_call_operand.vmem [shape: bf16[3,100], index: 0, kind: input, shape index: {}]
  %s1 = inlined_call_operand.vmem [shape: bf16[100,4356], index: 1, kind: input, shape index: {}]
  %s2 = inlined_call_operand.vmem [shape: f32[3,1], index: 2, kind: input, shape index: {}]
  %s3 = inlined_call_operand.vmem [shape: f32[3,4356], index: 3, kind: output, shape index: {}]
  %s4 = sld [smem:[#allocation0]]
  $region22: #{generator_forward.7} parent=0
    _
  %s6 = ssub.s32 1, %s4
  %s7 = scalar_select 0, %s6, %s4
  // Predicated region
  $region2: #{generator_forward.7} parent=0 // pred_check
    _
  $region3: #{generator_forward.7} parent=0 // pred_check_branch
    %9 = sbr.rel (0) target = $region5
  $region4: #{generator_forward.7} parent=0 // pred_region
    _
  $region5: #{generator_forward.7} parent=0 // pred_fallthru
    _
  // Predicated region
  $region6: #{generator_forward.7} parent=0 // pred_check
    _
  $region7: #{generator_forward.7} parent=0 // pred_check_branch
    %11 = sbr.rel (0) target = $region9
  $region8: #{generator_forward.7} parent=0 // pred_region
    _
  $region9: #{generator_forward.7} parent=0 // pred_fallthru
    _
  // Predicated region
  $region10: #{generator_forward.7} parent=0 // pred_check
    _
  $region11: #{generator_forward.7} parent=0 // pred_check_branch
    %13 = sbr.rel (0) target = $region13
  $region12: #{generator_forward.7} parent=0 // pred_region
    _
  $region13: #{generator_forward.7} parent=0 // pred_fallthru
    _
  %v15 = vld [vmem:[%s0] sm:$0x3]
  %v16 = vld [vmem:[%s1] sm:$0xff]
  %v17 = vld [vmem:[%s1 + $0x8] sm:$0xff]
  %v18 = vld [vmem:[%s1 + $0x10] sm:$0xff]
  %v19 = vld [vmem:[%s1 + $0x18] sm:$0xff]
  %v20 = vld [vmem:[%s1 + $0x20] sm:$0xff]
  %v21 = vld [vmem:[%s1 + $0x28] sm:$0xff]
  %v22 = vld [vmem:[%s1 + $0x30] sm:$0xff]
  %v23 = vld [vmem:[%s1 + $0x38] sm:$0xff]
  %v24 = vld [vmem:[%s1 + $0x40] sm:$0xff]
  %v25 = vld [vmem:[%s1 + $0x48] sm:$0xff]
  %v26 = vld [vmem:[%s1 + $0x50] sm:$0xff]
  %v27 = vld [vmem:[%s1 + $0x58] sm:$0xff]
  %v28 = vld [vmem:[%s1 + $0x60] sm:$0xff]
  %v29 = vld [vmem:[%s1 + $0x68] sm:$0xff]
  %v30 = vld [vmem:[%s1 + $0x70] sm:$0xff]
  %v31 = vld [vmem:[%s1 + $0x78] sm:$0xff]
  %v32 = vld [vmem:[%s1 + $0x80] sm:$0xff]
  %v33 = vld [vmem:[%s1 + $0x88] sm:$0xf]
  %v34 = vld [vmem:[%s1 + $0x8c] sm:$0xff]
  %v35 = vld [vmem:[%s1 + $0x94] sm:$0xff]
  %v36 = vld [vmem:[%s1 + $0x9c] sm:$0xff]
  %v37 = vld [vmem:[%s1 + $0xa4] sm:$0xff]
  %v38 = vld [vmem:[%s1 + $0xac] sm:$0xff]
  %v39 = vld [vmem:[%s1 + $0xb4] sm:$0xff]
  %v40 = vld [vmem:[%s1 + $0xbc] sm:$0xff]
  %v41 = vld [vmem:[%s1 + $0xc4] sm:$0xff]
  %v42 = vld [vmem:[%s1 + $0xcc] sm:$0xff]
  %v43 = vld [vmem:[%s1 + $0xd4] sm:$0xff]
  %v44 = vld [vmem:[%s1 + $0xdc] sm:$0xff]
  %v45 = vld [vmem:[%s1 + $0xe4] sm:$0xff]
  %v46 = vld [vmem:[%s1 + $0xec] sm:$0xff]
  %v47 = vld [vmem:[%s1 + $0xf4] sm:$0xff]
  %v48 = vld [vmem:[%s1 + $0xfc] sm:$0xff]
  %v49 = vld [vmem:[%s1 + $0x104] sm:$0xff]
  %v50 = vld [vmem:[%s1 + $0x10c] sm:$0xff]
  %v51 = vld [vmem:[%s1 + $0x114] sm:$0xf]
  %v52 = vld [vmem:[%s1 + $0x118] sm:$0xff]
  %v53 = vld [vmem:[%s1 + $0x120] sm:$0xff]
  %v54 = vld [vmem:[%s1 + $0x128] sm:$0xff]
  %v55 = vld [vmem:[%s1 + $0x130] sm:$0xff]
  %v56 = vld [vmem:[%s1 + $0x138] sm:$0xff]
  %v57 = vld [vmem:[%s1 + $0x140] sm:$0xff]
  %v58 = vld [vmem:[%s1 + $0x148] sm:$0xff]
  %v59 = vld [vmem:[%s1 + $0x150] sm:$0xff]
  %v60 = vld [vmem:[%s1 + $0x158] sm:$0xff]
  %v61 = vld [vmem:[%s1 + $0x160] sm:$0xff]
  %v62 = vld [vmem:[%s1 + $0x168] sm:$0xff]
  %v63 = vld [vmem:[%s1 + $0x170] sm:$0xff]
  %v64 = vld [vmem:[%s1 + $0x178] sm:$0xff]
  %v65 = vld [vmem:[%s1 + $0x180] sm:$0xff]
  %v66 = vld [vmem:[%s1 + $0x188] sm:$0xff]
  %v67 = vld [vmem:[%s1 + $0x190] sm:$0xff]
  %v68 = vld [vmem:[%s1 + $0x198] sm:$0xff]
  %v69 = vld [vmem:[%s1 + $0x1a0] sm:$0xf]
  %v70 = vld [vmem:[%s1 + $0x1a4] sm:$0xff]
  %v71 = vld [vmem:[%s1 + $0x1ac] sm:$0xff]
  %v72 = vld [vmem:[%s1 + $0x1b4] sm:$0xff]
  %v73 = vld [vmem:[%s1 + $0x1bc] sm:$0xff]
  %v74 = vld [vmem:[%s1 + $0x1c4] sm:$0xff]
  %v75 = vld [vmem:[%s1 + $0x1cc] sm:$0xff]
  %v76 = vld [vmem:[%s1 + $0x1d4] sm:$0xff]
  %v77 = vld [vmem:[%s1 + $0x1dc] sm:$0xff]
  %v78 = vld [vmem:[%s1 + $0x1e4] sm:$0xff]
  %v79 = vld [vmem:[%s1 + $0x1ec] sm:$0xff]
  %v80 = vld [vmem:[%s1 + $0x1f4] sm:$0xff]
  %v81 = vld [vmem:[%s1 + $0x1fc] sm:$0xff]
  %v82 = vld [vmem:[%s1 + $0x204] sm:$0xff]
  %v83 = vld [vmem:[%s1 + $0x20c] sm:$0xff]
  %v84 = vld [vmem:[%s1 + $0x214] sm:$0xff]
  %v85 = vld [vmem:[%s1 + $0x21c] sm:$0xff]
  %v86 = vld [vmem:[%s1 + $0x224] sm:$0xff]
  %v87 = vld [vmem:[%s1 + $0x22c] sm:$0xf]
  %v88 = vld [vmem:[%s1 + $0x230] sm:$0xff]
  %v89 = vld [vmem:[%s1 + $0x238] sm:$0xff]
  %v90 = vld [vmem:[%s1 + $0x240] sm:$0xff]
  %v91 = vld [vmem:[%s1 + $0x248] sm:$0xff]
  %v92 = vld [vmem:[%s1 + $0x250] sm:$0xff]
  %v93 = vld [vmem:[%s1 + $0x258] sm:$0xff]
  %v94 = vld [vmem:[%s1 + $0x260] sm:$0xff]
  %v95 = vld [vmem:[%s1 + $0x268] sm:$0xff]
  %v96 = vld [vmem:[%s1 + $0x270] sm:$0xff]
  %v97 = vld [vmem:[%s1 + $0x278] sm:$0xff]
  %v98 = vld [vmem:[%s1 + $0x280] sm:$0xff]
  %v99 = vld [vmem:[%s1 + $0x288] sm:$0xff]
  %v100 = vld [vmem:[%s1 + $0x290] sm:$0xff]
  %v101 = vld [vmem:[%s1 + $0x298] sm:$0xff]
  %v102 = vld [vmem:[%s1 + $0x2a0] sm:$0xff]
  %v103 = vld [vmem:[%s1 + $0x2a8] sm:$0xff]
  %v104 = vld [vmem:[%s1 + $0x2b0] sm:$0xff]
  %v105 = vld [vmem:[%s1 + $0x2b8] sm:$0xf]
  %v106 = vld [vmem:[%s1 + $0x2bc] sm:$0xff]
  %v107 = vld [vmem:[%s1 + $0x2c4] sm:$0xff]
  %v108 = vld [vmem:[%s1 + $0x2cc] sm:$0xff]
  %v109 = vld [vmem:[%s1 + $0x2d4] sm:$0xff]
  %v110 = vld [vmem:[%s1 + $0x2dc] sm:$0xff]
  %v111 = vld [vmem:[%s1 + $0x2e4] sm:$0xff]
  %v112 = vld [vmem:[%s1 + $0x2ec] sm:$0xff]
  %v113 = vld [vmem:[%s1 + $0x2f4] sm:$0xff]
  %v114 = vld [vmem:[%s1 + $0x2fc] sm:$0xff]
  %v115 = vld [vmem:[%s1 + $0x304] sm:$0xff]
  %v116 = vld [vmem:[%s1 + $0x30c] sm:$0xff]
  %v117 = vld [vmem:[%s1 + $0x314] sm:$0xff]
  %v118 = vld [vmem:[%s1 + $0x31c] sm:$0xff]
  %v119 = vld [vmem:[%s1 + $0x324] sm:$0xff]
  %v120 = vld [vmem:[%s1 + $0x32c] sm:$0xff]
  %v121 = vld [vmem:[%s1 + $0x334] sm:$0xff]
  %v122 = vld [vmem:[%s1 + $0x33c] sm:$0xff]
  %v123 = vld [vmem:[%s1 + $0x344] sm:$0xf]
  %v124 = vld [vmem:[%s1 + $0x348] sm:$0xff]
  %v125 = vld [vmem:[%s1 + $0x350] sm:$0xff]
  %v126 = vld [vmem:[%s1 + $0x358] sm:$0xff]
  %v127 = vld [vmem:[%s1 + $0x360] sm:$0xff]
  %v128 = vld [vmem:[%s1 + $0x368] sm:$0xff]
  %v129 = vld [vmem:[%s1 + $0x370] sm:$0xff]
  %v130 = vld [vmem:[%s1 + $0x378] sm:$0xff]
  %v131 = vld [vmem:[%s1 + $0x380] sm:$0xff]
  %v132 = vld [vmem:[%s1 + $0x388] sm:$0xff]
  %v133 = vld [vmem:[%s1 + $0x390] sm:$0xff]
  %v134 = vld [vmem:[%s1 + $0x398] sm:$0xff]
  %v135 = vld [vmem:[%s1 + $0x3a0] sm:$0xff]
  %v136 = vld [vmem:[%s1 + $0x3a8] sm:$0xff]
  %v137 = vld [vmem:[%s1 + $0x3b0] sm:$0xff]
  %v138 = vld [vmem:[%s1 + $0x3b8] sm:$0xff]
  %v139 = vld [vmem:[%s1 + $0x3c0] sm:$0xff]
  %v140 = vld [vmem:[%s1 + $0x3c8] sm:$0xff]
  %v141 = vld [vmem:[%s1 + $0x3d0] sm:$0xf]
  %v142 = vld [vmem:[%s1 + $0x3d4] sm:$0xff]
  %v143 = vld [vmem:[%s1 + $0x3dc] sm:$0xff]
  %v144 = vld [vmem:[%s1 + $0x3e4] sm:$0xff]
  %v145 = vld [vmem:[%s1 + $0x3ec] sm:$0xff]
  %v146 = vld [vmem:[%s1 + $0x3f4] sm:$0xff]
  %v147 = vld [vmem:[%s1 + $0x3fc] sm:$0xff]
  %v148 = vld [vmem:[%s1 + $0x404] sm:$0xff]
  %v149 = vld [vmem:[%s1 + $0x40c] sm:$0xff]
  %v150 = vld [vmem:[%s1 + $0x414] sm:$0xff]
  %v151 = vld [vmem:[%s1 + $0x41c] sm:$0xff]
  %v152 = vld [vmem:[%s1 + $0x424] sm:$0xff]
  %v153 = vld [vmem:[%s1 + $0x42c] sm:$0xff]
  %v154 = vld [vmem:[%s1 + $0x434] sm:$0xff]
  %v155 = vld [vmem:[%s1 + $0x43c] sm:$0xff]
  %v156 = vld [vmem:[%s1 + $0x444] sm:$0xff]
  %v157 = vld [vmem:[%s1 + $0x44c] sm:$0xff]
  %v158 = vld [vmem:[%s1 + $0x454] sm:$0xff]
  %v159 = vld [vmem:[%s1 + $0x45c] sm:$0xf]
  %v160 = vld [vmem:[%s1 + $0x460] sm:$0xff]
  %v161 = vld [vmem:[%s1 + $0x468] sm:$0xff]
  %v162 = vld [vmem:[%s1 + $0x470] sm:$0xff]
  %v163 = vld [vmem:[%s1 + $0x478] sm:$0xff]
  %v164 = vld [vmem:[%s1 + $0x480] sm:$0xff]
  %v165 = vld [vmem:[%s1 + $0x488] sm:$0xff]
  %v166 = vld [vmem:[%s1 + $0x490] sm:$0xff]
  %v167 = vld [vmem:[%s1 + $0x498] sm:$0xff]
  %v168 = vld [vmem:[%s1 + $0x4a0] sm:$0xff]
  %v169 = vld [vmem:[%s1 + $0x4a8] sm:$0xff]
  %v170 = vld [vmem:[%s1 + $0x4b0] sm:$0xff]
  %v171 = vld [vmem:[%s1 + $0x4b8] sm:$0xff]
  %v172 = vld [vmem:[%s1 + $0x4c0] sm:$0xff]
  %v173 = vld [vmem:[%s1 + $0x4c8] sm:$0xff]
  %v174 = vld [vmem:[%s1 + $0x4d0] sm:$0xff]
  %v175 = vld [vmem:[%s1 + $0x4d8] sm:$0xff]
  %v176 = vld [vmem:[%s1 + $0x4e0] sm:$0xff]
  %v177 = vld [vmem:[%s1 + $0x4e8] sm:$0xf]
  %v178 = vld [vmem:[%s1 + $0x4ec] sm:$0xff]
  %v179 = vld [vmem:[%s1 + $0x4f4] sm:$0xff]
  %v180 = vld [vmem:[%s1 + $0x4fc] sm:$0xff]
  %v181 = vld [vmem:[%s1 + $0x504] sm:$0xff]
  %v182 = vld [vmem:[%s1 + $0x50c] sm:$0xff]
  %v183 = vld [vmem:[%s1 + $0x514] sm:$0xff]
  %v184 = vld [vmem:[%s1 + $0x51c] sm:$0xff]
  %v185 = vld [vmem:[%s1 + $0x524] sm:$0xff]
  %v186 = vld [vmem:[%s1 + $0x52c] sm:$0xff]
  %v187 = vld [vmem:[%s1 + $0x534] sm:$0xff]
  %v188 = vld [vmem:[%s1 + $0x53c] sm:$0xff]
  %v189 = vld [vmem:[%s1 + $0x544] sm:$0xff]
  %v190 = vld [vmem:[%s1 + $0x54c] sm:$0xff]
  %v191 = vld [vmem:[%s1 + $0x554] sm:$0xff]
  %v192 = vld [vmem:[%s1 + $0x55c] sm:$0xff]
  %v193 = vld [vmem:[%s1 + $0x564] sm:$0xff]
  %v194 = vld [vmem:[%s1 + $0x56c] sm:$0xff]
  %v195 = vld [vmem:[%s1 + $0x574] sm:$0xf]
  %v196 = vld [vmem:[%s1 + $0x578] sm:$0xff]
  %v197 = vld [vmem:[%s1 + $0x580] sm:$0xff]
  %v198 = vld [vmem:[%s1 + $0x588] sm:$0xff]
  %v199 = vld [vmem:[%s1 + $0x590] sm:$0xff]
  %v200 = vld [vmem:[%s1 + $0x598] sm:$0xff]
  %v201 = vld [vmem:[%s1 + $0x5a0] sm:$0xff]
  %v202 = vld [vmem:[%s1 + $0x5a8] sm:$0xff]
  %v203 = vld [vmem:[%s1 + $0x5b0] sm:$0xff]
  %v204 = vld [vmem:[%s1 + $0x5b8] sm:$0xff]
  %v205 = vld [vmem:[%s1 + $0x5c0] sm:$0xff]
  %v206 = vld [vmem:[%s1 + $0x5c8] sm:$0xff]
  %v207 = vld [vmem:[%s1 + $0x5d0] sm:$0xff]
  %v208 = vld [vmem:[%s1 + $0x5d8] sm:$0xff]
  %v209 = vld [vmem:[%s1 + $0x5e0] sm:$0xff]
  %v210 = vld [vmem:[%s1 + $0x5e8] sm:$0xff]
  %v211 = vld [vmem:[%s1 + $0x5f0] sm:$0xff]
  %v212 = vld [vmem:[%s1 + $0x5f8] sm:$0xff]
  %v213 = vld [vmem:[%s1 + $0x600] sm:$0xf]
  %v214 = vld [vmem:[%s1 + $0x604] sm:$0xff]
  %v215 = vld [vmem:[%s1 + $0x60c] sm:$0xff]
  %v216 = vld [vmem:[%s1 + $0x614] sm:$0xff]
  %v217 = vld [vmem:[%s1 + $0x61c] sm:$0xff]
  %v218 = vld [vmem:[%s1 + $0x624] sm:$0xff]
  %v219 = vld [vmem:[%s1 + $0x62c] sm:$0xff]
  %v220 = vld [vmem:[%s1 + $0x634] sm:$0xff]
  %v221 = vld [vmem:[%s1 + $0x63c] sm:$0xff]
  %v222 = vld [vmem:[%s1 + $0x644] sm:$0xff]
  %v223 = vld [vmem:[%s1 + $0x64c] sm:$0xff]
  %v224 = vld [vmem:[%s1 + $0x654] sm:$0xff]
  %v225 = vld [vmem:[%s1 + $0x65c] sm:$0xff]
  %v226 = vld [vmem:[%s1 + $0x664] sm:$0xff]
  %v227 = vld [vmem:[%s1 + $0x66c] sm:$0xff]
  %v228 = vld [vmem:[%s1 + $0x674] sm:$0xff]
  %v229 = vld [vmem:[%s1 + $0x67c] sm:$0xff]
  %v230 = vld [vmem:[%s1 + $0x684] sm:$0xff]
  %v231 = vld [vmem:[%s1 + $0x68c] sm:$0xf]
  %v232 = vld [vmem:[%s1 + $0x690] sm:$0x33]
  %v233 = vld [vmem:[%s1 + $0x698] sm:$0x33]
  %v234 = vld [vmem:[%s1 + $0x6a0] sm:$0x33]
  %v235 = vld [vmem:[%s1 + $0x6a8] sm:$0x33]
  %v236 = vld [vmem:[%s1 + $0x6b0] sm:$0x33]
  %v237 = vld [vmem:[%s1 + $0x6b8] sm:$0x33]
  %v238 = vld [vmem:[%s1 + $0x6c0] sm:$0x33]
  %v239 = vld [vmem:[%s1 + $0x6c8] sm:$0x33]
  %v240 = vld [vmem:[%s1 + $0x6d0] sm:$0x33]
  %v241 = vld [vmem:[%s1 + $0x6d8] sm:$0x33]
  %v242 = vld [vmem:[%s1 + $0x6e0] sm:$0x33]
  %v243 = vld [vmem:[%s1 + $0x6e8] sm:$0x33]
  %v244 = vld [vmem:[%s1 + $0x6f0] sm:$0x33]
  %v245 = vld [vmem:[%s1 + $0x6f8] sm:$0x33]
  %v246 = vld [vmem:[%s1 + $0x700] sm:$0x33]
  %v247 = vld [vmem:[%s1 + $0x708] sm:$0x33]
  %v248 = vld [vmem:[%s1 + $0x710] sm:$0x33]
  %v249 = vld [vmem:[%s1 + $0x718] sm:$0x3]
  %v250 = vld [vmem:[%s2] sm:$0x7]
  %252 = vset.pattern.permute.xlu0 0
  %253 = vperm.xlu0 %252, %v250
  %v254 = vpop.permute.xlu0 %253
  %v490 = vunpack.c.l.b16 %v16
  %v491 = vunpack.c.h.b16 %v16
  %v492 = vunpack.c.l.b16 %v17
  %v493 = vunpack.c.h.b16 %v17
  %v494 = vunpack.c.l.b16 %v18
  %v495 = vunpack.c.h.b16 %v18
  %v496 = vunpack.c.l.b16 %v19
  %v497 = vunpack.c.h.b16 %v19
  %v498 = vunpack.c.l.b16 %v20
  %v499 = vunpack.c.h.b16 %v20
  %v500 = vunpack.c.l.b16 %v21
  %v501 = vunpack.c.h.b16 %v21
  %v502 = vunpack.c.l.b16 %v22
  %v503 = vunpack.c.h.b16 %v22
  %v504 = vunpack.c.l.b16 %v23
  %v505 = vunpack.c.h.b16 %v23
  %v506 = vunpack.c.l.b16 %v24
  %v507 = vunpack.c.h.b16 %v24
  %v508 = vunpack.c.l.b16 %v25
  %v509 = vunpack.c.h.b16 %v25
  %v510 = vunpack.c.l.b16 %v26
  %v511 = vunpack.c.h.b16 %v26
  %v512 = vunpack.c.l.b16 %v27
  %v513 = vunpack.c.h.b16 %v27
  %v514 = vunpack.c.l.b16 %v28
  %v515 = vunpack.c.h.b16 %v28
  %v516 = vunpack.c.l.b16 %v29
  %v517 = vunpack.c.h.b16 %v29
  %v518 = vunpack.c.l.b16 %v30
  %v519 = vunpack.c.h.b16 %v30
  %v520 = vunpack.c.l.b16 %v31
  %v521 = vunpack.c.h.b16 %v31
  %v522 = vunpack.c.l.b16 %v32
  %v523 = vunpack.c.h.b16 %v32
  %v524 = vunpack.c.l.b16 %v33
  %v525 = vunpack.c.l.b16 %v34
  %v526 = vunpack.c.h.b16 %v34
  %v527 = vunpack.c.l.b16 %v35
  %v528 = vunpack.c.h.b16 %v35
  %v529 = vunpack.c.l.b16 %v36
  %v530 = vunpack.c.h.b16 %v36
  %v531 = vunpack.c.l.b16 %v37
  %v532 = vunpack.c.h.b16 %v37
  %v533 = vunpack.c.l.b16 %v38
  %v534 = vunpack.c.h.b16 %v38
  %v535 = vunpack.c.l.b16 %v39
  %v536 = vunpack.c.h.b16 %v39
  %v537 = vunpack.c.l.b16 %v40
  %v538 = vunpack.c.h.b16 %v40
  %v539 = vunpack.c.l.b16 %v41
  %v540 = vunpack.c.h.b16 %v41
  %v541 = vunpack.c.l.b16 %v42
  %v542 = vunpack.c.h.b16 %v42
  %v543 = vunpack.c.l.b16 %v43
  %v544 = vunpack.c.h.b16 %v43
  %v545 = vunpack.c.l.b16 %v44
  %v546 = vunpack.c.h.b16 %v44
  %v547 = vunpack.c.l.b16 %v45
  %v548 = vunpack.c.h.b16 %v45
  %v549 = vunpack.c.l.b16 %v46
  %v550 = vunpack.c.h.b16 %v46
  %v551 = vunpack.c.l.b16 %v47
  %v552 = vunpack.c.h.b16 %v47
  %v553 = vunpack.c.l.b16 %v48
  %v554 = vunpack.c.h.b16 %v48
  %v555 = vunpack.c.l.b16 %v49
  %v556 = vunpack.c.h.b16 %v49
  %v557 = vunpack.c.l.b16 %v50
  %v558 = vunpack.c.h.b16 %v50
  %v559 = vunpack.c.l.b16 %v51
  %v560 = vunpack.c.l.b16 %v52
  %v561 = vunpack.c.h.b16 %v52
  %v562 = vunpack.c.l.b16 %v53
  %v563 = vunpack.c.h.b16 %v53
  %v564 = vunpack.c.l.b16 %v54
  %v565 = vunpack.c.h.b16 %v54
  %v566 = vunpack.c.l.b16 %v55
  %v567 = vunpack.c.h.b16 %v55
  %v568 = vunpack.c.l.b16 %v56
  %v569 = vunpack.c.h.b16 %v56
  %v570 = vunpack.c.l.b16 %v57
  %v571 = vunpack.c.h.b16 %v57
  %v572 = vunpack.c.l.b16 %v58
  %v573 = vunpack.c.h.b16 %v58
  %v574 = vunpack.c.l.b16 %v59
  %v575 = vunpack.c.h.b16 %v59
  %v576 = vunpack.c.l.b16 %v60
  %v577 = vunpack.c.h.b16 %v60
  %v578 = vunpack.c.l.b16 %v61
  %v579 = vunpack.c.h.b16 %v61
  %v580 = vunpack.c.l.b16 %v62
  %v581 = vunpack.c.h.b16 %v62
  %v582 = vunpack.c.l.b16 %v63
  %v583 = vunpack.c.h.b16 %v63
  %v584 = vunpack.c.l.b16 %v64
  %v585 = vunpack.c.h.b16 %v64
  %v586 = vunpack.c.l.b16 %v65
  %v587 = vunpack.c.h.b16 %v65
  %v588 = vunpack.c.l.b16 %v66
  %v589 = vunpack.c.h.b16 %v66
  %v590 = vunpack.c.l.b16 %v67
  %v591 = vunpack.c.h.b16 %v67
  %v592 = vunpack.c.l.b16 %v68
  %v593 = vunpack.c.h.b16 %v68
  %v594 = vunpack.c.l.b16 %v69
  %v595 = vunpack.c.l.b16 %v70
  %v596 = vunpack.c.h.b16 %v70
  %v597 = vunpack.c.l.b16 %v71
  %v598 = vunpack.c.h.b16 %v71
  %v599 = vunpack.c.l.b16 %v72
  %v600 = vunpack.c.h.b16 %v72
  %v601 = vunpack.c.l.b16 %v73
  %v602 = vunpack.c.h.b16 %v73
  %v603 = vunpack.c.l.b16 %v74
  %v604 = vunpack.c.h.b16 %v74
  %v605 = vunpack.c.l.b16 %v75
  %v606 = vunpack.c.h.b16 %v75
  %v607 = vunpack.c.l.b16 %v76
  %v608 = vunpack.c.h.b16 %v76
  %v609 = vunpack.c.l.b16 %v77
  %v610 = vunpack.c.h.b16 %v77
  %v611 = vunpack.c.l.b16 %v78
  %v612 = vunpack.c.h.b16 %v78
  %v613 = vunpack.c.l.b16 %v79
  %v614 = vunpack.c.h.b16 %v79
  %v615 = vunpack.c.l.b16 %v80
  %v616 = vunpack.c.h.b16 %v80
  %v617 = vunpack.c.l.b16 %v81
  %v618 = vunpack.c.h.b16 %v81
  %v619 = vunpack.c.l.b16 %v82
  %v620 = vunpack.c.h.b16 %v82
  %v621 = vunpack.c.l.b16 %v83
  %v622 = vunpack.c.h.b16 %v83
  %v623 = vunpack.c.l.b16 %v84
  %v624 = vunpack.c.h.b16 %v84
  %v625 = vunpack.c.l.b16 %v85
  %v626 = vunpack.c.h.b16 %v85
  %v627 = vunpack.c.l.b16 %v86
  %v628 = vunpack.c.h.b16 %v86
  %v629 = vunpack.c.l.b16 %v87
  %v630 = vunpack.c.l.b16 %v88
  %v631 = vunpack.c.h.b16 %v88
  %v632 = vunpack.c.l.b16 %v89
  %v633 = vunpack.c.h.b16 %v89
  %v634 = vunpack.c.l.b16 %v90
  %v635 = vunpack.c.h.b16 %v90
  %v636 = vunpack.c.l.b16 %v91
  %v637 = vunpack.c.h.b16 %v91
  %v638 = vunpack.c.l.b16 %v92
  %v639 = vunpack.c.h.b16 %v92
  %v640 = vunpack.c.l.b16 %v93
  %v641 = vunpack.c.h.b16 %v93
  %v642 = vunpack.c.l.b16 %v94
  %v643 = vunpack.c.h.b16 %v94
  %v644 = vunpack.c.l.b16 %v95
  %v645 = vunpack.c.h.b16 %v95
  %v646 = vunpack.c.l.b16 %v96
  %v647 = vunpack.c.h.b16 %v96
  %v648 = vunpack.c.l.b16 %v97
  %v649 = vunpack.c.h.b16 %v97
  %v650 = vunpack.c.l.b16 %v98
  %v651 = vunpack.c.h.b16 %v98
  %v652 = vunpack.c.l.b16 %v99
  %v653 = vunpack.c.h.b16 %v99
  %v654 = vunpack.c.l.b16 %v100
  %v655 = vunpack.c.h.b16 %v100
  %v656 = vunpack.c.l.b16 %v101
  %v657 = vunpack.c.h.b16 %v101
  %v658 = vunpack.c.l.b16 %v102
  %v659 = vunpack.c.h.b16 %v102
  %v660 = vunpack.c.l.b16 %v103
  %v661 = vunpack.c.h.b16 %v103
  %v662 = vunpack.c.l.b16 %v104
  %v663 = vunpack.c.h.b16 %v104
  %v664 = vunpack.c.l.b16 %v105
  %v665 = vunpack.c.l.b16 %v106
  %v666 = vunpack.c.h.b16 %v106
  %v667 = vunpack.c.l.b16 %v107
  %v668 = vunpack.c.h.b16 %v107
  %v669 = vunpack.c.l.b16 %v108
  %v670 = vunpack.c.h.b16 %v108
  %v671 = vunpack.c.l.b16 %v109
  %v672 = vunpack.c.h.b16 %v109
  %v673 = vunpack.c.l.b16 %v110
  %v674 = vunpack.c.h.b16 %v110
  %v675 = vunpack.c.l.b16 %v111
  %v676 = vunpack.c.h.b16 %v111
  %v677 = vunpack.c.l.b16 %v112
  %v678 = vunpack.c.h.b16 %v112
  %v679 = vunpack.c.l.b16 %v113
  %v680 = vunpack.c.h.b16 %v113
  %v681 = vunpack.c.l.b16 %v114
  %v682 = vunpack.c.h.b16 %v114
  %v683 = vunpack.c.l.b16 %v115
  %v684 = vunpack.c.h.b16 %v115
  %v685 = vunpack.c.l.b16 %v116
  %v686 = vunpack.c.h.b16 %v116
  %v687 = vunpack.c.l.b16 %v117
  %v688 = vunpack.c.h.b16 %v117
  %v689 = vunpack.c.l.b16 %v118
  %v690 = vunpack.c.h.b16 %v118
  %v691 = vunpack.c.l.b16 %v119
  %v692 = vunpack.c.h.b16 %v119
  %v693 = vunpack.c.l.b16 %v120
  %v694 = vunpack.c.h.b16 %v120
  %v695 = vunpack.c.l.b16 %v121
  %v696 = vunpack.c.h.b16 %v121
  %v697 = vunpack.c.l.b16 %v122
  %v698 = vunpack.c.h.b16 %v122
  %v699 = vunpack.c.l.b16 %v123
  %v700 = vunpack.c.l.b16 %v124
  %v701 = vunpack.c.h.b16 %v124
  %v702 = vunpack.c.l.b16 %v125
  %v703 = vunpack.c.h.b16 %v125
  %v704 = vunpack.c.l.b16 %v126
  %v705 = vunpack.c.h.b16 %v126
  %v706 = vunpack.c.l.b16 %v127
  %v707 = vunpack.c.h.b16 %v127
  %v708 = vunpack.c.l.b16 %v128
  %v709 = vunpack.c.h.b16 %v128
  %v710 = vunpack.c.l.b16 %v129
  %v711 = vunpack.c.h.b16 %v129
  %v712 = vunpack.c.l.b16 %v130
  %v713 = vunpack.c.h.b16 %v130
  %v714 = vunpack.c.l.b16 %v131
  %v715 = vunpack.c.h.b16 %v131
  %v716 = vunpack.c.l.b16 %v132
  %v717 = vunpack.c.h.b16 %v132
  %v718 = vunpack.c.l.b16 %v133
  %v719 = vunpack.c.h.b16 %v133
  %v720 = vunpack.c.l.b16 %v134
  %v721 = vunpack.c.h.b16 %v134
  %v722 = vunpack.c.l.b16 %v135
  %v723 = vunpack.c.h.b16 %v135
  %v724 = vunpack.c.l.b16 %v136
  %v725 = vunpack.c.h.b16 %v136
  %v726 = vunpack.c.l.b16 %v137
  %v727 = vunpack.c.h.b16 %v137
  %v728 = vunpack.c.l.b16 %v138
  %v729 = vunpack.c.h.b16 %v138
  %v730 = vunpack.c.l.b16 %v139
  %v731 = vunpack.c.h.b16 %v139
  %v732 = vunpack.c.l.b16 %v140
  %v733 = vunpack.c.h.b16 %v140
  %v734 = vunpack.c.l.b16 %v141
  %v735 = vunpack.c.l.b16 %v142
  %v736 = vunpack.c.h.b16 %v142
  %v737 = vunpack.c.l.b16 %v143
  %v738 = vunpack.c.h.b16 %v143
  %v739 = vunpack.c.l.b16 %v144
  %v740 = vunpack.c.h.b16 %v144
  %v741 = vunpack.c.l.b16 %v145
  %v742 = vunpack.c.h.b16 %v145
  %v743 = vunpack.c.l.b16 %v146
  %v744 = vunpack.c.h.b16 %v146
  %v745 = vunpack.c.l.b16 %v147
  %v746 = vunpack.c.h.b16 %v147
  %v747 = vunpack.c.l.b16 %v148
  %v748 = vunpack.c.h.b16 %v148
  %v749 = vunpack.c.l.b16 %v149
  %v750 = vunpack.c.h.b16 %v149
  %v751 = vunpack.c.l.b16 %v150
  %v752 = vunpack.c.h.b16 %v150
  %v753 = vunpack.c.l.b16 %v151
  %v754 = vunpack.c.h.b16 %v151
  %v755 = vunpack.c.l.b16 %v152
  %v756 = vunpack.c.h.b16 %v152
  %v757 = vunpack.c.l.b16 %v153
  %v758 = vunpack.c.h.b16 %v153
  %v759 = vunpack.c.l.b16 %v154
  %v760 = vunpack.c.h.b16 %v154
  %v761 = vunpack.c.l.b16 %v155
  %v762 = vunpack.c.h.b16 %v155
  %v763 = vunpack.c.l.b16 %v156
  %v764 = vunpack.c.h.b16 %v156
  %v765 = vunpack.c.l.b16 %v157
  %v766 = vunpack.c.h.b16 %v157
  %v767 = vunpack.c.l.b16 %v158
  %v768 = vunpack.c.h.b16 %v158
  %v769 = vunpack.c.l.b16 %v159
  %v770 = vunpack.c.l.b16 %v160
  %v771 = vunpack.c.h.b16 %v160
  %v772 = vunpack.c.l.b16 %v161
  %v773 = vunpack.c.h.b16 %v161
  %v774 = vunpack.c.l.b16 %v162
  %v775 = vunpack.c.h.b16 %v162
  %v776 = vunpack.c.l.b16 %v163
  %v777 = vunpack.c.h.b16 %v163
  %v778 = vunpack.c.l.b16 %v164
  %v779 = vunpack.c.h.b16 %v164
  %v780 = vunpack.c.l.b16 %v165
  %v781 = vunpack.c.h.b16 %v165
  %v782 = vunpack.c.l.b16 %v166
  %v783 = vunpack.c.h.b16 %v166
  %v784 = vunpack.c.l.b16 %v167
  %v785 = vunpack.c.h.b16 %v167
  %v786 = vunpack.c.l.b16 %v168
  %v787 = vunpack.c.h.b16 %v168
  %v788 = vunpack.c.l.b16 %v169
  %v789 = vunpack.c.h.b16 %v169
  %v790 = vunpack.c.l.b16 %v170
  %v791 = vunpack.c.h.b16 %v170
  %v792 = vunpack.c.l.b16 %v171
  %v793 = vunpack.c.h.b16 %v171
  %v794 = vunpack.c.l.b16 %v172
  %v795 = vunpack.c.h.b16 %v172
  %v796 = vunpack.c.l.b16 %v173
  %v797 = vunpack.c.h.b16 %v173
  %v798 = vunpack.c.l.b16 %v174
  %v799 = vunpack.c.h.b16 %v174
  %v800 = vunpack.c.l.b16 %v175
  %v801 = vunpack.c.h.b16 %v175
  %v802 = vunpack.c.l.b16 %v176
  %v803 = vunpack.c.h.b16 %v176
  %v804 = vunpack.c.l.b16 %v177
  %v805 = vunpack.c.l.b16 %v178
  %v806 = vunpack.c.h.b16 %v178
  %v807 = vunpack.c.l.b16 %v179
  %v808 = vunpack.c.h.b16 %v179
  %v809 = vunpack.c.l.b16 %v180
  %v810 = vunpack.c.h.b16 %v180
  %v811 = vunpack.c.l.b16 %v181
  %v812 = vunpack.c.h.b16 %v181
  %v813 = vunpack.c.l.b16 %v182
  %v814 = vunpack.c.h.b16 %v182
  %v815 = vunpack.c.l.b16 %v183
  %v816 = vunpack.c.h.b16 %v183
  %v817 = vunpack.c.l.b16 %v184
  %v818 = vunpack.c.h.b16 %v184
  %v819 = vunpack.c.l.b16 %v185
  %v820 = vunpack.c.h.b16 %v185
  %v821 = vunpack.c.l.b16 %v186
  %v822 = vunpack.c.h.b16 %v186
  %v823 = vunpack.c.l.b16 %v187
  %v824 = vunpack.c.h.b16 %v187
  %v825 = vunpack.c.l.b16 %v188
  %v826 = vunpack.c.h.b16 %v188
  %v827 = vunpack.c.l.b16 %v189
  %v828 = vunpack.c.h.b16 %v189
  %v829 = vunpack.c.l.b16 %v190
  %v830 = vunpack.c.h.b16 %v190
  %v831 = vunpack.c.l.b16 %v191
  %v832 = vunpack.c.h.b16 %v191
  %v833 = vunpack.c.l.b16 %v192
  %v834 = vunpack.c.h.b16 %v192
  %v835 = vunpack.c.l.b16 %v193
  %v836 = vunpack.c.h.b16 %v193
  %v837 = vunpack.c.l.b16 %v194
  %v838 = vunpack.c.h.b16 %v194
  %v839 = vunpack.c.l.b16 %v195
  %v840 = vunpack.c.l.b16 %v196
  %v841 = vunpack.c.h.b16 %v196
  %v842 = vunpack.c.l.b16 %v197
  %v843 = vunpack.c.h.b16 %v197
  %v844 = vunpack.c.l.b16 %v198
  %v845 = vunpack.c.h.b16 %v198
  %v846 = vunpack.c.l.b16 %v199
  %v847 = vunpack.c.h.b16 %v199
  %v848 = vunpack.c.l.b16 %v200
  %v849 = vunpack.c.h.b16 %v200
  %v850 = vunpack.c.l.b16 %v201
  %v851 = vunpack.c.h.b16 %v201
  %v852 = vunpack.c.l.b16 %v202
  %v853 = vunpack.c.h.b16 %v202
  %v854 = vunpack.c.l.b16 %v203
  %v855 = vunpack.c.h.b16 %v203
  %v856 = vunpack.c.l.b16 %v204
  %v857 = vunpack.c.h.b16 %v204
  %v858 = vunpack.c.l.b16 %v205
  %v859 = vunpack.c.h.b16 %v205
  %v860 = vunpack.c.l.b16 %v206
  %v861 = vunpack.c.h.b16 %v206
  %v862 = vunpack.c.l.b16 %v207
  %v863 = vunpack.c.h.b16 %v207
  %v864 = vunpack.c.l.b16 %v208
  %v865 = vunpack.c.h.b16 %v208
  %v866 = vunpack.c.l.b16 %v209
  %v867 = vunpack.c.h.b16 %v209
  %v868 = vunpack.c.l.b16 %v210
  %v869 = vunpack.c.h.b16 %v210
  %v870 = vunpack.c.l.b16 %v211
  %v871 = vunpack.c.h.b16 %v211
  %v872 = vunpack.c.l.b16 %v212
  %v873 = vunpack.c.h.b16 %v212
  %v874 = vunpack.c.l.b16 %v213
  %v875 = vunpack.c.l.b16 %v214
  %v876 = vunpack.c.h.b16 %v214
  %v877 = vunpack.c.l.b16 %v215
  %v878 = vunpack.c.h.b16 %v215
  %v879 = vunpack.c.l.b16 %v216
  %v880 = vunpack.c.h.b16 %v216
  %v881 = vunpack.c.l.b16 %v217
  %v882 = vunpack.c.h.b16 %v217
  %v883 = vunpack.c.l.b16 %v218
  %v884 = vunpack.c.h.b16 %v218
  %v885 = vunpack.c.l.b16 %v219
  %v886 = vunpack.c.h.b16 %v219
  %v887 = vunpack.c.l.b16 %v220
  %v888 = vunpack.c.h.b16 %v220
  %v889 = vunpack.c.l.b16 %v221
  %v890 = vunpack.c.h.b16 %v221
  %v891 = vunpack.c.l.b16 %v222
  %v892 = vunpack.c.h.b16 %v222
  %v893 = vunpack.c.l.b16 %v223
  %v894 = vunpack.c.h.b16 %v223
  %v895 = vunpack.c.l.b16 %v224
  %v896 = vunpack.c.h.b16 %v224
  %v897 = vunpack.c.l.b16 %v225
  %v898 = vunpack.c.h.b16 %v225
  %v899 = vunpack.c.l.b16 %v226
  %v900 = vunpack.c.h.b16 %v226
  %v901 = vunpack.c.l.b16 %v227
  %v902 = vunpack.c.h.b16 %v227
  %v903 = vunpack.c.l.b16 %v228
  %v904 = vunpack.c.h.b16 %v228
  %v905 = vunpack.c.l.b16 %v229
  %v906 = vunpack.c.h.b16 %v229
  %v907 = vunpack.c.l.b16 %v230
  %v908 = vunpack.c.h.b16 %v230
  %v909 = vunpack.c.l.b16 %v231
  %v910 = vunpack.c.l.b16 %v232
  %v911 = vunpack.c.h.b16 %v232
  %v912 = vunpack.c.l.b16 %v233
  %v913 = vunpack.c.h.b16 %v233
  %v914 = vunpack.c.l.b16 %v234
  %v915 = vunpack.c.h.b16 %v234
  %v916 = vunpack.c.l.b16 %v235
  %v917 = vunpack.c.h.b16 %v235
  %v918 = vunpack.c.l.b16 %v236
  %v919 = vunpack.c.h.b16 %v236
  %v920 = vunpack.c.l.b16 %v237
  %v921 = vunpack.c.h.b16 %v237
  %v922 = vunpack.c.l.b16 %v238
  %v923 = vunpack.c.h.b16 %v238
  %v924 = vunpack.c.l.b16 %v239
  %v925 = vunpack.c.h.b16 %v239
  %v926 = vunpack.c.l.b16 %v240
  %v927 = vunpack.c.h.b16 %v240
  %v928 = vunpack.c.l.b16 %v241
  %v929 = vunpack.c.h.b16 %v241
  %v930 = vunpack.c.l.b16 %v242
  %v931 = vunpack.c.h.b16 %v242
  %v932 = vunpack.c.l.b16 %v243
  %v933 = vunpack.c.h.b16 %v243
  %v934 = vunpack.c.l.b16 %v244
  %v935 = vunpack.c.h.b16 %v244
  %v936 = vunpack.c.l.b16 %v245
  %v937 = vunpack.c.h.b16 %v245
  %v938 = vunpack.c.l.b16 %v246
  %v939 = vunpack.c.h.b16 %v246
  %v940 = vunpack.c.l.b16 %v247
  %v941 = vunpack.c.h.b16 %v247
  %v942 = vunpack.c.l.b16 %v248
  %v943 = vunpack.c.h.b16 %v248
  %v944 = vunpack.c.l.b16 %v249
  %v945 = vpack.c.b16 %v525, %v490
  %v946 = vpack.c.b16 %v526, %v491
  %v947 = vpack.c.b16 %v527, %v492
  %v948 = vpack.c.b16 %v528, %v493
  %v949 = vpack.c.b16 %v529, %v494
  %v950 = vpack.c.b16 %v530, %v495
  %v951 = vpack.c.b16 %v531, %v496
  %v952 = vpack.c.b16 %v532, %v497
  %v953 = vpack.c.b16 %v533, %v498
  %v954 = vpack.c.b16 %v534, %v499
  %v955 = vpack.c.b16 %v535, %v500
  %v956 = vpack.c.b16 %v536, %v501
  %v957 = vpack.c.b16 %v537, %v502
  %v958 = vpack.c.b16 %v538, %v503
  %v959 = vpack.c.b16 %v539, %v504
  %v960 = vpack.c.b16 %v540, %v505
  %v961 = vpack.c.b16 %v541, %v506
  %v962 = vpack.c.b16 %v542, %v507
  %v963 = vpack.c.b16 %v543, %v508
  %v964 = vpack.c.b16 %v544, %v509
  %v965 = vpack.c.b16 %v545, %v510
  %v966 = vpack.c.b16 %v546, %v511
  %v967 = vpack.c.b16 %v547, %v512
  %v968 = vpack.c.b16 %v548, %v513
  %v969 = vpack.c.b16 %v549, %v514
  %v970 = vpack.c.b16 %v550, %v515
  %v971 = vpack.c.b16 %v551, %v516
  %v972 = vpack.c.b16 %v552, %v517
  %v973 = vpack.c.b16 %v553, %v518
  %v974 = vpack.c.b16 %v554, %v519
  %v975 = vpack.c.b16 %v555, %v520
  %v976 = vpack.c.b16 %v556, %v521
  %v977 = vpack.c.b16 %v557, %v522
  %v978 = vpack.c.b16 %v558, %v523
  %v979 = vpack.c.b16 %v559, %v524
  %v980 = vpack.c.b16 %v595, %v560
  %v981 = vpack.c.b16 %v596, %v561
  %v982 = vpack.c.b16 %v597, %v562
  %v983 = vpack.c.b16 %v598, %v563
  %v984 = vpack.c.b16 %v599, %v564
  %v985 = vpack.c.b16 %v600, %v565
  %v986 = vpack.c.b16 %v601, %v566
  %v987 = vpack.c.b16 %v602, %v567
  %v988 = vpack.c.b16 %v603, %v568
  %v989 = vpack.c.b16 %v604, %v569
  %v990 = vpack.c.b16 %v605, %v570
  %v991 = vpack.c.b16 %v606, %v571
  %v992 = vpack.c.b16 %v607, %v572
  %v993 = vpack.c.b16 %v608, %v573
  %v994 = vpack.c.b16 %v609, %v574
  %v995 = vpack.c.b16 %v610, %v575
  %v996 = vpack.c.b16 %v611, %v576
  %v997 = vpack.c.b16 %v612, %v577
  %v998 = vpack.c.b16 %v613, %v578
  %v999 = vpack.c.b16 %v614, %v579
  %v1000 = vpack.c.b16 %v615, %v580
  %v1001 = vpack.c.b16 %v616, %v581
  %v1002 = vpack.c.b16 %v617, %v582
  %v1003 = vpack.c.b16 %v618, %v583
  %v1004 = vpack.c.b16 %v619, %v584
  %v1005 = vpack.c.b16 %v620, %v585
  %v1006 = vpack.c.b16 %v621, %v586
  %v1007 = vpack.c.b16 %v622, %v587
  %v1008 = vpack.c.b16 %v623, %v588
  %v1009 = vpack.c.b16 %v624, %v589
  %v1010 = vpack.c.b16 %v625, %v590
  %v1011 = vpack.c.b16 %v626, %v591
  %v1012 = vpack.c.b16 %v627, %v592
  %v1013 = vpack.c.b16 %v628, %v593
  %v1014 = vpack.c.b16 %v629, %v594
  %v1015 = vpack.c.b16 %v665, %v630
  %v1016 = vpack.c.b16 %v666, %v631
  %v1017 = vpack.c.b16 %v667, %v632
  %v1018 = vpack.c.b16 %v668, %v633
  %v1019 = vpack.c.b16 %v669, %v634
  %v1020 = vpack.c.b16 %v670, %v635
  %v1021 = vpack.c.b16 %v671, %v636
  %v1022 = vpack.c.b16 %v672, %v637
  %v1023 = vpack.c.b16 %v673, %v638
  %v1024 = vpack.c.b16 %v674, %v639
  %v1025 = vpack.c.b16 %v675, %v640
  %v1026 = vpack.c.b16 %v676, %v641
  %v1027 = vpack.c.b16 %v677, %v642
  %v1028 = vpack.c.b16 %v678, %v643
  %v1029 = vpack.c.b16 %v679, %v644
  %v1030 = vpack.c.b16 %v680, %v645
  %v1031 = vpack.c.b16 %v681, %v646
  %v1032 = vpack.c.b16 %v682, %v647
  %v1033 = vpack.c.b16 %v683, %v648
  %v1034 = vpack.c.b16 %v684, %v649
  %v1035 = vpack.c.b16 %v685, %v650
  %v1036 = vpack.c.b16 %v686, %v651
  %v1037 = vpack.c.b16 %v687, %v652
  %v1038 = vpack.c.b16 %v688, %v653
  %v1039 = vpack.c.b16 %v689, %v654
  %v1040 = vpack.c.b16 %v690, %v655
  %v1041 = vpack.c.b16 %v691, %v656
  %v1042 = vpack.c.b16 %v692, %v657
  %v1043 = vpack.c.b16 %v693, %v658
  %v1044 = vpack.c.b16 %v694, %v659
  %v1045 = vpack.c.b16 %v695, %v660
  %v1046 = vpack.c.b16 %v696, %v661
  %v1047 = vpack.c.b16 %v697, %v662
  %v1048 = vpack.c.b16 %v698, %v663
  %v1049 = vpack.c.b16 %v699, %v664
  %v1050 = vpack.c.b16 %v735, %v700
  %v1051 = vpack.c.b16 %v736, %v701
  %v1052 = vpack.c.b16 %v737, %v702
  %v1053 = vpack.c.b16 %v738, %v703
  %v1054 = vpack.c.b16 %v739, %v704
  %v1055 = vpack.c.b16 %v740, %v705
  %v1056 = vpack.c.b16 %v741, %v706
  %v1057 = vpack.c.b16 %v742, %v707
  %v1058 = vpack.c.b16 %v743, %v708
  %v1059 = vpack.c.b16 %v744, %v709
  %v1060 = vpack.c.b16 %v745, %v710
  %v1061 = vpack.c.b16 %v746, %v711
  %v1062 = vpack.c.b16 %v747, %v712
  %v1063 = vpack.c.b16 %v748, %v713
  %v1064 = vpack.c.b16 %v749, %v714
  %v1065 = vpack.c.b16 %v750, %v715
  %v1066 = vpack.c.b16 %v751, %v716
  %v1067 = vpack.c.b16 %v752, %v717
  %v1068 = vpack.c.b16 %v753, %v718
  %v1069 = vpack.c.b16 %v754, %v719
  %v1070 = vpack.c.b16 %v755, %v720
  %v1071 = vpack.c.b16 %v756, %v721
  %v1072 = vpack.c.b16 %v757, %v722
  %v1073 = vpack.c.b16 %v758, %v723
  %v1074 = vpack.c.b16 %v759, %v724
  %v1075 = vpack.c.b16 %v760, %v725
  %v1076 = vpack.c.b16 %v761, %v726
  %v1077 = vpack.c.b16 %v762, %v727
  %v1078 = vpack.c.b16 %v763, %v728
  %v1079 = vpack.c.b16 %v764, %v729
  %v1080 = vpack.c.b16 %v765, %v730
  %v1081 = vpack.c.b16 %v766, %v731
  %v1082 = vpack.c.b16 %v767, %v732
  %v1083 = vpack.c.b16 %v768, %v733
  %v1084 = vpack.c.b16 %v769, %v734
  %v1085 = vpack.c.b16 %v805, %v770
  %v1086 = vpack.c.b16 %v806, %v771
  %v1087 = vpack.c.b16 %v807, %v772
  %v1088 = vpack.c.b16 %v808, %v773
  %v1089 = vpack.c.b16 %v809, %v774
  %v1090 = vpack.c.b16 %v810, %v775
  %v1091 = vpack.c.b16 %v811, %v776
  %v1092 = vpack.c.b16 %v812, %v777
  %v1093 = vpack.c.b16 %v813, %v778
  %v1094 = vpack.c.b16 %v814, %v779
  %v1095 = vpack.c.b16 %v815, %v780
  %v1096 = vpack.c.b16 %v816, %v781
  %v1097 = vpack.c.b16 %v817, %v782
  %v1098 = vpack.c.b16 %v818, %v783
  %v1099 = vpack.c.b16 %v819, %v784
  %v1100 = vpack.c.b16 %v820, %v785
  %v1101 = vpack.c.b16 %v821, %v786
  %v1102 = vpack.c.b16 %v822, %v787
  %v1103 = vpack.c.b16 %v823, %v788
  %v1104 = vpack.c.b16 %v824, %v789
  %v1105 = vpack.c.b16 %v825, %v790
  %v1106 = vpack.c.b16 %v826, %v791
  %v1107 = vpack.c.b16 %v827, %v792
  %v1108 = vpack.c.b16 %v828, %v793
  %v1109 = vpack.c.b16 %v829, %v794
  %v1110 = vpack.c.b16 %v830, %v795
  %v1111 = vpack.c.b16 %v831, %v796
  %v1112 = vpack.c.b16 %v832, %v797
  %v1113 = vpack.c.b16 %v833, %v798
  %v1114 = vpack.c.b16 %v834, %v799
  %v1115 = vpack.c.b16 %v835, %v800
  %v1116 = vpack.c.b16 %v836, %v801
  %v1117 = vpack.c.b16 %v837, %v802
  %v1118 = vpack.c.b16 %v838, %v803
  %v1119 = vpack.c.b16 %v839, %v804
  %v1120 = vpack.c.b16 %v875, %v840
  %v1121 = vpack.c.b16 %v876, %v841
  %v1122 = vpack.c.b16 %v877, %v842
  %v1123 = vpack.c.b16 %v878, %v843
  %v1124 = vpack.c.b16 %v879, %v844
  %v1125 = vpack.c.b16 %v880, %v845
  %v1126 = vpack.c.b16 %v881, %v846
  %v1127 = vpack.c.b16 %v882, %v847
  %v1128 = vpack.c.b16 %v883, %v848
  %v1129 = vpack.c.b16 %v884, %v849
  %v1130 = vpack.c.b16 %v885, %v850
  %v1131 = vpack.c.b16 %v886, %v851
  %v1132 = vpack.c.b16 %v887, %v852
  %v1133 = vpack.c.b16 %v888, %v853
  %v1134 = vpack.c.b16 %v889, %v854
  %v1135 = vpack.c.b16 %v890, %v855
  %v1136 = vpack.c.b16 %v891, %v856
  %v1137 = vpack.c.b16 %v892, %v857
  %v1138 = vpack.c.b16 %v893, %v858
  %v1139 = vpack.c.b16 %v894, %v859
  %v1140 = vpack.c.b16 %v895, %v860
  %v1141 = vpack.c.b16 %v896, %v861
  %v1142 = vpack.c.b16 %v897, %v862
  %v1143 = vpack.c.b16 %v898, %v863
  %v1144 = vpack.c.b16 %v899, %v864
  %v1145 = vpack.c.b16 %v900, %v865
  %v1146 = vpack.c.b16 %v901, %v866
  %v1147 = vpack.c.b16 %v902, %v867
  %v1148 = vpack.c.b16 %v903, %v868
  %v1149 = vpack.c.b16 %v904, %v869
  %v1150 = vpack.c.b16 %v905, %v870
  %v1151 = vpack.c.b16 %v906, %v871
  %v1152 = vpack.c.b16 %v907, %v872
  %v1153 = vpack.c.b16 %v908, %v873
  %v1154 = vpack.c.b16 %v909, %v874
  %v1155 = vpack.c.b16 %v910, %v910
  %v1156 = vpack.c.b16 %v911, %v911
  %v1157 = vpack.c.b16 %v912, %v912
  %v1158 = vpack.c.b16 %v913, %v913
  %v1159 = vpack.c.b16 %v914, %v914
  %v1160 = vpack.c.b16 %v915, %v915
  %v1161 = vpack.c.b16 %v916, %v916
  %v1162 = vpack.c.b16 %v917, %v917
  %v1163 = vpack.c.b16 %v918, %v918
  %v1164 = vpack.c.b16 %v919, %v919
  %v1165 = vpack.c.b16 %v920, %v920
  %v1166 = vpack.c.b16 %v921, %v921
  %v1167 = vpack.c.b16 %v922, %v922
  %v1168 = vpack.c.b16 %v923, %v923
  %v1169 = vpack.c.b16 %v924, %v924
  %v1170 = vpack.c.b16 %v925, %v925
  %v1171 = vpack.c.b16 %v926, %v926
  %v1172 = vpack.c.b16 %v927, %v927
  %v1173 = vpack.c.b16 %v928, %v928
  %v1174 = vpack.c.b16 %v929, %v929
  %v1175 = vpack.c.b16 %v930, %v930
  %v1176 = vpack.c.b16 %v931, %v931
  %v1177 = vpack.c.b16 %v932, %v932
  %v1178 = vpack.c.b16 %v933, %v933
  %v1179 = vpack.c.b16 %v934, %v934
  %v1180 = vpack.c.b16 %v935, %v935
  %v1181 = vpack.c.b16 %v936, %v936
  %v1182 = vpack.c.b16 %v937, %v937
  %v1183 = vpack.c.b16 %v938, %v938
  %v1184 = vpack.c.b16 %v939, %v939
  %v1185 = vpack.c.b16 %v940, %v940
  %v1186 = vpack.c.b16 %v941, %v941
  %v1187 = vpack.c.b16 %v942, %v942
  %v1188 = vpack.c.b16 %v943, %v943
  %v1189 = vpack.c.b16 %v944, %v944
  %vm1400 = vcmask 818176
  %v1402 = vsel %vm1400, %v15, 0
  %vm1404 = vcmask 1041408
  %v1406 = vsel %vm1404, %v1155, 0
  %v1409 = vsel %vm1404, %v1156, 0
  %v1412 = vsel %vm1404, %v1157, 0
  %v1415 = vsel %vm1404, %v1158, 0
  %v1418 = vsel %vm1404, %v1159, 0
  %v1421 = vsel %vm1404, %v1160, 0
  %v1424 = vsel %vm1404, %v1161, 0
  %v1427 = vsel %vm1404, %v1162, 0
  %v1430 = vsel %vm1404, %v1163, 0
  %v1433 = vsel %vm1404, %v1164, 0
  %v1436 = vsel %vm1404, %v1165, 0
  %v1439 = vsel %vm1404, %v1166, 0
  %v1442 = vsel %vm1404, %v1167, 0
  %v1445 = vsel %vm1404, %v1168, 0
  %v1448 = vsel %vm1404, %v1169, 0
  %v1451 = vsel %vm1404, %v1170, 0
  %v1454 = vsel %vm1404, %v1171, 0
  %v1457 = vsel %vm1404, %v1172, 0
  %v1460 = vsel %vm1404, %v1173, 0
  %v1463 = vsel %vm1404, %v1174, 0
  %v1466 = vsel %vm1404, %v1175, 0
  %v1469 = vsel %vm1404, %v1176, 0
  %v1472 = vsel %vm1404, %v1177, 0
  %v1475 = vsel %vm1404, %v1178, 0
  %v1478 = vsel %vm1404, %v1179, 0
  %v1481 = vsel %vm1404, %v1180, 0
  %v1484 = vsel %vm1404, %v1181, 0
  %v1487 = vsel %vm1404, %v1182, 0
  %v1490 = vsel %vm1404, %v1183, 0
  %v1493 = vsel %vm1404, %v1184, 0
  %v1496 = vsel %vm1404, %v1185, 0
  %v1499 = vsel %vm1404, %v1186, 0
  %v1502 = vsel %vm1404, %v1187, 0
  %v1505 = vsel %vm1404, %v1188, 0
  %v1508 = vsel %vm1404, %v1189, 0
  %1510 = vmatpush.bf16.msra.mxu0 0
  %1511 = vmatpush.bf16.msra.mxu0 %v1406
  %1512 = vmatpush.bf16.msra.mxu0 %v1120
  %1513 = vmatpush.bf16.msra.mxu0 %v1085
  %1514 = vmatpush.bf16.msra.mxu0 %v1050
  %1515 = vmatpush.bf16.msra.mxu0 %v1015
  %1516 = vmatpush.bf16.msra.mxu0 %v980
  %1517 = vmatpush.bf16.msra.mxu0 %v945
  %1518 = vmatmul.bf16.gmra.mxu0 %v1402
  %v1519 = vpop.f32.mrf.mxu0
  %v1520 = vadd.f32 %v254, %v1519
  %v1521 = vpop.f32.mrf.mxu0
  %1522 = vdwg.mxu0
  %1523 = vmatpush.bf16.msra.mxu0 0
  %1524 = vmatpush.bf16.msra.mxu0 %v1409
  %1525 = vmatpush.bf16.msra.mxu0 %v1121
  %1526 = vmatpush.bf16.msra.mxu0 %v1086
  %1527 = vmatpush.bf16.msra.mxu0 %v1051
  %1528 = vmatpush.bf16.msra.mxu0 %v1016
  %1529 = vmatpush.bf16.msra.mxu0 %v981
  %1530 = vmatpush.bf16.msra.mxu0 %v946
  %1531 = vmatmul.bf16.gmra.mxu0 %v1402
  %v1532 = vpop.f32.mrf.mxu0
  %v1533 = vadd.f32 %v254, %v1532
  %v1534 = vpop.f32.mrf.mxu0
  %1535 = vdwg.mxu0
  %1536 = vmatpush.bf16.msra.mxu0 0
  %1537 = vmatpush.bf16.msra.mxu0 %v1412
  %1538 = vmatpush.bf16.msra.mxu0 %v1122
  %1539 = vmatpush.bf16.msra.mxu0 %v1087
  %1540 = vmatpush.bf16.msra.mxu0 %v1052
  %1541 = vmatpush.bf16.msra.mxu0 %v1017
  %1542 = vmatpush.bf16.msra.mxu0 %v982
  %1543 = vmatpush.bf16.msra.mxu0 %v947
  %1544 = vmatmul.bf16.gmra.mxu0 %v1402
  %v1545 = vpop.f32.mrf.mxu0
  %v1546 = vadd.f32 %v254, %v1545
  %v1547 = vpop.f32.mrf.mxu0
  %1548 = vdwg.mxu0
  %1549 = vmatpush.bf16.msra.mxu0 0
  %1550 = vmatpush.bf16.msra.mxu0 %v1415
  %1551 = vmatpush.bf16.msra.mxu0 %v1123
  %1552 = vmatpush.bf16.msra.mxu0 %v1088
  %1553 = vmatpush.bf16.msra.mxu0 %v1053
  %1554 = vmatpush.bf16.msra.mxu0 %v1018
  %1555 = vmatpush.bf16.msra.mxu0 %v983
  %1556 = vmatpush.bf16.msra.mxu0 %v948
  %1557 = vmatmul.bf16.gmra.mxu0 %v1402
  %v1558 = vpop.f32.mrf.mxu0
  %v1559 = vadd.f32 %v254, %v1558
  %v1560 = vpop.f32.mrf.mxu0
  %1561 = vdwg.mxu0
  %1562 = vmatpush.bf16.msra.mxu0 0
  %1563 = vmatpush.bf16.msra.mxu0 %v1418
  %1564 = vmatpush.bf16.msra.mxu0 %v1124
  %1565 = vmatpush.bf16.msra.mxu0 %v1089
  %1566 = vmatpush.bf16.msra.mxu0 %v1054
  %1567 = vmatpush.bf16.msra.mxu0 %v1019
  %1568 = vmatpush.bf16.msra.mxu0 %v984
  %1569 = vmatpush.bf16.msra.mxu0 %v949
  %1570 = vmatmul.bf16.gmra.mxu0 %v1402
  %v1571 = vpop.f32.mrf.mxu0
  %v1572 = vadd.f32 %v254, %v1571
  %v1573 = vpop.f32.mrf.mxu0
  %1574 = vdwg.mxu0
  %1575 = vmatpush.bf16.msra.mxu0 0
  %1576 = vmatpush.bf16.msra.mxu0 %v1421
  %1577 = vmatpush.bf16.msra.mxu0 %v1125
  %1578 = vmatpush.bf16.msra.mxu0 %v1090
  %1579 = vmatpush.bf16.msra.mxu0 %v1055
  %1580 = vmatpush.bf16.msra.mxu0 %v1020
  %1581 = vmatpush.bf16.msra.mxu0 %v985
  %1582 = vmatpush.bf16.msra.mxu0 %v950
  %1583 = vmatmul.bf16.gmra.mxu0 %v1402
  %v1584 = vpop.f32.mrf.mxu0
  %v1585 = vadd.f32 %v254, %v1584
  %v1586 = vpop.f32.mrf.mxu0
  %1587 = vdwg.mxu0
  %1588 = vmatpush.bf16.msra.mxu0 0
  %1589 = vmatpush.bf16.msra.mxu0 %v1424
  %1590 = vmatpush.bf16.msra.mxu0 %v1126
  %1591 = vmatpush.bf16.msra.mxu0 %v1091
  %1592 = vmatpush.bf16.msra.mxu0 %v1056
  %1593 = vmatpush.bf16.msra.mxu0 %v1021
  %1594 = vmatpush.bf16.msra.mxu0 %v986
  %1595 = vmatpush.bf16.msra.mxu0 %v951
  %1596 = vmatmul.bf16.gmra.mxu0 %v1402
  %v1597 = vpop.f32.mrf.mxu0
  %v1598 = vadd.f32 %v254, %v1597
  %v1599 = vpop.f32.mrf.mxu0
  %1600 = vdwg.mxu0
  %1601 = vmatpush.bf16.msra.mxu0 0
  %1602 = vmatpush.bf16.msra.mxu0 %v1427
  %1603 = vmatpush.bf16.msra.mxu0 %v1127
  %1604 = vmatpush.bf16.msra.mxu0 %v1092
  %1605 = vmatpush.bf16.msra.mxu0 %v1057
  %1606 = vmatpush.bf16.msra.mxu0 %v1022
  %1607 = vmatpush.bf16.msra.mxu0 %v987
  %1608 = vmatpush.bf16.msra.mxu0 %v952
  %1609 = vmatmul.bf16.gmra.mxu0 %v1402
  %v1610 = vpop.f32.mrf.mxu0
  %v1611 = vadd.f32 %v254, %v1610
  %v1612 = vpop.f32.mrf.mxu0
  %1613 = vdwg.mxu0
  %1614 = vmatpush.bf16.msra.mxu0 0
  %1615 = vmatpush.bf16.msra.mxu0 %v1430
  %1616 = vmatpush.bf16.msra.mxu0 %v1128
  %1617 = vmatpush.bf16.msra.mxu0 %v1093
  %1618 = vmatpush.bf16.msra.mxu0 %v1058
  %1619 = vmatpush.bf16.msra.mxu0 %v1023
  %1620 = vmatpush.bf16.msra.mxu0 %v988
  %1621 = vmatpush.bf16.msra.mxu0 %v953
  %1622 = vmatmul.bf16.gmra.mxu0 %v1402
  %v1623 = vpop.f32.mrf.mxu0
  %v1624 = vadd.f32 %v254, %v1623
  %v1625 = vpop.f32.mrf.mxu0
  %1626 = vdwg.mxu0
  %1627 = vmatpush.bf16.msra.mxu0 0
  %1628 = vmatpush.bf16.msra.mxu0 %v1433
  %1629 = vmatpush.bf16.msra.mxu0 %v1129
  %1630 = vmatpush.bf16.msra.mxu0 %v1094
  %1631 = vmatpush.bf16.msra.mxu0 %v1059
  %1632 = vmatpush.bf16.msra.mxu0 %v1024
  %1633 = vmatpush.bf16.msra.mxu0 %v989
  %1634 = vmatpush.bf16.msra.mxu0 %v954
  %1635 = vmatmul.bf16.gmra.mxu0 %v1402
  %v1636 = vpop.f32.mrf.mxu0
  %v1637 = vadd.f32 %v254, %v1636
  %v1638 = vpop.f32.mrf.mxu0
  %1639 = vdwg.mxu0
  %1640 = vmatpush.bf16.msra.mxu0 0
  %1641 = vmatpush.bf16.msra.mxu0 %v1436
  %1642 = vmatpush.bf16.msra.mxu0 %v1130
  %1643 = vmatpush.bf16.msra.mxu0 %v1095
  %1644 = vmatpush.bf16.msra.mxu0 %v1060
  %1645 = vmatpush.bf16.msra.mxu0 %v1025
  %1646 = vmatpush.bf16.msra.mxu0 %v990
  %1647 = vmatpush.bf16.msra.mxu0 %v955
  %1648 = vmatmul.bf16.gmra.mxu0 %v1402
  %v1649 = vpop.f32.mrf.mxu0
  %v1650 = vadd.f32 %v254, %v1649
  %v1651 = vpop.f32.mrf.mxu0
  %1652 = vdwg.mxu0
  %1653 = vmatpush.bf16.msra.mxu0 0
  %1654 = vmatpush.bf16.msra.mxu0 %v1439
  %1655 = vmatpush.bf16.msra.mxu0 %v1131
  %1656 = vmatpush.bf16.msra.mxu0 %v1096
  %1657 = vmatpush.bf16.msra.mxu0 %v1061
  %1658 = vmatpush.bf16.msra.mxu0 %v1026
  %1659 = vmatpush.bf16.msra.mxu0 %v991
  %1660 = vmatpush.bf16.msra.mxu0 %v956
  %1661 = vmatmul.bf16.gmra.mxu0 %v1402
  %v1662 = vpop.f32.mrf.mxu0
  %v1663 = vadd.f32 %v254, %v1662
  %v1664 = vpop.f32.mrf.mxu0
  %1665 = vdwg.mxu0
  %1666 = vmatpush.bf16.msra.mxu0 0
  %1667 = vmatpush.bf16.msra.mxu0 %v1442
  %1668 = vmatpush.bf16.msra.mxu0 %v1132
  %1669 = vmatpush.bf16.msra.mxu0 %v1097
  %1670 = vmatpush.bf16.msra.mxu0 %v1062
  %1671 = vmatpush.bf16.msra.mxu0 %v1027
  %1672 = vmatpush.bf16.msra.mxu0 %v992
  %1673 = vmatpush.bf16.msra.mxu0 %v957
  %1674 = vmatmul.bf16.gmra.mxu0 %v1402
  %v1675 = vpop.f32.mrf.mxu0
  %v1676 = vadd.f32 %v254, %v1675
  %v1677 = vpop.f32.mrf.mxu0
  %1678 = vdwg.mxu0
  %1679 = vmatpush.bf16.msra.mxu0 0
  %1680 = vmatpush.bf16.msra.mxu0 %v1445
  %1681 = vmatpush.bf16.msra.mxu0 %v1133
  %1682 = vmatpush.bf16.msra.mxu0 %v1098
  %1683 = vmatpush.bf16.msra.mxu0 %v1063
  %1684 = vmatpush.bf16.msra.mxu0 %v1028
  %1685 = vmatpush.bf16.msra.mxu0 %v993
  %1686 = vmatpush.bf16.msra.mxu0 %v958
  %1687 = vmatmul.bf16.gmra.mxu0 %v1402
  %v1688 = vpop.f32.mrf.mxu0
  %v1689 = vadd.f32 %v254, %v1688
  %v1690 = vpop.f32.mrf.mxu0
  %1691 = vdwg.mxu0
  %1692 = vmatpush.bf16.msra.mxu0 0
  %1693 = vmatpush.bf16.msra.mxu0 %v1448
  %1694 = vmatpush.bf16.msra.mxu0 %v1134
  %1695 = vmatpush.bf16.msra.mxu0 %v1099
  %1696 = vmatpush.bf16.msra.mxu0 %v1064
  %1697 = vmatpush.bf16.msra.mxu0 %v1029
  %1698 = vmatpush.bf16.msra.mxu0 %v994
  %1699 = vmatpush.bf16.msra.mxu0 %v959
  %1700 = vmatmul.bf16.gmra.mxu0 %v1402
  %v1701 = vpop.f32.mrf.mxu0
  %v1702 = vadd.f32 %v254, %v1701
  %v1703 = vpop.f32.mrf.mxu0
  %1704 = vdwg.mxu0
  %1705 = vmatpush.bf16.msra.mxu0 0
  %1706 = vmatpush.bf16.msra.mxu0 %v1451
  %1707 = vmatpush.bf16.msra.mxu0 %v1135
  %1708 = vmatpush.bf16.msra.mxu0 %v1100
  %1709 = vmatpush.bf16.msra.mxu0 %v1065
  %1710 = vmatpush.bf16.msra.mxu0 %v1030
  %1711 = vmatpush.bf16.msra.mxu0 %v995
  %1712 = vmatpush.bf16.msra.mxu0 %v960
  %1713 = vmatmul.bf16.gmra.mxu0 %v1402
  %v1714 = vpop.f32.mrf.mxu0
  %v1715 = vadd.f32 %v254, %v1714
  %v1716 = vpop.f32.mrf.mxu0
  %1717 = vdwg.mxu0
  %1718 = vmatpush.bf16.msra.mxu0 0
  %1719 = vmatpush.bf16.msra.mxu0 %v1454
  %1720 = vmatpush.bf16.msra.mxu0 %v1136
  %1721 = vmatpush.bf16.msra.mxu0 %v1101
  %1722 = vmatpush.bf16.msra.mxu0 %v1066
  %1723 = vmatpush.bf16.msra.mxu0 %v1031
  %1724 = vmatpush.bf16.msra.mxu0 %v996
  %1725 = vmatpush.bf16.msra.mxu0 %v961
  %1726 = vmatmul.bf16.gmra.mxu0 %v1402
  %v1727 = vpop.f32.mrf.mxu0
  %v1728 = vadd.f32 %v254, %v1727
  %v1729 = vpop.f32.mrf.mxu0
  %1730 = vdwg.mxu0
  %1731 = vmatpush.bf16.msra.mxu0 0
  %1732 = vmatpush.bf16.msra.mxu0 %v1457
  %1733 = vmatpush.bf16.msra.mxu0 %v1137
  %1734 = vmatpush.bf16.msra.mxu0 %v1102
  %1735 = vmatpush.bf16.msra.mxu0 %v1067
  %1736 = vmatpush.bf16.msra.mxu0 %v1032
  %1737 = vmatpush.bf16.msra.mxu0 %v997
  %1738 = vmatpush.bf16.msra.mxu0 %v962
  %1739 = vmatmul.bf16.gmra.mxu0 %v1402
  %v1740 = vpop.f32.mrf.mxu0
  %v1741 = vadd.f32 %v254, %v1740
  %v1742 = vpop.f32.mrf.mxu0
  %1743 = vdwg.mxu0
  %1744 = vmatpush.bf16.msra.mxu0 0
  %1745 = vmatpush.bf16.msra.mxu0 %v1460
  %1746 = vmatpush.bf16.msra.mxu0 %v1138
  %1747 = vmatpush.bf16.msra.mxu0 %v1103
  %1748 = vmatpush.bf16.msra.mxu0 %v1068
  %1749 = vmatpush.bf16.msra.mxu0 %v1033
  %1750 = vmatpush.bf16.msra.mxu0 %v998
  %1751 = vmatpush.bf16.msra.mxu0 %v963
  %1752 = vmatmul.bf16.gmra.mxu0 %v1402
  %v1753 = vpop.f32.mrf.mxu0
  %v1754 = vadd.f32 %v254, %v1753
  %v1755 = vpop.f32.mrf.mxu0
  %1756 = vdwg.mxu0
  %1757 = vmatpush.bf16.msra.mxu0 0
  %1758 = vmatpush.bf16.msra.mxu0 %v1463
  %1759 = vmatpush.bf16.msra.mxu0 %v1139
  %1760 = vmatpush.bf16.msra.mxu0 %v1104
  %1761 = vmatpush.bf16.msra.mxu0 %v1069
  %1762 = vmatpush.bf16.msra.mxu0 %v1034
  %1763 = vmatpush.bf16.msra.mxu0 %v999
  %1764 = vmatpush.bf16.msra.mxu0 %v964
  %1765 = vmatmul.bf16.gmra.mxu0 %v1402
  %v1766 = vpop.f32.mrf.mxu0
  %v1767 = vadd.f32 %v254, %v1766
  %v1768 = vpop.f32.mrf.mxu0
  %1769 = vdwg.mxu0
  %1770 = vmatpush.bf16.msra.mxu0 0
  %1771 = vmatpush.bf16.msra.mxu0 %v1466
  %1772 = vmatpush.bf16.msra.mxu0 %v1140
  %1773 = vmatpush.bf16.msra.mxu0 %v1105
  %1774 = vmatpush.bf16.msra.mxu0 %v1070
  %1775 = vmatpush.bf16.msra.mxu0 %v1035
  %1776 = vmatpush.bf16.msra.mxu0 %v1000
  %1777 = vmatpush.bf16.msra.mxu0 %v965
  %1778 = vmatmul.bf16.gmra.mxu0 %v1402
  %v1779 = vpop.f32.mrf.mxu0
  %v1780 = vadd.f32 %v254, %v1779
  %v1781 = vpop.f32.mrf.mxu0
  %1782 = vdwg.mxu0
  %1783 = vmatpush.bf16.msra.mxu0 0
  %1784 = vmatpush.bf16.msra.mxu0 %v1469
  %1785 = vmatpush.bf16.msra.mxu0 %v1141
  %1786 = vmatpush.bf16.msra.mxu0 %v1106
  %1787 = vmatpush.bf16.msra.mxu0 %v1071
  %1788 = vmatpush.bf16.msra.mxu0 %v1036
  %1789 = vmatpush.bf16.msra.mxu0 %v1001
  %1790 = vmatpush.bf16.msra.mxu0 %v966
  %1791 = vmatmul.bf16.gmra.mxu0 %v1402
  %v1792 = vpop.f32.mrf.mxu0
  %v1793 = vadd.f32 %v254, %v1792
  %v1794 = vpop.f32.mrf.mxu0
  %1795 = vdwg.mxu0
  %1796 = vmatpush.bf16.msra.mxu0 0
  %1797 = vmatpush.bf16.msra.mxu0 %v1472
  %1798 = vmatpush.bf16.msra.mxu0 %v1142
  %1799 = vmatpush.bf16.msra.mxu0 %v1107
  %1800 = vmatpush.bf16.msra.mxu0 %v1072
  %1801 = vmatpush.bf16.msra.mxu0 %v1037
  %1802 = vmatpush.bf16.msra.mxu0 %v1002
  %1803 = vmatpush.bf16.msra.mxu0 %v967
  %1804 = vmatmul.bf16.gmra.mxu0 %v1402
  %v1805 = vpop.f32.mrf.mxu0
  %v1806 = vadd.f32 %v254, %v1805
  %v1807 = vpop.f32.mrf.mxu0
  %1808 = vdwg.mxu0
  %1809 = vmatpush.bf16.msra.mxu0 0
  %1810 = vmatpush.bf16.msra.mxu0 %v1475
  %1811 = vmatpush.bf16.msra.mxu0 %v1143
  %1812 = vmatpush.bf16.msra.mxu0 %v1108
  %1813 = vmatpush.bf16.msra.mxu0 %v1073
  %1814 = vmatpush.bf16.msra.mxu0 %v1038
  %1815 = vmatpush.bf16.msra.mxu0 %v1003
  %1816 = vmatpush.bf16.msra.mxu0 %v968
  %1817 = vmatmul.bf16.gmra.mxu0 %v1402
  %v1818 = vpop.f32.mrf.mxu0
  %v1819 = vadd.f32 %v254, %v1818
  %v1820 = vpop.f32.mrf.mxu0
  %1821 = vdwg.mxu0
  %1822 = vmatpush.bf16.msra.mxu0 0
  %1823 = vmatpush.bf16.msra.mxu0 %v1478
  %1824 = vmatpush.bf16.msra.mxu0 %v1144
  %1825 = vmatpush.bf16.msra.mxu0 %v1109
  %1826 = vmatpush.bf16.msra.mxu0 %v1074
  %1827 = vmatpush.bf16.msra.mxu0 %v1039
  %1828 = vmatpush.bf16.msra.mxu0 %v1004
  %1829 = vmatpush.bf16.msra.mxu0 %v969
  %1830 = vmatmul.bf16.gmra.mxu0 %v1402
  %v1831 = vpop.f32.mrf.mxu0
  %v1832 = vadd.f32 %v254, %v1831
  %v1833 = vpop.f32.mrf.mxu0
  %1834 = vdwg.mxu0
  %1835 = vmatpush.bf16.msra.mxu0 0
  %1836 = vmatpush.bf16.msra.mxu0 %v1481
  %1837 = vmatpush.bf16.msra.mxu0 %v1145
  %1838 = vmatpush.bf16.msra.mxu0 %v1110
  %1839 = vmatpush.bf16.msra.mxu0 %v1075
  %1840 = vmatpush.bf16.msra.mxu0 %v1040
  %1841 = vmatpush.bf16.msra.mxu0 %v1005
  %1842 = vmatpush.bf16.msra.mxu0 %v970
  %1843 = vmatmul.bf16.gmra.mxu0 %v1402
  %v1844 = vpop.f32.mrf.mxu0
  %v1845 = vadd.f32 %v254, %v1844
  %v1846 = vpop.f32.mrf.mxu0
  %1847 = vdwg.mxu0
  %1848 = vmatpush.bf16.msra.mxu0 0
  %1849 = vmatpush.bf16.msra.mxu0 %v1484
  %1850 = vmatpush.bf16.msra.mxu0 %v1146
  %1851 = vmatpush.bf16.msra.mxu0 %v1111
  %1852 = vmatpush.bf16.msra.mxu0 %v1076
  %1853 = vmatpush.bf16.msra.mxu0 %v1041
  %1854 = vmatpush.bf16.msra.mxu0 %v1006
  %1855 = vmatpush.bf16.msra.mxu0 %v971
  %1856 = vmatmul.bf16.gmra.mxu0 %v1402
  %v1857 = vpop.f32.mrf.mxu0
  %v1858 = vadd.f32 %v254, %v1857
  %v1859 = vpop.f32.mrf.mxu0
  %1860 = vdwg.mxu0
  %1861 = vmatpush.bf16.msra.mxu0 0
  %1862 = vmatpush.bf16.msra.mxu0 %v1487
  %1863 = vmatpush.bf16.msra.mxu0 %v1147
  %1864 = vmatpush.bf16.msra.mxu0 %v1112
  %1865 = vmatpush.bf16.msra.mxu0 %v1077
  %1866 = vmatpush.bf16.msra.mxu0 %v1042
  %1867 = vmatpush.bf16.msra.mxu0 %v1007
  %1868 = vmatpush.bf16.msra.mxu0 %v972
  %1869 = vmatmul.bf16.gmra.mxu0 %v1402
  %v1870 = vpop.f32.mrf.mxu0
  %v1871 = vadd.f32 %v254, %v1870
  %v1872 = vpop.f32.mrf.mxu0
  %1873 = vdwg.mxu0
  %1874 = vmatpush.bf16.msra.mxu0 0
  %1875 = vmatpush.bf16.msra.mxu0 %v1490
  %1876 = vmatpush.bf16.msra.mxu0 %v1148
  %1877 = vmatpush.bf16.msra.mxu0 %v1113
  %1878 = vmatpush.bf16.msra.mxu0 %v1078
  %1879 = vmatpush.bf16.msra.mxu0 %v1043
  %1880 = vmatpush.bf16.msra.mxu0 %v1008
  %1881 = vmatpush.bf16.msra.mxu0 %v973
  %1882 = vmatmul.bf16.gmra.mxu0 %v1402
  %v1883 = vpop.f32.mrf.mxu0
  %v1884 = vadd.f32 %v254, %v1883
  %v1885 = vpop.f32.mrf.mxu0
  %1886 = vdwg.mxu0
  %1887 = vmatpush.bf16.msra.mxu0 0
  %1888 = vmatpush.bf16.msra.mxu0 %v1493
  %1889 = vmatpush.bf16.msra.mxu0 %v1149
  %1890 = vmatpush.bf16.msra.mxu0 %v1114
  %1891 = vmatpush.bf16.msra.mxu0 %v1079
  %1892 = vmatpush.bf16.msra.mxu0 %v1044
  %1893 = vmatpush.bf16.msra.mxu0 %v1009
  %1894 = vmatpush.bf16.msra.mxu0 %v974
  %1895 = vmatmul.bf16.gmra.mxu0 %v1402
  %v1896 = vpop.f32.mrf.mxu0
  %v1897 = vadd.f32 %v254, %v1896
  %v1898 = vpop.f32.mrf.mxu0
  %1899 = vdwg.mxu0
  %1900 = vmatpush.bf16.msra.mxu0 0
  %1901 = vmatpush.bf16.msra.mxu0 %v1496
  %1902 = vmatpush.bf16.msra.mxu0 %v1150
  %1903 = vmatpush.bf16.msra.mxu0 %v1115
  %1904 = vmatpush.bf16.msra.mxu0 %v1080
  %1905 = vmatpush.bf16.msra.mxu0 %v1045
  %1906 = vmatpush.bf16.msra.mxu0 %v1010
  %1907 = vmatpush.bf16.msra.mxu0 %v975
  %1908 = vmatmul.bf16.gmra.mxu0 %v1402
  %v1909 = vpop.f32.mrf.mxu0
  %v1910 = vadd.f32 %v254, %v1909
  %v1911 = vpop.f32.mrf.mxu0
  %1912 = vdwg.mxu0
  %1913 = vmatpush.bf16.msra.mxu0 0
  %1914 = vmatpush.bf16.msra.mxu0 %v1499
  %1915 = vmatpush.bf16.msra.mxu0 %v1151
  %1916 = vmatpush.bf16.msra.mxu0 %v1116
  %1917 = vmatpush.bf16.msra.mxu0 %v1081
  %1918 = vmatpush.bf16.msra.mxu0 %v1046
  %1919 = vmatpush.bf16.msra.mxu0 %v1011
  %1920 = vmatpush.bf16.msra.mxu0 %v976
  %1921 = vmatmul.bf16.gmra.mxu0 %v1402
  %v1922 = vpop.f32.mrf.mxu0
  %v1923 = vadd.f32 %v254, %v1922
  %v1924 = vpop.f32.mrf.mxu0
  %1925 = vdwg.mxu0
  %1926 = vmatpush.bf16.msra.mxu0 0
  %1927 = vmatpush.bf16.msra.mxu0 %v1502
  %1928 = vmatpush.bf16.msra.mxu0 %v1152
  %1929 = vmatpush.bf16.msra.mxu0 %v1117
  %1930 = vmatpush.bf16.msra.mxu0 %v1082
  %1931 = vmatpush.bf16.msra.mxu0 %v1047
  %1932 = vmatpush.bf16.msra.mxu0 %v1012
  %1933 = vmatpush.bf16.msra.mxu0 %v977
  %1934 = vmatmul.bf16.gmra.mxu0 %v1402
  %v1935 = vpop.f32.mrf.mxu0
  %v1936 = vadd.f32 %v254, %v1935
  %v1937 = vpop.f32.mrf.mxu0
  %1938 = vdwg.mxu0
  %1939 = vmatpush.bf16.msra.mxu0 0
  %1940 = vmatpush.bf16.msra.mxu0 %v1505
  %1941 = vmatpush.bf16.msra.mxu0 %v1153
  %1942 = vmatpush.bf16.msra.mxu0 %v1118
  %1943 = vmatpush.bf16.msra.mxu0 %v1083
  %1944 = vmatpush.bf16.msra.mxu0 %v1048
  %1945 = vmatpush.bf16.msra.mxu0 %v1013
  %1946 = vmatpush.bf16.msra.mxu0 %v978
  %1947 = vmatmul.bf16.gmra.mxu0 %v1402
  %v1948 = vpop.f32.mrf.mxu0
  %v1949 = vadd.f32 %v254, %v1948
  %v1950 = vpop.f32.mrf.mxu0
  %1951 = vdwg.mxu0
  %1952 = vmatpush.bf16.msra.mxu0 0
  %1953 = vmatpush.bf16.msra.mxu0 %v1508
  %1954 = vmatpush.bf16.msra.mxu0 %v1154
  %1955 = vmatpush.bf16.msra.mxu0 %v1119
  %1956 = vmatpush.bf16.msra.mxu0 %v1084
  %1957 = vmatpush.bf16.msra.mxu0 %v1049
  %1958 = vmatpush.bf16.msra.mxu0 %v1014
  %1959 = vmatpush.bf16.msra.mxu0 %v979
  %1960 = vmatmul.bf16.gmra.mxu0 %v1402
  %v1961 = vpop.f32.mrf.mxu0
  %v1962 = vadd.f32 %v254, %v1961
  %v1963 = vpop.f32.mrf.mxu0
  %1964 = vdwg.mxu0
  %v1965 = vtanh.pop %v1520
  %v1966 = vtanh.pop %v1533
  %v1967 = vtanh.pop %v1546
  %v1968 = vtanh.pop %v1559
  %v1969 = vtanh.pop %v1572
  %v1970 = vtanh.pop %v1585
  %v1971 = vtanh.pop %v1598
  %v1972 = vtanh.pop %v1611
  %v1973 = vtanh.pop %v1624
  %v1974 = vtanh.pop %v1637
  %v1975 = vtanh.pop %v1650
  %v1976 = vtanh.pop %v1663
  %v1977 = vtanh.pop %v1676
  %v1978 = vtanh.pop %v1689
  %v1979 = vtanh.pop %v1702
  %v1980 = vtanh.pop %v1715
  %v1981 = vtanh.pop %v1728
  %v1982 = vtanh.pop %v1741
  %v1983 = vtanh.pop %v1754
  %v1984 = vtanh.pop %v1767
  %v1985 = vtanh.pop %v1780
  %v1986 = vtanh.pop %v1793
  %v1987 = vtanh.pop %v1806
  %v1988 = vtanh.pop %v1819
  %v1989 = vtanh.pop %v1832
  %v1990 = vtanh.pop %v1845
  %v1991 = vtanh.pop %v1858
  %v1992 = vtanh.pop %v1871
  %v1993 = vtanh.pop %v1884
  %v1994 = vtanh.pop %v1897
  %v1995 = vtanh.pop %v1910
  %v1996 = vtanh.pop %v1923
  %v1997 = vtanh.pop %v1936
  %v1998 = vtanh.pop %v1949
  %v1999 = vtanh.pop %v1962
  %v2034 = vrot.slane %v1966, 4
  %v2035 = vrot.slane %v1968, 4
  %v2036 = vrot.slane %v1970, 4
  %v2037 = vrot.slane %v1972, 4
  %v2038 = vrot.slane %v1974, 4
  %v2039 = vrot.slane %v1976, 4
  %v2040 = vrot.slane %v1978, 4
  %v2041 = vrot.slane %v1980, 4
  %v2042 = vrot.slane %v1982, 4
  %v2043 = vrot.slane %v1984, 4
  %v2044 = vrot.slane %v1986, 4
  %v2045 = vrot.slane %v1988, 4
  %v2046 = vrot.slane %v1990, 4
  %v2047 = vrot.slane %v1992, 4
  %v2048 = vrot.slane %v1994, 4
  %v2049 = vrot.slane %v1996, 4
  %v2050 = vrot.slane %v1998, 4
  %vm2051 = vcmask 1043456
  %v2052 = vsel %vm2051, %v1965, %v2034
  %v2053 = vsel %vm2051, %v1967, %v2035
  %v2054 = vsel %vm2051, %v1969, %v2036
  %v2055 = vsel %vm2051, %v1971, %v2037
  %v2056 = vsel %vm2051, %v1973, %v2038
  %v2057 = vsel %vm2051, %v1975, %v2039
  %v2058 = vsel %vm2051, %v1977, %v2040
  %v2059 = vsel %vm2051, %v1979, %v2041
  %v2060 = vsel %vm2051, %v1981, %v2042
  %v2061 = vsel %vm2051, %v1983, %v2043
  %v2062 = vsel %vm2051, %v1985, %v2044
  %v2063 = vsel %vm2051, %v1987, %v2045
  %v2064 = vsel %vm2051, %v1989, %v2046
  %v2065 = vsel %vm2051, %v1991, %v2047
  %v2066 = vsel %vm2051, %v1993, %v2048
  %v2067 = vsel %vm2051, %v1995, %v2049
  %v2068 = vsel %vm2051, %v1997, %v2050
  %2086 = vst [vmem:[%s3] sm:$0x77] %v2052
  %2087 = vst [vmem:[%s3 + $0x8] sm:$0x77] %v2053
  %2088 = vst [vmem:[%s3 + $0x10] sm:$0x77] %v2054
  %2089 = vst [vmem:[%s3 + $0x18] sm:$0x77] %v2055
  %2090 = vst [vmem:[%s3 + $0x20] sm:$0x77] %v2056
  %2091 = vst [vmem:[%s3 + $0x28] sm:$0x77] %v2057
  %2092 = vst [vmem:[%s3 + $0x30] sm:$0x77] %v2058
  %2093 = vst [vmem:[%s3 + $0x38] sm:$0x77] %v2059
  %2094 = vst [vmem:[%s3 + $0x40] sm:$0x77] %v2060
  %2095 = vst [vmem:[%s3 + $0x48] sm:$0x77] %v2061
  %2096 = vst [vmem:[%s3 + $0x50] sm:$0x77] %v2062
  %2097 = vst [vmem:[%s3 + $0x58] sm:$0x77] %v2063
  %2098 = vst [vmem:[%s3 + $0x60] sm:$0x77] %v2064
  %2099 = vst [vmem:[%s3 + $0x68] sm:$0x77] %v2065
  %2100 = vst [vmem:[%s3 + $0x70] sm:$0x77] %v2066
  %2101 = vst [vmem:[%s3 + $0x78] sm:$0x77] %v2067
  %2102 = vst [vmem:[%s3 + $0x80] sm:$0x77] %v2068
  %vm2103 = vcmask 26624
  %2104 = vst.msk [vmem:[%s3 + $0x88] sm:$0x7] %vm2103, %v1999
  // Predicated region
  $region14: #{generator_forward.7} parent=0 // pred_check
    _
  $region15: #{generator_forward.7} parent=0 // pred_check_branch
    %2106 = sbr.rel (0) target = $region17
  $region16: #{generator_forward.7} parent=0 // pred_region
    _
  $region17: #{generator_forward.7} parent=0 // pred_fallthru
    _
  // Predicated region
  $region18: #{generator_forward.7} parent=0 // pred_check
    _
  $region19: #{generator_forward.7} parent=0 // pred_check_branch
    %2108 = sbr.rel (0) target = $region21
  $region20: #{generator_forward.7} parent=0 // pred_region
    _
  $region21: #{generator_forward.7} parent=0 // pred_fallthru
    _

</llo_original>
